<compile_context>
chip_gen: v7x
topology: tpu7x:2x2x1
jax: 0.10.0
libtpu: 0.0.40
codegen_flags: <defaults>
</compile_context>

<pallas_src>
import functools

import jax
import jax.numpy as jnp
import numpy as np
from jax import lax
from jax.experimental import pallas as pl
from jax.experimental.pallas import tpu as pltpu


def _gelu_tanh(x):
    # TODO(synk): PyTorch nn.GELU defaults to the exact erf form; the tanh approximation
    # (max abs deviation ~1e-3) is used because erf lowering is not guaranteed in Mosaic.
    return 0.5 * x * (1.0 + jnp.tanh(0.7978845608028654 * (x + 0.044715 * x * x * x)))


def _layernorm(h, g, b, eps=1e-5):
    mu = jnp.mean(h, axis=-1, keepdims=True)
    var = jnp.mean((h - mu) ** 2, axis=-1, keepdims=True)
    return (h - mu) * lax.rsqrt(var + eps) * g + b


def _block_kernel(num_heads, n_valid,
                  x_ref, g1_ref, be1_ref, wqkv_ref,
                  wp_ref, bp_ref, g2_ref, be2_ref,
                  w1_ref, b1_ref, w2_ref, b2_ref,
                  o_ref, qkv_scratch):
    n_pad, c3 = qkv_scratch.shape
    c = c3 // 3
    hd = c // num_heads
    scale = float(hd) ** -0.5
    tq = o_ref.shape[1]                         # query rows handled by this grid step

    qi = pl.program_id(1)

    # ---- once per batch element: full-sequence LayerNorm + fused QKV projection ------
    # (q axis is "arbitrary", so this scratch legally carries across q-steps.)
    @pl.when(qi == 0)
    def _():
        hf = _layernorm(x_ref[0], g1_ref[...], be1_ref[...])          # (N_pad, C) f32
        qkv = jnp.dot(hf.astype(jnp.bfloat16), wqkv_ref[...],
                      preferred_element_type=jnp.float32)             # (N_pad, 3C) f32
        qkv_scratch[...] = qkv.astype(jnp.bfloat16)

    row0 = pl.multiple_of(qi * tq, tq)
    xq = x_ref[0, pl.ds(row0, tq), :]                                 # (tq, C) f32 residual

    q_rows = qkv_scratch[pl.ds(row0, tq), :]                          # (tq, 3C) bf16
    kv_all = qkv_scratch[...]                                         # (N_pad, 3C) bf16
    q_all = q_rows[:, :c]
    k_all = kv_all[:, c:2 * c]
    v_all = kv_all[:, 2 * c:]

    # Key mask for zero-padded sequence positions (compile-time skipped if no padding).
    mask = None
    if n_valid < n_pad:
        mask = lax.broadcasted_iota(jnp.int32, (tq, n_pad), 1) < n_valid

    # ---- per-head attention: head outputs stay in registers (no scratch stores) ------
    head_outs = []
    for hh in range(num_heads):
        sl = slice(hh * hd, (hh + 1) * hd)
        # contract head dims directly (no k transpose / XLU move)
        s = lax.dot_general(q_all[:, sl], k_all[:, sl],
                            (((1,), (1,)), ((), ())),
                            preferred_element_type=jnp.float32) * scale   # (tq, N_pad)
        if mask is not None:
            s = jnp.where(mask, s, -1e30)
        s = s - jnp.max(s, axis=-1, keepdims=True)
        e = jnp.exp(s)
        p = e * pl.reciprocal(jnp.sum(e, axis=-1, keepdims=True), approx=True)
        head_outs.append(jnp.dot(p.astype(jnp.bfloat16), v_all[:, sl],
                                 preferred_element_type=jnp.float32))     # (tq, hd)
    attn = jnp.concatenate(head_outs, axis=-1)                            # (tq, C) f32

    attn = jnp.dot(attn.astype(jnp.bfloat16), wp_ref[...],
                   preferred_element_type=jnp.float32) + bp_ref[...]
    x1 = xq + attn

    # ---- MLP branch --------------------------------------------------------------------
    h2 = _layernorm(x1, g2_ref[...], be2_ref[...])
    z = jnp.dot(h2.astype(jnp.bfloat16), w1_ref[...],
                preferred_element_type=jnp.float32) + b1_ref[...]
    z = _gelu_tanh(z)
    z = jnp.dot(z.astype(jnp.bfloat16), w2_ref[...],
                preferred_element_type=jnp.float32) + b2_ref[...]

    o_ref[0] = (x1 + z).astype(o_ref.dtype)


def _round_up(a, m):
    return (a + m - 1) // m * m


def _default_vmem_limit():
    """Per-generation scoped-VMEM limit (capacity minus headroom, capped at 100 MiB)."""
    try:
        cap = int(pltpu.get_tpu_info().vmem_capacity_bytes)
    except Exception:
        cap = 64 * 1024 * 1024        # conservative: assume the smallest (v7x) part
    return max(32 * 1024 * 1024, min(cap - 16 * 1024 * 1024, 100 * 1024 * 1024))


def _weight_spec(shape, single_buffer):
    idx = lambda b, q, _n=len(shape): (0,) * _n
    if single_buffer:
        # Constant index_map -> the block never changes; single-buffer it to halve
        # resident weight VMEM (matters most on v7x's 64 MiB).
        return pl.BlockSpec(shape, idx, pipeline_mode=pl.Buffered(1))
    return pl.BlockSpec(shape, idx)


def vit_block(x, params, num_heads, *, q_block=None, vmem_limit_bytes=None):
    B, N, C = x.shape
    assert C % num_heads == 0
    hidden = params["w1"].shape[1]

    # Query-tile sizing: multiples of 8 (sublane); pad N so any q_block works
    # (e.g. ViT's N=197).  For production shapes prefer q_block in {128, 256}.
    if q_block is None:
        q_block = _round_up(N, 8)
    else:
        q_block = _round_up(int(q_block), 8)
    n_pad = _round_up(N, q_block)
    n_q = n_pad // q_block

    x_in = x if n_pad == N else jnp.pad(x, ((0, 0), (0, n_pad - N), (0, 0)))

    if vmem_limit_bytes is None:
        vmem_limit_bytes = _default_vmem_limit()

    bf16 = jnp.bfloat16
    kernel = functools.partial(_block_kernel, num_heads, N)

    def build(single_buffer):
        w = lambda shape: _weight_spec(shape, single_buffer)
        return pl.pallas_call(
            kernel,
            out_shape=jax.ShapeDtypeStruct((B, n_pad, C), x.dtype),
            grid_spec=pltpu.PrefetchScalarGridSpec(
                num_scalar_prefetch=0,
                grid=(B, n_q),
                in_specs=[
                    pl.BlockSpec((1, n_pad, C), lambda b, q: (b, 0, 0)),  # x (full seq)
                    w((1, C)), w((1, C)),                                 # norm1 gamma/beta
                    w((C, 3 * C)),                                        # fused Wqkv (bf16)
                    w((C, C)), w((1, C)),                                 # Wproj (bf16), bias
                    w((1, C)), w((1, C)),                                 # norm2 gamma/beta
                    w((C, hidden)), w((1, hidden)),                       # fc1 (bf16), bias
                    w((hidden, C)), w((1, C)),                            # fc2 (bf16), bias
                ],
                out_specs=pl.BlockSpec((1, q_block, C), lambda b, q: (b, q, 0)),
                # Per-batch-element QKV cache (bf16) — filled at q-step 0, reused after.
                scratch_shapes=[pltpu.VMEM((n_pad, 3 * C), jnp.bfloat16)],
            ),
            compiler_params=pltpu.CompilerParams(
                # batch axis: megacore-parallel; q axis: arbitrary (QKV scratch carry).
                dimension_semantics=("parallel", "arbitrary"),
                vmem_limit_bytes=vmem_limit_bytes,
            ),
        )

    args = (x_in,
            params["g1"], params["be1"],
            params["wqkv"].astype(bf16),           # no-ops: stored in bf16 already
            params["wp"].astype(bf16), params["bp"],
            params["g2"], params["be2"],
            params["w1"].astype(bf16), params["b1"],
            params["w2"].astype(bf16), params["b2"])

    try:
        out = build(True)(*args)
    except Exception:
        # Fallback for JAX versions without BlockSpec pipeline_mode / pl.Buffered.
        out = build(False)(*args)

    if n_pad != N:
        out = out[:, :N, :]
    return out


def make_params(key, dim, num_heads, mlp_ratio=4.0):
    hidden = int(dim * mlp_ratio)
    ks = jax.random.split(key, 10)
    rnd = lambda k, s, sc=0.02: sc * jax.random.normal(k, s, jnp.float32)
    bf16 = jnp.bfloat16
    return dict(
        g1=1.0 + rnd(ks[0], (1, dim), 0.05),
        be1=rnd(ks[1], (1, dim), 0.05),
        # Matmul weights stored in bf16 up-front (cast hoisted out of the forward call).
        wqkv=rnd(ks[2], (dim, 3 * dim)).astype(bf16),
        wp=rnd(ks[3], (dim, dim)).astype(bf16),
        bp=rnd(ks[4], (1, dim), 0.05),
        g2=1.0 + rnd(ks[5], (1, dim), 0.05),
        be2=rnd(ks[6], (1, dim), 0.05),
        w1=rnd(ks[7], (dim, hidden)).astype(bf16),
        b1=rnd(ks[8], (1, hidden), 0.05),
        w2=rnd(ks[9], (hidden, dim)).astype(bf16),
        b2=jnp.zeros((1, dim), jnp.float32),
    )


def vit_block_ref(x, params, num_heads):
    """Pure-JAX f32 reference (same math as the PyTorch Block, dropout = identity)."""
    B, N, C = x.shape
    H = num_heads
    hd = C // H
    scale = float(hd) ** -0.5
    f32 = jnp.float32

    def ln(h, g, b):
        mu = jnp.mean(h, axis=-1, keepdims=True)
        var = jnp.mean((h - mu) ** 2, axis=-1, keepdims=True)
        return (h - mu) / jnp.sqrt(var + 1e-5) * g + b

    h = ln(x, params["g1"], params["be1"])
    qkv = h @ params["wqkv"].astype(f32)                       # (B, N, 3C)
    q = qkv[..., :C].reshape(B, N, H, hd).transpose(0, 2, 1, 3)
    k = qkv[..., C:2 * C].reshape(B, N, H, hd).transpose(0, 2, 1, 3)
    v = qkv[..., 2 * C:].reshape(B, N, H, hd).transpose(0, 2, 1, 3)
    s = jnp.einsum("bhqd,bhkd->bhqk", q, k) * scale
    p = jax.nn.softmax(s, axis=-1)
    o = jnp.einsum("bhqk,bhkd->bhqd", p, v)
    y = o.transpose(0, 2, 1, 3).reshape(B, N, C) @ params["wp"].astype(f32) + params["bp"]
    x1 = x + y
    h2 = ln(x1, params["g2"], params["be2"])
    z = h2 @ params["w1"].astype(f32) + params["b1"]
    z = _gelu_tanh(z)
    z = z @ params["w2"].astype(f32) + params["b2"]
    return x1 + z


if __name__ == "__main__":
    B, N, C, H = 2, 16, 32, 4
    key = jax.random.PRNGKey(0)
    kx, kp = jax.random.split(key)
    x = jax.random.normal(kx, (B, N, C), jnp.float32)
    params = make_params(kp, C, H, mlp_ratio=4.0)

    ref = vit_block_ref(x, params, H)

    # Full-sequence query block: grid = (B, 1).
    out_full = jax.block_until_ready(vit_block(x, params, H))
    np.testing.assert_allclose(np.asarray(out_full), np.asarray(ref), rtol=2e-2, atol=2e-2)

    # Query-tiled variant (grid = (B, 2)) — exercises the cached-QKV q-tiling path.
    out_tiled = jax.block_until_ready(vit_block(x, params, H, q_block=8))
    np.testing.assert_allclose(np.asarray(out_tiled), np.asarray(ref), rtol=2e-2, atol=2e-2)

    # N not divisible by q_block — exercises sequence padding + key masking.
    x_odd = x[:, :13, :]
    ref_odd = vit_block_ref(x_odd, params, H)
    out_odd = jax.block_until_ready(vit_block(x_odd, params, H, q_block=8))
    np.testing.assert_allclose(np.asarray(out_odd), np.asarray(ref_odd), rtol=2e-2, atol=2e-2)

    print("KERNEL_OK")
</pallas_src>

<mosaic_0001>
module attributes {stable_mosaic.version = 11 : i64} {
  func.func @_block_kernel(%arg0: i32, %arg1: i32, %arg2: memref<1x16x32xf32, #tpu.memory_space<vmem>>, %arg3: memref<1x32xf32, #tpu.memory_space<vmem>>, %arg4: memref<1x32xf32, #tpu.memory_space<vmem>>, %arg5: memref<32x96xbf16, #tpu.memory_space<vmem>>, %arg6: memref<32x32xbf16, #tpu.memory_space<vmem>>, %arg7: memref<1x32xf32, #tpu.memory_space<vmem>>, %arg8: memref<1x32xf32, #tpu.memory_space<vmem>>, %arg9: memref<1x32xf32, #tpu.memory_space<vmem>>, %arg10: memref<32x128xbf16, #tpu.memory_space<vmem>>, %arg11: memref<1x128xf32, #tpu.memory_space<vmem>>, %arg12: memref<128x32xbf16, #tpu.memory_space<vmem>>, %arg13: memref<1x32xf32, #tpu.memory_space<vmem>>, %arg14: memref<1x16x32xf32, #tpu.memory_space<vmem>>, %arg15: memref<16x96xbf16, #tpu.memory_space<vmem>>) attributes {dimension_semantics = [#tpu.dimension_semantics<parallel>, #tpu.dimension_semantics<arbitrary>], iteration_bounds = array<i64: 2, 1>, scalar_prefetch = 0 : i64, scratch_operands = 1 : i64, tpu.core_type = #tpu.core_type<tc>, window_params = [{transform_indices = @transform_0, window_bounds = array<i64: 1, 16, 32>}, {pipeline_mode = #tpu.pipeline_mode<synchronous>, transform_indices = @transform_1, window_bounds = array<i64: 1, 32>}, {pipeline_mode = #tpu.pipeline_mode<synchronous>, transform_indices = @transform_2, window_bounds = array<i64: 1, 32>}, {pipeline_mode = #tpu.pipeline_mode<synchronous>, transform_indices = @transform_3, window_bounds = array<i64: 32, 96>}, {pipeline_mode = #tpu.pipeline_mode<synchronous>, transform_indices = @transform_4, window_bounds = array<i64: 32, 32>}, {pipeline_mode = #tpu.pipeline_mode<synchronous>, transform_indices = @transform_5, window_bounds = array<i64: 1, 32>}, {pipeline_mode = #tpu.pipeline_mode<synchronous>, transform_indices = @transform_6, window_bounds = array<i64: 1, 32>}, {pipeline_mode = #tpu.pipeline_mode<synchronous>, transform_indices = @transform_7, window_bounds = array<i64: 1, 32>}, {pipeline_mode = #tpu.pipeline_mode<synchronous>, transform_indices = @transform_8, window_bounds = array<i64: 32, 128>}, {pipeline_mode = #tpu.pipeline_mode<synchronous>, transform_indices = @transform_9, window_bounds = array<i64: 1, 128>}, {pipeline_mode = #tpu.pipeline_mode<synchronous>, transform_indices = @transform_10, window_bounds = array<i64: 128, 32>}, {pipeline_mode = #tpu.pipeline_mode<synchronous>, transform_indices = @transform_11, window_bounds = array<i64: 1, 32>}, {transform_indices = @transform_12, window_bounds = array<i64: 1, 16, 32>}]} {
    %c0_i32 = arith.constant 0 : i32
    %0 = arith.cmpi eq, %arg1, %c0_i32 : i32
    %1 = arith.extui %0 : i1 to i32
    %c0_i32_0 = arith.constant 0 : i32
    %2 = arith.cmpi ne, %1, %c0_i32_0 : i32
    scf.if %2 {
      %c0_55 = arith.constant 0 : index
      %c0_56 = arith.constant 0 : index
      %c0_57 = arith.constant 0 : index
      %147 = vector.load %arg2[%c0_55, %c0_56, %c0_57] : memref<1x16x32xf32, #tpu.memory_space<vmem>>, vector<1x16x32xf32>
      %148 = vector.shape_cast %147 : vector<1x16x32xf32> to vector<16x32xf32>
      %c0_58 = arith.constant 0 : index
      %c0_59 = arith.constant 0 : index
      %149 = vector.load %arg3[%c0_58, %c0_59] : memref<1x32xf32, #tpu.memory_space<vmem>>, vector<1x32xf32>
      %c0_60 = arith.constant 0 : index
      %c0_61 = arith.constant 0 : index
      %150 = vector.load %arg4[%c0_60, %c0_61] : memref<1x32xf32, #tpu.memory_space<vmem>>, vector<1x32xf32>
      %cst_62 = arith.constant dense<0.000000e+00> : vector<16xf32>
      %151 = vector.multi_reduction <add>, %148, %cst_62 [1] : vector<16x32xf32> to vector<16xf32>
      %152 = vector.shape_cast %151 : vector<16xf32> to vector<16x1xf32>
      %cst_63 = arith.constant 3.200000e+01 : f32
      %153 = vector.broadcast %cst_63 : f32 to vector<16x1xf32>
      %154 = arith.divf %152, %153 : vector<16x1xf32>
      %155 = vector.broadcast %154 : vector<16x1xf32> to vector<16x32xf32>
      %156 = arith.subf %148, %155 : vector<16x32xf32>
      %157 = arith.mulf %156, %156 : vector<16x32xf32>
      %cst_64 = arith.constant dense<0.000000e+00> : vector<16xf32>
      %158 = vector.multi_reduction <add>, %157, %cst_64 [1] : vector<16x32xf32> to vector<16xf32>
      %159 = vector.shape_cast %158 : vector<16xf32> to vector<16x1xf32>
      %cst_65 = arith.constant 3.200000e+01 : f32
      %160 = vector.broadcast %cst_65 : f32 to vector<16x1xf32>
      %161 = arith.divf %159, %160 : vector<16x1xf32>
      %162 = vector.broadcast %154 : vector<16x1xf32> to vector<16x32xf32>
      %163 = arith.subf %148, %162 : vector<16x32xf32>
      %cst_66 = arith.constant 9.99999974E-6 : f32
      %164 = vector.broadcast %cst_66 : f32 to vector<16x1xf32>
      %165 = arith.addf %161, %164 : vector<16x1xf32>
      %166 = math.rsqrt %165 : vector<16x1xf32>
      %167 = vector.broadcast %166 : vector<16x1xf32> to vector<16x32xf32>
      %168 = arith.mulf %163, %167 : vector<16x32xf32>
      %169 = vector.broadcast %149 : vector<1x32xf32> to vector<16x32xf32>
      %170 = arith.mulf %168, %169 : vector<16x32xf32>
      %171 = vector.broadcast %150 : vector<1x32xf32> to vector<16x32xf32>
      %172 = arith.addf %170, %171 : vector<16x32xf32>
      %173 = arith.truncf %172 : vector<16x32xf32> to vector<16x32xbf16>
      %c0_67 = arith.constant 0 : index
      %c0_68 = arith.constant 0 : index
      %174 = vector.load %arg5[%c0_67, %c0_68] : memref<32x96xbf16, #tpu.memory_space<vmem>>, vector<32x96xbf16>
      %cst_69 = arith.constant dense<0.000000e+00> : vector<16x96xf32>
      %175 = tpu.matmul %173, %174, %cst_69 {dimension_numbers = #tpu.dot_dimension_numbers<[1], [0], [0], [1], [0, 0, 1, 1], [], []>} : vector<16x32xbf16>, vector<32x96xbf16>, vector<16x96xf32> -> vector<16x96xf32>
      %176 = arith.truncf %175 : vector<16x96xf32> to vector<16x96xbf16>
      %c0_70 = arith.constant 0 : index
      %c0_71 = arith.constant 0 : index
      %177 = vector.load %arg15[%c0_70, %c0_71] : memref<16x96xbf16, #tpu.memory_space<vmem>>, vector<16x96xbf16>
      tpu.vector_store %arg15[%c0_70, %c0_71], %176 {strides = array<i32>} : memref<16x96xbf16, #tpu.memory_space<vmem>>, vector<16x96xbf16>,
    } else {
    }
    %c16_i32 = arith.constant 16 : i32
    %3 = arith.muli %arg1, %c16_i32 : i32
    %4 = tpu.assume_multiple %3, 16 : i32
    %c0 = arith.constant 0 : index
    %5 = arith.index_cast %4 : i32 to index
    %c0_1 = arith.constant 0 : index
    %6 = vector.load %arg2[%c0, %5, %c0_1] : memref<1x16x32xf32, #tpu.memory_space<vmem>>, vector<1x16x32xf32>
    %7 = vector.shape_cast %6 : vector<1x16x32xf32> to vector<16x32xf32>
    %8 = arith.index_cast %4 : i32 to index
    %c0_2 = arith.constant 0 : index
    %9 = vector.load %arg15[%8, %c0_2] : memref<16x96xbf16, #tpu.memory_space<vmem>>, vector<16x96xbf16>
    %c0_3 = arith.constant 0 : index
    %c0_4 = arith.constant 0 : index
    %10 = vector.load %arg15[%c0_3, %c0_4] : memref<16x96xbf16, #tpu.memory_space<vmem>>, vector<16x96xbf16>
    %11 = vector.extract_strided_slice %9 {offsets = [0, 0], sizes = [16, 32], strides = [1, 1]} : vector<16x96xbf16> to vector<16x32xbf16>
    %12 = vector.extract_strided_slice %10 {offsets = [0, 32], sizes = [16, 32], strides = [1, 1]} : vector<16x96xbf16> to vector<16x32xbf16>
    %13 = vector.extract_strided_slice %10 {offsets = [0, 64], sizes = [16, 32], strides = [1, 1]} : vector<16x96xbf16> to vector<16x32xbf16>
    %14 = vector.extract_strided_slice %11 {offsets = [0, 0], sizes = [16, 8], strides = [1, 1]} : vector<16x32xbf16> to vector<16x8xbf16>
    %15 = vector.extract_strided_slice %12 {offsets = [0, 0], sizes = [16, 8], strides = [1, 1]} : vector<16x32xbf16> to vector<16x8xbf16>
    %cst = arith.constant dense<0.000000e+00> : vector<16x16xf32>
    %16 = tpu.matmul %14, %15, %cst {dimension_numbers = #tpu.dot_dimension_numbers<[1], [1], [0], [0], [0, 0, 1, 0], [], []>} : vector<16x8xbf16>, vector<16x8xbf16>, vector<16x16xf32> -> vector<16x16xf32>
    %cst_5 = arith.constant 0.353553385 : f32
    %17 = vector.broadcast %cst_5 : f32 to vector<16x16xf32>
    %18 = arith.mulf %16, %17 : vector<16x16xf32>
    %cst_6 = arith.constant dense<0xFF800000> : vector<16xf32>
    %19 = vector.multi_reduction <maximumf>, %18, %cst_6 [1] : vector<16x16xf32> to vector<16xf32>
    %20 = vector.shape_cast %19 : vector<16xf32> to vector<16x1xf32>
    %21 = vector.broadcast %20 : vector<16x1xf32> to vector<16x16xf32>
    %22 = arith.subf %18, %21 : vector<16x16xf32>
    %23 = math.exp %22 : vector<16x16xf32>
    %cst_7 = arith.constant dense<0.000000e+00> : vector<16xf32>
    %24 = vector.multi_reduction <add>, %23, %cst_7 [1] : vector<16x16xf32> to vector<16xf32>
    %25 = vector.shape_cast %24 : vector<16xf32> to vector<16x1xf32>
    %26 = tpu.reciprocal %25 {approx = true} : vector<16x1xf32> -> vector<16x1xf32>
    %27 = vector.broadcast %26 : vector<16x1xf32> to vector<16x16xf32>
    %28 = arith.mulf %23, %27 : vector<16x16xf32>
    %29 = arith.truncf %28 : vector<16x16xf32> to vector<16x16xbf16>
    %30 = vector.extract_strided_slice %13 {offsets = [0, 0], sizes = [16, 8], strides = [1, 1]} : vector<16x32xbf16> to vector<16x8xbf16>
    %cst_8 = arith.constant dense<0.000000e+00> : vector<16x8xf32>
    %31 = tpu.matmul %29, %30, %cst_8 {dimension_numbers = #tpu.dot_dimension_numbers<[1], [0], [0], [1], [0, 0, 1, 1], [], []>} : vector<16x16xbf16>, vector<16x8xbf16>, vector<16x8xf32> -> vector<16x8xf32>
    %32 = vector.extract_strided_slice %11 {offsets = [0, 8], sizes = [16, 8], strides = [1, 1]} : vector<16x32xbf16> to vector<16x8xbf16>
    %33 = vector.extract_strided_slice %12 {offsets = [0, 8], sizes = [16, 8], strides = [1, 1]} : vector<16x32xbf16> to vector<16x8xbf16>
    %cst_9 = arith.constant dense<0.000000e+00> : vector<16x16xf32>
    %34 = tpu.matmul %32, %33, %cst_9 {dimension_numbers = #tpu.dot_dimension_numbers<[1], [1], [0], [0], [0, 0, 1, 0], [], []>} : vector<16x8xbf16>, vector<16x8xbf16>, vector<16x16xf32> -> vector<16x16xf32>
    %cst_10 = arith.constant 0.353553385 : f32
    %35 = vector.broadcast %cst_10 : f32 to vector<16x16xf32>
    %36 = arith.mulf %34, %35 : vector<16x16xf32>
    %cst_11 = arith.constant dense<0xFF800000> : vector<16xf32>
    %37 = vector.multi_reduction <maximumf>, %36, %cst_11 [1] : vector<16x16xf32> to vector<16xf32>
    %38 = vector.shape_cast %37 : vector<16xf32> to vector<16x1xf32>
    %39 = vector.broadcast %38 : vector<16x1xf32> to vector<16x16xf32>
    %40 = arith.subf %36, %39 : vector<16x16xf32>
    %41 = math.exp %40 : vector<16x16xf32>
    %cst_12 = arith.constant dense<0.000000e+00> : vector<16xf32>
    %42 = vector.multi_reduction <add>, %41, %cst_12 [1] : vector<16x16xf32> to vector<16xf32>
    %43 = vector.shape_cast %42 : vector<16xf32> to vector<16x1xf32>
    %44 = tpu.reciprocal %43 {approx = true} : vector<16x1xf32> -> vector<16x1xf32>
    %45 = vector.broadcast %44 : vector<16x1xf32> to vector<16x16xf32>
    %46 = arith.mulf %41, %45 : vector<16x16xf32>
    %47 = arith.truncf %46 : vector<16x16xf32> to vector<16x16xbf16>
    %48 = vector.extract_strided_slice %13 {offsets = [0, 8], sizes = [16, 8], strides = [1, 1]} : vector<16x32xbf16> to vector<16x8xbf16>
    %cst_13 = arith.constant dense<0.000000e+00> : vector<16x8xf32>
    %49 = tpu.matmul %47, %48, %cst_13 {dimension_numbers = #tpu.dot_dimension_numbers<[1], [0], [0], [1], [0, 0, 1, 1], [], []>} : vector<16x16xbf16>, vector<16x8xbf16>, vector<16x8xf32> -> vector<16x8xf32>
    %50 = vector.extract_strided_slice %11 {offsets = [0, 16], sizes = [16, 8], strides = [1, 1]} : vector<16x32xbf16> to vector<16x8xbf16>
    %51 = vector.extract_strided_slice %12 {offsets = [0, 16], sizes = [16, 8], strides = [1, 1]} : vector<16x32xbf16> to vector<16x8xbf16>
    %cst_14 = arith.constant dense<0.000000e+00> : vector<16x16xf32>
    %52 = tpu.matmul %50, %51, %cst_14 {dimension_numbers = #tpu.dot_dimension_numbers<[1], [1], [0], [0], [0, 0, 1, 0], [], []>} : vector<16x8xbf16>, vector<16x8xbf16>, vector<16x16xf32> -> vector<16x16xf32>
    %cst_15 = arith.constant 0.353553385 : f32
    %53 = vector.broadcast %cst_15 : f32 to vector<16x16xf32>
    %54 = arith.mulf %52, %53 : vector<16x16xf32>
    %cst_16 = arith.constant dense<0xFF800000> : vector<16xf32>
    %55 = vector.multi_reduction <maximumf>, %54, %cst_16 [1] : vector<16x16xf32> to vector<16xf32>
    %56 = vector.shape_cast %55 : vector<16xf32> to vector<16x1xf32>
    %57 = vector.broadcast %56 : vector<16x1xf32> to vector<16x16xf32>
    %58 = arith.subf %54, %57 : vector<16x16xf32>
    %59 = math.exp %58 : vector<16x16xf32>
    %cst_17 = arith.constant dense<0.000000e+00> : vector<16xf32>
    %60 = vector.multi_reduction <add>, %59, %cst_17 [1] : vector<16x16xf32> to vector<16xf32>
    %61 = vector.shape_cast %60 : vector<16xf32> to vector<16x1xf32>
    %62 = tpu.reciprocal %61 {approx = true} : vector<16x1xf32> -> vector<16x1xf32>
    %63 = vector.broadcast %62 : vector<16x1xf32> to vector<16x16xf32>
    %64 = arith.mulf %59, %63 : vector<16x16xf32>
    %65 = arith.truncf %64 : vector<16x16xf32> to vector<16x16xbf16>
    %66 = vector.extract_strided_slice %13 {offsets = [0, 16], sizes = [16, 8], strides = [1, 1]} : vector<16x32xbf16> to vector<16x8xbf16>
    %cst_18 = arith.constant dense<0.000000e+00> : vector<16x8xf32>
    %67 = tpu.matmul %65, %66, %cst_18 {dimension_numbers = #tpu.dot_dimension_numbers<[1], [0], [0], [1], [0, 0, 1, 1], [], []>} : vector<16x16xbf16>, vector<16x8xbf16>, vector<16x8xf32> -> vector<16x8xf32>
    %68 = vector.extract_strided_slice %11 {offsets = [0, 24], sizes = [16, 8], strides = [1, 1]} : vector<16x32xbf16> to vector<16x8xbf16>
    %69 = vector.extract_strided_slice %12 {offsets = [0, 24], sizes = [16, 8], strides = [1, 1]} : vector<16x32xbf16> to vector<16x8xbf16>
    %cst_19 = arith.constant dense<0.000000e+00> : vector<16x16xf32>
    %70 = tpu.matmul %68, %69, %cst_19 {dimension_numbers = #tpu.dot_dimension_numbers<[1], [1], [0], [0], [0, 0, 1, 0], [], []>} : vector<16x8xbf16>, vector<16x8xbf16>, vector<16x16xf32> -> vector<16x16xf32>
    %cst_20 = arith.constant 0.353553385 : f32
    %71 = vector.broadcast %cst_20 : f32 to vector<16x16xf32>
    %72 = arith.mulf %70, %71 : vector<16x16xf32>
    %cst_21 = arith.constant dense<0xFF800000> : vector<16xf32>
    %73 = vector.multi_reduction <maximumf>, %72, %cst_21 [1] : vector<16x16xf32> to vector<16xf32>
    %74 = vector.shape_cast %73 : vector<16xf32> to vector<16x1xf32>
    %75 = vector.broadcast %74 : vector<16x1xf32> to vector<16x16xf32>
    %76 = arith.subf %72, %75 : vector<16x16xf32>
    %77 = math.exp %76 : vector<16x16xf32>
    %cst_22 = arith.constant dense<0.000000e+00> : vector<16xf32>
    %78 = vector.multi_reduction <add>, %77, %cst_22 [1] : vector<16x16xf32> to vector<16xf32>
    %79 = vector.shape_cast %78 : vector<16xf32> to vector<16x1xf32>
    %80 = tpu.reciprocal %79 {approx = true} : vector<16x1xf32> -> vector<16x1xf32>
    %81 = vector.broadcast %80 : vector<16x1xf32> to vector<16x16xf32>
    %82 = arith.mulf %77, %81 : vector<16x16xf32>
    %83 = arith.truncf %82 : vector<16x16xf32> to vector<16x16xbf16>
    %84 = vector.extract_strided_slice %13 {offsets = [0, 24], sizes = [16, 8], strides = [1, 1]} : vector<16x32xbf16> to vector<16x8xbf16>
    %cst_23 = arith.constant dense<0.000000e+00> : vector<16x8xf32>
    %85 = tpu.matmul %83, %84, %cst_23 {dimension_numbers = #tpu.dot_dimension_numbers<[1], [0], [0], [1], [0, 0, 1, 1], [], []>} : vector<16x16xbf16>, vector<16x8xbf16>, vector<16x8xf32> -> vector<16x8xf32>
    %86 = tpu.concatenate %31, %49, %67, %85 in 1 : vector<16x8xf32>, vector<16x8xf32>, vector<16x8xf32>, vector<16x8xf32> -> vector<16x32xf32>
    %87 = arith.truncf %86 : vector<16x32xf32> to vector<16x32xbf16>
    %c0_24 = arith.constant 0 : index
    %c0_25 = arith.constant 0 : index
    %88 = vector.load %arg6[%c0_24, %c0_25] : memref<32x32xbf16, #tpu.memory_space<vmem>>, vector<32x32xbf16>
    %cst_26 = arith.constant dense<0.000000e+00> : vector<16x32xf32>
    %89 = tpu.matmul %87, %88, %cst_26 {dimension_numbers = #tpu.dot_dimension_numbers<[1], [0], [0], [1], [0, 0, 1, 1], [], []>} : vector<16x32xbf16>, vector<32x32xbf16>, vector<16x32xf32> -> vector<16x32xf32>
    %c0_27 = arith.constant 0 : index
    %c0_28 = arith.constant 0 : index
    %90 = vector.load %arg7[%c0_27, %c0_28] : memref<1x32xf32, #tpu.memory_space<vmem>>, vector<1x32xf32>
    %91 = vector.broadcast %90 : vector<1x32xf32> to vector<16x32xf32>
    %92 = arith.addf %89, %91 : vector<16x32xf32>
    %93 = arith.addf %7, %92 : vector<16x32xf32>
    %c0_29 = arith.constant 0 : index
    %c0_30 = arith.constant 0 : index
    %94 = vector.load %arg8[%c0_29, %c0_30] : memref<1x32xf32, #tpu.memory_space<vmem>>, vector<1x32xf32>
    %c0_31 = arith.constant 0 : index
    %c0_32 = arith.constant 0 : index
    %95 = vector.load %arg9[%c0_31, %c0_32] : memref<1x32xf32, #tpu.memory_space<vmem>>, vector<1x32xf32>
    %cst_33 = arith.constant dense<0.000000e+00> : vector<16xf32>
    %96 = vector.multi_reduction <add>, %93, %cst_33 [1] : vector<16x32xf32> to vector<16xf32>
    %97 = vector.shape_cast %96 : vector<16xf32> to vector<16x1xf32>
    %cst_34 = arith.constant 3.200000e+01 : f32
    %98 = vector.broadcast %cst_34 : f32 to vector<16x1xf32>
    %99 = arith.divf %97, %98 : vector<16x1xf32>
    %100 = vector.broadcast %99 : vector<16x1xf32> to vector<16x32xf32>
    %101 = arith.subf %93, %100 : vector<16x32xf32>
    %102 = arith.mulf %101, %101 : vector<16x32xf32>
    %cst_35 = arith.constant dense<0.000000e+00> : vector<16xf32>
    %103 = vector.multi_reduction <add>, %102, %cst_35 [1] : vector<16x32xf32> to vector<16xf32>
    %104 = vector.shape_cast %103 : vector<16xf32> to vector<16x1xf32>
    %cst_36 = arith.constant 3.200000e+01 : f32
    %105 = vector.broadcast %cst_36 : f32 to vector<16x1xf32>
    %106 = arith.divf %104, %105 : vector<16x1xf32>
    %107 = vector.broadcast %99 : vector<16x1xf32> to vector<16x32xf32>
    %108 = arith.subf %93, %107 : vector<16x32xf32>
    %cst_37 = arith.constant 9.99999974E-6 : f32
    %109 = vector.broadcast %cst_37 : f32 to vector<16x1xf32>
    %110 = arith.addf %106, %109 : vector<16x1xf32>
    %111 = math.rsqrt %110 : vector<16x1xf32>
    %112 = vector.broadcast %111 : vector<16x1xf32> to vector<16x32xf32>
    %113 = arith.mulf %108, %112 : vector<16x32xf32>
    %114 = vector.broadcast %94 : vector<1x32xf32> to vector<16x32xf32>
    %115 = arith.mulf %113, %114 : vector<16x32xf32>
    %116 = vector.broadcast %95 : vector<1x32xf32> to vector<16x32xf32>
    %117 = arith.addf %115, %116 : vector<16x32xf32>
    %118 = arith.truncf %117 : vector<16x32xf32> to vector<16x32xbf16>
    %c0_38 = arith.constant 0 : index
    %c0_39 = arith.constant 0 : index
    %119 = vector.load %arg10[%c0_38, %c0_39] : memref<32x128xbf16, #tpu.memory_space<vmem>>, vector<32x128xbf16>
    %cst_40 = arith.constant dense<0.000000e+00> : vector<16x128xf32>
    %120 = tpu.matmul %118, %119, %cst_40 {dimension_numbers = #tpu.dot_dimension_numbers<[1], [0], [0], [1], [0, 0, 1, 1], [], []>} : vector<16x32xbf16>, vector<32x128xbf16>, vector<16x128xf32> -> vector<16x128xf32>
    %c0_41 = arith.constant 0 : index
    %c0_42 = arith.constant 0 : index
    %121 = vector.load %arg11[%c0_41, %c0_42] : memref<1x128xf32, #tpu.memory_space<vmem>>, vector<1x128xf32>
    %122 = vector.broadcast %121 : vector<1x128xf32> to vector<16x128xf32>
    %123 = arith.addf %120, %122 : vector<16x128xf32>
    %cst_43 = arith.constant 5.000000e-01 : f32
    %124 = vector.broadcast %cst_43 : f32 to vector<16x128xf32>
    %125 = arith.mulf %124, %123 : vector<16x128xf32>
    %cst_44 = arith.constant 4.471500e-02 : f32
    %126 = vector.broadcast %cst_44 : f32 to vector<16x128xf32>
    %127 = arith.mulf %126, %123 : vector<16x128xf32>
    %128 = arith.mulf %127, %123 : vector<16x128xf32>
    %129 = arith.mulf %128, %123 : vector<16x128xf32>
    %130 = arith.addf %123, %129 : vector<16x128xf32>
    %cst_45 = arith.constant 0.797884583 : f32
    %131 = vector.broadcast %cst_45 : f32 to vector<16x128xf32>
    %132 = arith.mulf %131, %130 : vector<16x128xf32>
    %133 = math.tanh %132 : vector<16x128xf32>
    %cst_46 = arith.constant 1.000000e+00 : f32
    %134 = vector.broadcast %cst_46 : f32 to vector<16x128xf32>
    %135 = arith.addf %134, %133 : vector<16x128xf32>
    %136 = arith.mulf %125, %135 : vector<16x128xf32>
    %137 = arith.truncf %136 : vector<16x128xf32> to vector<16x128xbf16>
    %c0_47 = arith.constant 0 : index
    %c0_48 = arith.constant 0 : index
    %138 = vector.load %arg12[%c0_47, %c0_48] : memref<128x32xbf16, #tpu.memory_space<vmem>>, vector<128x32xbf16>
    %cst_49 = arith.constant dense<0.000000e+00> : vector<16x32xf32>
    %139 = tpu.matmul %137, %138, %cst_49 {dimension_numbers = #tpu.dot_dimension_numbers<[1], [0], [0], [1], [0, 0, 1, 1], [], []>} : vector<16x128xbf16>, vector<128x32xbf16>, vector<16x32xf32> -> vector<16x32xf32>
    %c0_50 = arith.constant 0 : index
    %c0_51 = arith.constant 0 : index
    %140 = vector.load %arg13[%c0_50, %c0_51] : memref<1x32xf32, #tpu.memory_space<vmem>>, vector<1x32xf32>
    %141 = vector.broadcast %140 : vector<1x32xf32> to vector<16x32xf32>
    %142 = arith.addf %139, %141 : vector<16x32xf32>
    %143 = arith.addf %93, %142 : vector<16x32xf32>
    %c0_52 = arith.constant 0 : index
    %c0_53 = arith.constant 0 : index
    %c0_54 = arith.constant 0 : index
    %144 = vector.load %arg14[%c0_52, %c0_53, %c0_54] : memref<1x16x32xf32, #tpu.memory_space<vmem>>, vector<1x16x32xf32>
    %145 = vector.shape_cast %144 : vector<1x16x32xf32> to vector<16x32xf32>
    %146 = vector.shape_cast %143 : vector<16x32xf32> to vector<1x16x32xf32>
    tpu.vector_store %arg14[%c0_52, %c0_53, %c0_54], %146 {strides = array<i32>} : memref<1x16x32xf32, #tpu.memory_space<vmem>>, vector<1x16x32xf32>,
    return
  }
  func.func @transform_0(%arg0: i32, %arg1: i32) -> (i32, i32, i32) {
    %c0_i32 = arith.constant 0 : i32
    %c0_i32_0 = arith.constant 0 : i32
    %c0_i32_1 = arith.constant 0 : i32
    return %arg0, %c0_i32, %c0_i32_0 : i32, i32, i32
  }
  func.func @transform_1(%arg0: i32, %arg1: i32) -> (i32, i32) {
    %c0_i32 = arith.constant 0 : i32
    %c0_i32_0 = arith.constant 0 : i32
    %c0_i32_1 = arith.constant 0 : i32
    return %c0_i32, %c0_i32_0 : i32, i32
  }
  func.func @transform_2(%arg0: i32, %arg1: i32) -> (i32, i32) {
    %c0_i32 = arith.constant 0 : i32
    %c0_i32_0 = arith.constant 0 : i32
    %c0_i32_1 = arith.constant 0 : i32
    return %c0_i32, %c0_i32_0 : i32, i32
  }
  func.func @transform_3(%arg0: i32, %arg1: i32) -> (i32, i32) {
    %c0_i32 = arith.constant 0 : i32
    %c0_i32_0 = arith.constant 0 : i32
    %c0_i32_1 = arith.constant 0 : i32
    return %c0_i32, %c0_i32_0 : i32, i32
  }
  func.func @transform_4(%arg0: i32, %arg1: i32) -> (i32, i32) {
    %c0_i32 = arith.constant 0 : i32
    %c0_i32_0 = arith.constant 0 : i32
    %c0_i32_1 = arith.constant 0 : i32
    return %c0_i32, %c0_i32_0 : i32, i32
  }
  func.func @transform_5(%arg0: i32, %arg1: i32) -> (i32, i32) {
    %c0_i32 = arith.constant 0 : i32
    %c0_i32_0 = arith.constant 0 : i32
    %c0_i32_1 = arith.constant 0 : i32
    return %c0_i32, %c0_i32_0 : i32, i32
  }
  func.func @transform_6(%arg0: i32, %arg1: i32) -> (i32, i32) {
    %c0_i32 = arith.constant 0 : i32
    %c0_i32_0 = arith.constant 0 : i32
    %c0_i32_1 = arith.constant 0 : i32
    return %c0_i32, %c0_i32_0 : i32, i32
  }
  func.func @transform_7(%arg0: i32, %arg1: i32) -> (i32, i32) {
    %c0_i32 = arith.constant 0 : i32
    %c0_i32_0 = arith.constant 0 : i32
    %c0_i32_1 = arith.constant 0 : i32
    return %c0_i32, %c0_i32_0 : i32, i32
  }
  func.func @transform_8(%arg0: i32, %arg1: i32) -> (i32, i32) {
    %c0_i32 = arith.constant 0 : i32
    %c0_i32_0 = arith.constant 0 : i32
    %c0_i32_1 = arith.constant 0 : i32
    return %c0_i32, %c0_i32_0 : i32, i32
  }
  func.func @transform_9(%arg0: i32, %arg1: i32) -> (i32, i32) {
    %c0_i32 = arith.constant 0 : i32
    %c0_i32_0 = arith.constant 0 : i32
    %c0_i32_1 = arith.constant 0 : i32
    return %c0_i32, %c0_i32_0 : i32, i32
  }
  func.func @transform_10(%arg0: i32, %arg1: i32) -> (i32, i32) {
    %c0_i32 = arith.constant 0 : i32
    %c0_i32_0 = arith.constant 0 : i32
    %c0_i32_1 = arith.constant 0 : i32
    return %c0_i32, %c0_i32_0 : i32, i32
  }
  func.func @transform_11(%arg0: i32, %arg1: i32) -> (i32, i32) {
    %c0_i32 = arith.constant 0 : i32
    %c0_i32_0 = arith.constant 0 : i32
    %c0_i32_1 = arith.constant 0 : i32
    return %c0_i32, %c0_i32_0 : i32, i32
  }
  func.func @transform_12(%arg0: i32, %arg1: i32) -> (i32, i32, i32) {
    %c0_i32 = arith.constant 0 : i32
    %c0_i32_0 = arith.constant 0 : i32
    return %arg0, %arg1, %c0_i32 : i32, i32, i32
  }
}

module attributes {stable_mosaic.version = 11 : i64} {
  func.func @_block_kernel(%arg0: i32, %arg1: i32, %arg2: memref<1x16x32xf32, #tpu.memory_space<vmem>>, %arg3: memref<1x32xf32, #tpu.memory_space<vmem>>, %arg4: memref<1x32xf32, #tpu.memory_space<vmem>>, %arg5: memref<32x96xbf16, #tpu.memory_space<vmem>>, %arg6: memref<32x32xbf16, #tpu.memory_space<vmem>>, %arg7: memref<1x32xf32, #tpu.memory_space<vmem>>, %arg8: memref<1x32xf32, #tpu.memory_space<vmem>>, %arg9: memref<1x32xf32, #tpu.memory_space<vmem>>, %arg10: memref<32x128xbf16, #tpu.memory_space<vmem>>, %arg11: memref<1x128xf32, #tpu.memory_space<vmem>>, %arg12: memref<128x32xbf16, #tpu.memory_space<vmem>>, %arg13: memref<1x32xf32, #tpu.memory_space<vmem>>, %arg14: memref<1x16x32xf32, #tpu.memory_space<vmem>>, %arg15: memref<16x96xbf16, #tpu.memory_space<vmem>>) attributes {dimension_semantics = [#tpu.dimension_semantics<parallel>, #tpu.dimension_semantics<arbitrary>], iteration_bounds = array<i64: 2, 1>, scalar_prefetch = 0 : i64, scratch_operands = 1 : i64, tpu.core_type = #tpu.core_type<tc>, window_params = [{transform_indices = @transform_0, window_bounds = array<i64: 1, 16, 32>}, {pipeline_mode = #tpu.pipeline_mode<synchronous>, transform_indices = @transform_1, window_bounds = array<i64: 1, 32>}, {pipeline_mode = #tpu.pipeline_mode<synchronous>, transform_indices = @transform_2, window_bounds = array<i64: 1, 32>}, {pipeline_mode = #tpu.pipeline_mode<synchronous>, transform_indices = @transform_3, window_bounds = array<i64: 32, 96>}, {pipeline_mode = #tpu.pipeline_mode<synchronous>, transform_indices = @transform_4, window_bounds = array<i64: 32, 32>}, {pipeline_mode = #tpu.pipeline_mode<synchronous>, transform_indices = @transform_5, window_bounds = array<i64: 1, 32>}, {pipeline_mode = #tpu.pipeline_mode<synchronous>, transform_indices = @transform_6, window_bounds = array<i64: 1, 32>}, {pipeline_mode = #tpu.pipeline_mode<synchronous>, transform_indices = @transform_7, window_bounds = array<i64: 1, 32>}, {pipeline_mode = #tpu.pipeline_mode<synchronous>, transform_indices = @transform_8, window_bounds = array<i64: 32, 128>}, {pipeline_mode = #tpu.pipeline_mode<synchronous>, transform_indices = @transform_9, window_bounds = array<i64: 1, 128>}, {pipeline_mode = #tpu.pipeline_mode<synchronous>, transform_indices = @transform_10, window_bounds = array<i64: 128, 32>}, {pipeline_mode = #tpu.pipeline_mode<synchronous>, transform_indices = @transform_11, window_bounds = array<i64: 1, 32>}, {transform_indices = @transform_12, window_bounds = array<i64: 1, 16, 32>}]} {
    %c0_i32 = arith.constant 0 : i32
    %0 = arith.cmpi eq, %arg1, %c0_i32 : i32
    %1 = arith.extui %0 : i1 to i32
    %c0_i32_0 = arith.constant 0 : i32
    %2 = arith.cmpi ne, %1, %c0_i32_0 : i32
    scf.if %2 {
      %c0_55 = arith.constant 0 : index
      %c0_56 = arith.constant 0 : index
      %c0_57 = arith.constant 0 : index
      %147 = vector.load %arg2[%c0_55, %c0_56, %c0_57] : memref<1x16x32xf32, #tpu.memory_space<vmem>>, vector<1x16x32xf32>
      %148 = vector.shape_cast %147 : vector<1x16x32xf32> to vector<16x32xf32>
      %c0_58 = arith.constant 0 : index
      %c0_59 = arith.constant 0 : index
      %149 = vector.load %arg3[%c0_58, %c0_59] : memref<1x32xf32, #tpu.memory_space<vmem>>, vector<1x32xf32>
      %c0_60 = arith.constant 0 : index
      %c0_61 = arith.constant 0 : index
      %150 = vector.load %arg4[%c0_60, %c0_61] : memref<1x32xf32, #tpu.memory_space<vmem>>, vector<1x32xf32>
      %cst_62 = arith.constant dense<0.000000e+00> : vector<16xf32>
      %151 = vector.multi_reduction <add>, %148, %cst_62 [1] : vector<16x32xf32> to vector<16xf32>
      %152 = vector.shape_cast %151 : vector<16xf32> to vector<16x1xf32>
      %cst_63 = arith.constant 3.200000e+01 : f32
      %153 = vector.broadcast %cst_63 : f32 to vector<16x1xf32>
      %154 = arith.divf %152, %153 : vector<16x1xf32>
      %155 = vector.broadcast %154 : vector<16x1xf32> to vector<16x32xf32>
      %156 = arith.subf %148, %155 : vector<16x32xf32>
      %157 = arith.mulf %156, %156 : vector<16x32xf32>
      %cst_64 = arith.constant dense<0.000000e+00> : vector<16xf32>
      %158 = vector.multi_reduction <add>, %157, %cst_64 [1] : vector<16x32xf32> to vector<16xf32>
      %159 = vector.shape_cast %158 : vector<16xf32> to vector<16x1xf32>
      %cst_65 = arith.constant 3.200000e+01 : f32
      %160 = vector.broadcast %cst_65 : f32 to vector<16x1xf32>
      %161 = arith.divf %159, %160 : vector<16x1xf32>
      %162 = vector.broadcast %154 : vector<16x1xf32> to vector<16x32xf32>
      %163 = arith.subf %148, %162 : vector<16x32xf32>
      %cst_66 = arith.constant 9.99999974E-6 : f32
      %164 = vector.broadcast %cst_66 : f32 to vector<16x1xf32>
      %165 = arith.addf %161, %164 : vector<16x1xf32>
      %166 = math.rsqrt %165 : vector<16x1xf32>
      %167 = vector.broadcast %166 : vector<16x1xf32> to vector<16x32xf32>
      %168 = arith.mulf %163, %167 : vector<16x32xf32>
      %169 = vector.broadcast %149 : vector<1x32xf32> to vector<16x32xf32>
      %170 = arith.mulf %168, %169 : vector<16x32xf32>
      %171 = vector.broadcast %150 : vector<1x32xf32> to vector<16x32xf32>
      %172 = arith.addf %170, %171 : vector<16x32xf32>
      %173 = arith.truncf %172 : vector<16x32xf32> to vector<16x32xbf16>
      %c0_67 = arith.constant 0 : index
      %c0_68 = arith.constant 0 : index
      %174 = vector.load %arg5[%c0_67, %c0_68] : memref<32x96xbf16, #tpu.memory_space<vmem>>, vector<32x96xbf16>
      %cst_69 = arith.constant dense<0.000000e+00> : vector<16x96xf32>
      %175 = tpu.matmul %173, %174, %cst_69 {dimension_numbers = #tpu.dot_dimension_numbers<[1], [0], [0], [1], [0, 0, 1, 1], [], []>} : vector<16x32xbf16>, vector<32x96xbf16>, vector<16x96xf32> -> vector<16x96xf32>
      %176 = arith.truncf %175 : vector<16x96xf32> to vector<16x96xbf16>
      %c0_70 = arith.constant 0 : index
      %c0_71 = arith.constant 0 : index
      %177 = vector.load %arg15[%c0_70, %c0_71] : memref<16x96xbf16, #tpu.memory_space<vmem>>, vector<16x96xbf16>
      tpu.vector_store %arg15[%c0_70, %c0_71], %176 {strides = array<i32>} : memref<16x96xbf16, #tpu.memory_space<vmem>>, vector<16x96xbf16>,
    } else {
    }
    %c16_i32 = arith.constant 16 : i32
    %3 = arith.muli %arg1, %c16_i32 : i32
    %4 = tpu.assume_multiple %3, 16 : i32
    %c0 = arith.constant 0 : index
    %5 = arith.index_cast %4 : i32 to index
    %c0_1 = arith.constant 0 : index
    %6 = vector.load %arg2[%c0, %5, %c0_1] : memref<1x16x32xf32, #tpu.memory_space<vmem>>, vector<1x16x32xf32>
    %7 = vector.shape_cast %6 : vector<1x16x32xf32> to vector<16x32xf32>
    %8 = arith.index_cast %4 : i32 to index
    %c0_2 = arith.constant 0 : index
    %9 = vector.load %arg15[%8, %c0_2] : memref<16x96xbf16, #tpu.memory_space<vmem>>, vector<16x96xbf16>
    %c0_3 = arith.constant 0 : index
    %c0_4 = arith.constant 0 : index
    %10 = vector.load %arg15[%c0_3, %c0_4] : memref<16x96xbf16, #tpu.memory_space<vmem>>, vector<16x96xbf16>
    %11 = vector.extract_strided_slice %9 {offsets = [0, 0], sizes = [16, 32], strides = [1, 1]} : vector<16x96xbf16> to vector<16x32xbf16>
    %12 = vector.extract_strided_slice %10 {offsets = [0, 32], sizes = [16, 32], strides = [1, 1]} : vector<16x96xbf16> to vector<16x32xbf16>
    %13 = vector.extract_strided_slice %10 {offsets = [0, 64], sizes = [16, 32], strides = [1, 1]} : vector<16x96xbf16> to vector<16x32xbf16>
    %14 = vector.extract_strided_slice %11 {offsets = [0, 0], sizes = [16, 8], strides = [1, 1]} : vector<16x32xbf16> to vector<16x8xbf16>
    %15 = vector.extract_strided_slice %12 {offsets = [0, 0], sizes = [16, 8], strides = [1, 1]} : vector<16x32xbf16> to vector<16x8xbf16>
    %cst = arith.constant dense<0.000000e+00> : vector<16x16xf32>
    %16 = tpu.matmul %14, %15, %cst {dimension_numbers = #tpu.dot_dimension_numbers<[1], [1], [0], [0], [0, 0, 1, 0], [], []>} : vector<16x8xbf16>, vector<16x8xbf16>, vector<16x16xf32> -> vector<16x16xf32>
    %cst_5 = arith.constant 0.353553385 : f32
    %17 = vector.broadcast %cst_5 : f32 to vector<16x16xf32>
    %18 = arith.mulf %16, %17 : vector<16x16xf32>
    %cst_6 = arith.constant dense<0xFF800000> : vector<16xf32>
    %19 = vector.multi_reduction <maximumf>, %18, %cst_6 [1] : vector<16x16xf32> to vector<16xf32>
    %20 = vector.shape_cast %19 : vector<16xf32> to vector<16x1xf32>
    %21 = vector.broadcast %20 : vector<16x1xf32> to vector<16x16xf32>
    %22 = arith.subf %18, %21 : vector<16x16xf32>
    %23 = math.exp %22 : vector<16x16xf32>
    %cst_7 = arith.constant dense<0.000000e+00> : vector<16xf32>
    %24 = vector.multi_reduction <add>, %23, %cst_7 [1] : vector<16x16xf32> to vector<16xf32>
    %25 = vector.shape_cast %24 : vector<16xf32> to vector<16x1xf32>
    %26 = tpu.reciprocal %25 {approx = true} : vector<16x1xf32> -> vector<16x1xf32>
    %27 = vector.broadcast %26 : vector<16x1xf32> to vector<16x16xf32>
    %28 = arith.mulf %23, %27 : vector<16x16xf32>
    %29 = arith.truncf %28 : vector<16x16xf32> to vector<16x16xbf16>
    %30 = vector.extract_strided_slice %13 {offsets = [0, 0], sizes = [16, 8], strides = [1, 1]} : vector<16x32xbf16> to vector<16x8xbf16>
    %cst_8 = arith.constant dense<0.000000e+00> : vector<16x8xf32>
    %31 = tpu.matmul %29, %30, %cst_8 {dimension_numbers = #tpu.dot_dimension_numbers<[1], [0], [0], [1], [0, 0, 1, 1], [], []>} : vector<16x16xbf16>, vector<16x8xbf16>, vector<16x8xf32> -> vector<16x8xf32>
    %32 = vector.extract_strided_slice %11 {offsets = [0, 8], sizes = [16, 8], strides = [1, 1]} : vector<16x32xbf16> to vector<16x8xbf16>
    %33 = vector.extract_strided_slice %12 {offsets = [0, 8], sizes = [16, 8], strides = [1, 1]} : vector<16x32xbf16> to vector<16x8xbf16>
    %cst_9 = arith.constant dense<0.000000e+00> : vector<16x16xf32>
    %34 = tpu.matmul %32, %33, %cst_9 {dimension_numbers = #tpu.dot_dimension_numbers<[1], [1], [0], [0], [0, 0, 1, 0], [], []>} : vector<16x8xbf16>, vector<16x8xbf16>, vector<16x16xf32> -> vector<16x16xf32>
    %cst_10 = arith.constant 0.353553385 : f32
    %35 = vector.broadcast %cst_10 : f32 to vector<16x16xf32>
    %36 = arith.mulf %34, %35 : vector<16x16xf32>
    %cst_11 = arith.constant dense<0xFF800000> : vector<16xf32>
    %37 = vector.multi_reduction <maximumf>, %36, %cst_11 [1] : vector<16x16xf32> to vector<16xf32>
    %38 = vector.shape_cast %37 : vector<16xf32> to vector<16x1xf32>
    %39 = vector.broadcast %38 : vector<16x1xf32> to vector<16x16xf32>
    %40 = arith.subf %36, %39 : vector<16x16xf32>
    %41 = math.exp %40 : vector<16x16xf32>
    %cst_12 = arith.constant dense<0.000000e+00> : vector<16xf32>
    %42 = vector.multi_reduction <add>, %41, %cst_12 [1] : vector<16x16xf32> to vector<16xf32>
    %43 = vector.shape_cast %42 : vector<16xf32> to vector<16x1xf32>
    %44 = tpu.reciprocal %43 {approx = true} : vector<16x1xf32> -> vector<16x1xf32>
    %45 = vector.broadcast %44 : vector<16x1xf32> to vector<16x16xf32>
    %46 = arith.mulf %41, %45 : vector<16x16xf32>
    %47 = arith.truncf %46 : vector<16x16xf32> to vector<16x16xbf16>
    %48 = vector.extract_strided_slice %13 {offsets = [0, 8], sizes = [16, 8], strides = [1, 1]} : vector<16x32xbf16> to vector<16x8xbf16>
    %cst_13 = arith.constant dense<0.000000e+00> : vector<16x8xf32>
    %49 = tpu.matmul %47, %48, %cst_13 {dimension_numbers = #tpu.dot_dimension_numbers<[1], [0], [0], [1], [0, 0, 1, 1], [], []>} : vector<16x16xbf16>, vector<16x8xbf16>, vector<16x8xf32> -> vector<16x8xf32>
    %50 = vector.extract_strided_slice %11 {offsets = [0, 16], sizes = [16, 8], strides = [1, 1]} : vector<16x32xbf16> to vector<16x8xbf16>
    %51 = vector.extract_strided_slice %12 {offsets = [0, 16], sizes = [16, 8], strides = [1, 1]} : vector<16x32xbf16> to vector<16x8xbf16>
    %cst_14 = arith.constant dense<0.000000e+00> : vector<16x16xf32>
    %52 = tpu.matmul %50, %51, %cst_14 {dimension_numbers = #tpu.dot_dimension_numbers<[1], [1], [0], [0], [0, 0, 1, 0], [], []>} : vector<16x8xbf16>, vector<16x8xbf16>, vector<16x16xf32> -> vector<16x16xf32>
    %cst_15 = arith.constant 0.353553385 : f32
    %53 = vector.broadcast %cst_15 : f32 to vector<16x16xf32>
    %54 = arith.mulf %52, %53 : vector<16x16xf32>
    %cst_16 = arith.constant dense<0xFF800000> : vector<16xf32>
    %55 = vector.multi_reduction <maximumf>, %54, %cst_16 [1] : vector<16x16xf32> to vector<16xf32>
    %56 = vector.shape_cast %55 : vector<16xf32> to vector<16x1xf32>
    %57 = vector.broadcast %56 : vector<16x1xf32> to vector<16x16xf32>
    %58 = arith.subf %54, %57 : vector<16x16xf32>
    %59 = math.exp %58 : vector<16x16xf32>
    %cst_17 = arith.constant dense<0.000000e+00> : vector<16xf32>
    %60 = vector.multi_reduction <add>, %59, %cst_17 [1] : vector<16x16xf32> to vector<16xf32>
    %61 = vector.shape_cast %60 : vector<16xf32> to vector<16x1xf32>
    %62 = tpu.reciprocal %61 {approx = true} : vector<16x1xf32> -> vector<16x1xf32>
    %63 = vector.broadcast %62 : vector<16x1xf32> to vector<16x16xf32>
    %64 = arith.mulf %59, %63 : vector<16x16xf32>
    %65 = arith.truncf %64 : vector<16x16xf32> to vector<16x16xbf16>
    %66 = vector.extract_strided_slice %13 {offsets = [0, 16], sizes = [16, 8], strides = [1, 1]} : vector<16x32xbf16> to vector<16x8xbf16>
    %cst_18 = arith.constant dense<0.000000e+00> : vector<16x8xf32>
    %67 = tpu.matmul %65, %66, %cst_18 {dimension_numbers = #tpu.dot_dimension_numbers<[1], [0], [0], [1], [0, 0, 1, 1], [], []>} : vector<16x16xbf16>, vector<16x8xbf16>, vector<16x8xf32> -> vector<16x8xf32>
    %68 = vector.extract_strided_slice %11 {offsets = [0, 24], sizes = [16, 8], strides = [1, 1]} : vector<16x32xbf16> to vector<16x8xbf16>
    %69 = vector.extract_strided_slice %12 {offsets = [0, 24], sizes = [16, 8], strides = [1, 1]} : vector<16x32xbf16> to vector<16x8xbf16>
    %cst_19 = arith.constant dense<0.000000e+00> : vector<16x16xf32>
    %70 = tpu.matmul %68, %69, %cst_19 {dimension_numbers = #tpu.dot_dimension_numbers<[1], [1], [0], [0], [0, 0, 1, 0], [], []>} : vector<16x8xbf16>, vector<16x8xbf16>, vector<16x16xf32> -> vector<16x16xf32>
    %cst_20 = arith.constant 0.353553385 : f32
    %71 = vector.broadcast %cst_20 : f32 to vector<16x16xf32>
    %72 = arith.mulf %70, %71 : vector<16x16xf32>
    %cst_21 = arith.constant dense<0xFF800000> : vector<16xf32>
    %73 = vector.multi_reduction <maximumf>, %72, %cst_21 [1] : vector<16x16xf32> to vector<16xf32>
    %74 = vector.shape_cast %73 : vector<16xf32> to vector<16x1xf32>
    %75 = vector.broadcast %74 : vector<16x1xf32> to vector<16x16xf32>
    %76 = arith.subf %72, %75 : vector<16x16xf32>
    %77 = math.exp %76 : vector<16x16xf32>
    %cst_22 = arith.constant dense<0.000000e+00> : vector<16xf32>
    %78 = vector.multi_reduction <add>, %77, %cst_22 [1] : vector<16x16xf32> to vector<16xf32>
    %79 = vector.shape_cast %78 : vector<16xf32> to vector<16x1xf32>
    %80 = tpu.reciprocal %79 {approx = true} : vector<16x1xf32> -> vector<16x1xf32>
    %81 = vector.broadcast %80 : vector<16x1xf32> to vector<16x16xf32>
    %82 = arith.mulf %77, %81 : vector<16x16xf32>
    %83 = arith.truncf %82 : vector<16x16xf32> to vector<16x16xbf16>
    %84 = vector.extract_strided_slice %13 {offsets = [0, 24], sizes = [16, 8], strides = [1, 1]} : vector<16x32xbf16> to vector<16x8xbf16>
    %cst_23 = arith.constant dense<0.000000e+00> : vector<16x8xf32>
    %85 = tpu.matmul %83, %84, %cst_23 {dimension_numbers = #tpu.dot_dimension_numbers<[1], [0], [0], [1], [0, 0, 1, 1], [], []>} : vector<16x16xbf16>, vector<16x8xbf16>, vector<16x8xf32> -> vector<16x8xf32>
    %86 = tpu.concatenate %31, %49, %67, %85 in 1 : vector<16x8xf32>, vector<16x8xf32>, vector<16x8xf32>, vector<16x8xf32> -> vector<16x32xf32>
    %87 = arith.truncf %86 : vector<16x32xf32> to vector<16x32xbf16>
    %c0_24 = arith.constant 0 : index
    %c0_25 = arith.constant 0 : index
    %88 = vector.load %arg6[%c0_24, %c0_25] : memref<32x32xbf16, #tpu.memory_space<vmem>>, vector<32x32xbf16>
    %cst_26 = arith.constant dense<0.000000e+00> : vector<16x32xf32>
    %89 = tpu.matmul %87, %88, %cst_26 {dimension_numbers = #tpu.dot_dimension_numbers<[1], [0], [0], [1], [0, 0, 1, 1], [], []>} : vector<16x32xbf16>, vector<32x32xbf16>, vector<16x32xf32> -> vector<16x32xf32>
    %c0_27 = arith.constant 0 : index
    %c0_28 = arith.constant 0 : index
    %90 = vector.load %arg7[%c0_27, %c0_28] : memref<1x32xf32, #tpu.memory_space<vmem>>, vector<1x32xf32>
    %91 = vector.broadcast %90 : vector<1x32xf32> to vector<16x32xf32>
    %92 = arith.addf %89, %91 : vector<16x32xf32>
    %93 = arith.addf %7, %92 : vector<16x32xf32>
    %c0_29 = arith.constant 0 : index
    %c0_30 = arith.constant 0 : index
    %94 = vector.load %arg8[%c0_29, %c0_30] : memref<1x32xf32, #tpu.memory_space<vmem>>, vector<1x32xf32>
    %c0_31 = arith.constant 0 : index
    %c0_32 = arith.constant 0 : index
    %95 = vector.load %arg9[%c0_31, %c0_32] : memref<1x32xf32, #tpu.memory_space<vmem>>, vector<1x32xf32>
    %cst_33 = arith.constant dense<0.000000e+00> : vector<16xf32>
    %96 = vector.multi_reduction <add>, %93, %cst_33 [1] : vector<16x32xf32> to vector<16xf32>
    %97 = vector.shape_cast %96 : vector<16xf32> to vector<16x1xf32>
    %cst_34 = arith.constant 3.200000e+01 : f32
    %98 = vector.broadcast %cst_34 : f32 to vector<16x1xf32>
    %99 = arith.divf %97, %98 : vector<16x1xf32>
    %100 = vector.broadcast %99 : vector<16x1xf32> to vector<16x32xf32>
    %101 = arith.subf %93, %100 : vector<16x32xf32>
    %102 = arith.mulf %101, %101 : vector<16x32xf32>
    %cst_35 = arith.constant dense<0.000000e+00> : vector<16xf32>
    %103 = vector.multi_reduction <add>, %102, %cst_35 [1] : vector<16x32xf32> to vector<16xf32>
    %104 = vector.shape_cast %103 : vector<16xf32> to vector<16x1xf32>
    %cst_36 = arith.constant 3.200000e+01 : f32
    %105 = vector.broadcast %cst_36 : f32 to vector<16x1xf32>
    %106 = arith.divf %104, %105 : vector<16x1xf32>
    %107 = vector.broadcast %99 : vector<16x1xf32> to vector<16x32xf32>
    %108 = arith.subf %93, %107 : vector<16x32xf32>
    %cst_37 = arith.constant 9.99999974E-6 : f32
    %109 = vector.broadcast %cst_37 : f32 to vector<16x1xf32>
    %110 = arith.addf %106, %109 : vector<16x1xf32>
    %111 = math.rsqrt %110 : vector<16x1xf32>
    %112 = vector.broadcast %111 : vector<16x1xf32> to vector<16x32xf32>
    %113 = arith.mulf %108, %112 : vector<16x32xf32>
    %114 = vector.broadcast %94 : vector<1x32xf32> to vector<16x32xf32>
    %115 = arith.mulf %113, %114 : vector<16x32xf32>
    %116 = vector.broadcast %95 : vector<1x32xf32> to vector<16x32xf32>
    %117 = arith.addf %115, %116 : vector<16x32xf32>
    %118 = arith.truncf %117 : vector<16x32xf32> to vector<16x32xbf16>
    %c0_38 = arith.constant 0 : index
    %c0_39 = arith.constant 0 : index
    %119 = vector.load %arg10[%c0_38, %c0_39] : memref<32x128xbf16, #tpu.memory_space<vmem>>, vector<32x128xbf16>
    %cst_40 = arith.constant dense<0.000000e+00> : vector<16x128xf32>
    %120 = tpu.matmul %118, %119, %cst_40 {dimension_numbers = #tpu.dot_dimension_numbers<[1], [0], [0], [1], [0, 0, 1, 1], [], []>} : vector<16x32xbf16>, vector<32x128xbf16>, vector<16x128xf32> -> vector<16x128xf32>
    %c0_41 = arith.constant 0 : index
    %c0_42 = arith.constant 0 : index
    %121 = vector.load %arg11[%c0_41, %c0_42] : memref<1x128xf32, #tpu.memory_space<vmem>>, vector<1x128xf32>
    %122 = vector.broadcast %121 : vector<1x128xf32> to vector<16x128xf32>
    %123 = arith.addf %120, %122 : vector<16x128xf32>
    %cst_43 = arith.constant 5.000000e-01 : f32
    %124 = vector.broadcast %cst_43 : f32 to vector<16x128xf32>
    %125 = arith.mulf %124, %123 : vector<16x128xf32>
    %cst_44 = arith.constant 4.471500e-02 : f32
    %126 = vector.broadcast %cst_44 : f32 to vector<16x128xf32>
    %127 = arith.mulf %126, %123 : vector<16x128xf32>
    %128 = arith.mulf %127, %123 : vector<16x128xf32>
    %129 = arith.mulf %128, %123 : vector<16x128xf32>
    %130 = arith.addf %123, %129 : vector<16x128xf32>
    %cst_45 = arith.constant 0.797884583 : f32
    %131 = vector.broadcast %cst_45 : f32 to vector<16x128xf32>
    %132 = arith.mulf %131, %130 : vector<16x128xf32>
    %133 = math.tanh %132 : vector<16x128xf32>
    %cst_46 = arith.constant 1.000000e+00 : f32
    %134 = vector.broadcast %cst_46 : f32 to vector<16x128xf32>
    %135 = arith.addf %134, %133 : vector<16x128xf32>
    %136 = arith.mulf %125, %135 : vector<16x128xf32>
    %137 = arith.truncf %136 : vector<16x128xf32> to vector<16x128xbf16>
    %c0_47 = arith.constant 0 : index
    %c0_48 = arith.constant 0 : index
    %138 = vector.load %arg12[%c0_47, %c0_48] : memref<128x32xbf16, #tpu.memory_space<vmem>>, vector<128x32xbf16>
    %cst_49 = arith.constant dense<0.000000e+00> : vector<16x32xf32>
    %139 = tpu.matmul %137, %138, %cst_49 {dimension_numbers = #tpu.dot_dimension_numbers<[1], [0], [0], [1], [0, 0, 1, 1], [], []>} : vector<16x128xbf16>, vector<128x32xbf16>, vector<16x32xf32> -> vector<16x32xf32>
    %c0_50 = arith.constant 0 : index
    %c0_51 = arith.constant 0 : index
    %140 = vector.load %arg13[%c0_50, %c0_51] : memref<1x32xf32, #tpu.memory_space<vmem>>, vector<1x32xf32>
    %141 = vector.broadcast %140 : vector<1x32xf32> to vector<16x32xf32>
    %142 = arith.addf %139, %141 : vector<16x32xf32>
    %143 = arith.addf %93, %142 : vector<16x32xf32>
    %c0_52 = arith.constant 0 : index
    %c0_53 = arith.constant 0 : index
    %c0_54 = arith.constant 0 : index
    %144 = vector.load %arg14[%c0_52, %c0_53, %c0_54] : memref<1x16x32xf32, #tpu.memory_space<vmem>>, vector<1x16x32xf32>
    %145 = vector.shape_cast %144 : vector<1x16x32xf32> to vector<16x32xf32>
    %146 = vector.shape_cast %143 : vector<16x32xf32> to vector<1x16x32xf32>
    tpu.vector_store %arg14[%c0_52, %c0_53, %c0_54], %146 {strides = array<i32>} : memref<1x16x32xf32, #tpu.memory_space<vmem>>, vector<1x16x32xf32>,
    return
  }
  func.func @transform_0(%arg0: i32, %arg1: i32) -> (i32, i32, i32) {
    %c0_i32 = arith.constant 0 : i32
    %c0_i32_0 = arith.constant 0 : i32
    %c0_i32_1 = arith.constant 0 : i32
    return %arg0, %c0_i32, %c0_i32_0 : i32, i32, i32
  }
  func.func @transform_1(%arg0: i32, %arg1: i32) -> (i32, i32) {
    %c0_i32 = arith.constant 0 : i32
    %c0_i32_0 = arith.constant 0 : i32
    %c0_i32_1 = arith.constant 0 : i32
    return %c0_i32, %c0_i32_0 : i32, i32
  }
  func.func @transform_2(%arg0: i32, %arg1: i32) -> (i32, i32) {
    %c0_i32 = arith.constant 0 : i32
    %c0_i32_0 = arith.constant 0 : i32
    %c0_i32_1 = arith.constant 0 : i32
    return %c0_i32, %c0_i32_0 : i32, i32
  }
  func.func @transform_3(%arg0: i32, %arg1: i32) -> (i32, i32) {
    %c0_i32 = arith.constant 0 : i32
    %c0_i32_0 = arith.constant 0 : i32
    %c0_i32_1 = arith.constant 0 : i32
    return %c0_i32, %c0_i32_0 : i32, i32
  }
  func.func @transform_4(%arg0: i32, %arg1: i32) -> (i32, i32) {
    %c0_i32 = arith.constant 0 : i32
    %c0_i32_0 = arith.constant 0 : i32
    %c0_i32_1 = arith.constant 0 : i32
    return %c0_i32, %c0_i32_0 : i32, i32
  }
  func.func @transform_5(%arg0: i32, %arg1: i32) -> (i32, i32) {
    %c0_i32 = arith.constant 0 : i32
    %c0_i32_0 = arith.constant 0 : i32
    %c0_i32_1 = arith.constant 0 : i32
    return %c0_i32, %c0_i32_0 : i32, i32
  }
  func.func @transform_6(%arg0: i32, %arg1: i32) -> (i32, i32) {
    %c0_i32 = arith.constant 0 : i32
    %c0_i32_0 = arith.constant 0 : i32
    %c0_i32_1 = arith.constant 0 : i32
    return %c0_i32, %c0_i32_0 : i32, i32
  }
  func.func @transform_7(%arg0: i32, %arg1: i32) -> (i32, i32) {
    %c0_i32 = arith.constant 0 : i32
    %c0_i32_0 = arith.constant 0 : i32
    %c0_i32_1 = arith.constant 0 : i32
    return %c0_i32, %c0_i32_0 : i32, i32
  }
  func.func @transform_8(%arg0: i32, %arg1: i32) -> (i32, i32) {
    %c0_i32 = arith.constant 0 : i32
    %c0_i32_0 = arith.constant 0 : i32
    %c0_i32_1 = arith.constant 0 : i32
    return %c0_i32, %c0_i32_0 : i32, i32
  }
  func.func @transform_9(%arg0: i32, %arg1: i32) -> (i32, i32) {
    %c0_i32 = arith.constant 0 : i32
    %c0_i32_0 = arith.constant 0 : i32
    %c0_i32_1 = arith.constant 0 : i32
    return %c0_i32, %c0_i32_0 : i32, i32
  }
  func.func @transform_10(%arg0: i32, %arg1: i32) -> (i32, i32) {
    %c0_i32 = arith.constant 0 : i32
    %c0_i32_0 = arith.constant 0 : i32
    %c0_i32_1 = arith.constant 0 : i32
    return %c0_i32, %c0_i32_0 : i32, i32
  }
  func.func @transform_11(%arg0: i32, %arg1: i32) -> (i32, i32) {
    %c0_i32 = arith.constant 0 : i32
    %c0_i32_0 = arith.constant 0 : i32
    %c0_i32_1 = arith.constant 0 : i32
    return %c0_i32, %c0_i32_0 : i32, i32
  }
  func.func @transform_12(%arg0: i32, %arg1: i32) -> (i32, i32, i32) {
    %c0_i32 = arith.constant 0 : i32
    %c0_i32_0 = arith.constant 0 : i32
    return %arg0, %arg1, %c0_i32 : i32, i32, i32
  }
}

</mosaic_0001>

<llo_original>
// kernel: tpu_custom_call.1
$region0: #{tpu_custom_call.1}
  #allocation0 [shape = 'u32[]', space=smem, size = 0x4, offset = 0x4, fixed_abs, tag = 'smem constant byte address 0x4 - core index']
  #allocation1 [shape = 'u32[144,128]{1,0:T(1,128)}', space=vmem, size = 0x12000, scoped, tag = 'internal scratch']
  #allocation2 [shape = 'bf16[16,96]{1,0:T(16,128)(2,1)}', space=vmem, size = 0x1000, scoped, tag = 'scratch operand']
  %s0 = inlined_call_operand.vmem [shape: f32[2,16,32], index: 0, kind: input, shape index: {}]
  %s1 = inlined_call_operand.vmem [shape: f32[1,32], index: 1, kind: input, shape index: {}]
  %s2 = inlined_call_operand.vmem [shape: f32[1,32], index: 2, kind: input, shape index: {}]
  %s3 = inlined_call_operand.vmem [shape: bf16[32,96], index: 3, kind: input, shape index: {}]
  %s4 = inlined_call_operand.vmem [shape: bf16[32,32], index: 4, kind: input, shape index: {}]
  %s5 = inlined_call_operand.vmem [shape: f32[1,32], index: 5, kind: input, shape index: {}]
  %s6 = inlined_call_operand.vmem [shape: f32[1,32], index: 6, kind: input, shape index: {}]
  %s7 = inlined_call_operand.vmem [shape: f32[1,32], index: 7, kind: input, shape index: {}]
  %s8 = inlined_call_operand.vmem [shape: bf16[32,128], index: 8, kind: input, shape index: {}]
  %s9 = inlined_call_operand.vmem [shape: f32[1,128], index: 9, kind: input, shape index: {}]
  %s10 = inlined_call_operand.vmem [shape: bf16[128,32], index: 10, kind: input, shape index: {}]
  %s11 = inlined_call_operand.vmem [shape: f32[1,32], index: 11, kind: input, shape index: {}]
  %s12 = inlined_call_operand.hbm [shape: f32[2,16,32], index: 12, kind: output, shape index: {}]
  %s13 = sld [smem:[#allocation0]]
  $region85: #{tpu_custom_call.1} parent=0
    _
  %s15 = ssub.s32 1, %s13
  %s16 = scalar_select 0, %s15, %s13
  $region1: #{tpu_custom_call.1} parent=0
    #allocation3 [shape = 'u8[16384]{0}', space=vmem, size = 0x4000, scoped, tag = 'output window, operand 0']
    #allocation4 [shape = 's32[2]{0}', space=sflag, size = 0x8, scoped, tag = 'scoped memory for tpu_custom_call.1']
    %17 = vsyncpa [#allocation4], 0
    %s18 = scalar_lea.sflag [#allocation4], 1
    %19 = vsyncpa %s18, 0
    loop: start=0, step=1, limit=4
    $region2: #{tpu_custom_call.1} parent=1 // loop_pre_header
      _
    $region3: #{tpu_custom_call.1} parent=1 // loop_header
      %s21 = sphi 0, %s25
      %p22 = scmp.ge.s32.totalorder %s21, 4
      %s28 = sphi 0, %s40
      %s29 = sphi 0, %s36
      %s30 = sphi 0, %s28
      %s31 = sphi 0, %s29
      %s32 = sphi 0, %s30
      %s33 = sphi 0, %s31
      %s43 = sphi 0, %s45
      %s46 = sphi 0, %s43
      %s47 = sphi 0, %s46
      %s63 = sphi 0, %s47
      %s67 = sphi 0, %s67
      %s69 = sphi 0, %s67
      %s70 = sphi 0, %s69
      %s84 = sphi 0, %s70
      %s88 = sphi 0, %s88
      %s90 = sphi 0, %s88
      %s91 = sphi 0, %s90
      %s105 = sphi 0, %s91
      %s109 = sphi 0, %s109
      %s111 = sphi 0, %s109
      %s112 = sphi 0, %s111
      %s126 = sphi 0, %s112
      %s130 = sphi 0, %s130
      %s132 = sphi 0, %s130
      %s133 = sphi 0, %s132
      %s147 = sphi 0, %s133
      %s151 = sphi 0, %s151
      %s153 = sphi 0, %s151
      %s154 = sphi 0, %s153
      %s168 = sphi 0, %s154
      %s172 = sphi 0, %s172
      %s174 = sphi 0, %s172
      %s175 = sphi 0, %s174
      %s189 = sphi 0, %s175
      %s193 = sphi 0, %s193
      %s195 = sphi 0, %s193
      %s196 = sphi 0, %s195
      %s210 = sphi 0, %s196
      %s214 = sphi 0, %s214
      %s216 = sphi 0, %s214
      %s217 = sphi 0, %s216
      %s231 = sphi 0, %s217
      %s235 = sphi 0, %s235
      %s237 = sphi 0, %s235
      %s238 = sphi 0, %s237
      %s252 = sphi 0, %s238
      %s256 = sphi 0, %s256
      %s258 = sphi 0, %s256
      %s259 = sphi 0, %s258
      %s273 = sphi 0, %s259
      %s277 = sphi 0, %s277
      %s279 = sphi 0, %s277
      %s280 = sphi 0, %s279
      %s294 = sphi 0, %s280
      %s302 = sphi 0, %s304
      %s305 = sphi 0, %s302
      %s306 = sphi 0, %s305
      %s322 = sphi 0, %s306
    $region4: #{tpu_custom_call.1} parent=1 // loop_header_branch
      %24 = sbr.rel (%p22) target = $region8
    $region5: #{tpu_custom_call.1} parent=1 // loop_body
      %s26 = ssub.s32 %s21, 1
      %s27 = ssub.s32 %s21, 2
      %s34 = sadd.s32 1, %s29
      %p35 = scmp.ge.s32.totalorder %s34, 1
      %s36 = scalar_select %p35, 0, %s34
      %s37 = sadd.s32 1, %s28
      %s38 = scalar_select %p35, %s37, %s28
      %p39 = scmp.ge.s32.totalorder %s38, 2
      %s40 = scalar_select %p39, 0, %s38
      %s41 = ssub.s32 %s28, %s40
      %p42 = scmp.eq.s32.totalorder %s41, 0
      %s44 = sadd.s32 %s43, 1
      %s45 = scalar_select %p42, %s43, %s44
      %p48 = pneg %p42
      %p49 = scmp.eq.s32.totalorder %s21, 1
      %p50 = por %p48, %p49
      %p51 = scmp.ne.s32.totalorder %s43, %s46
      %p52 = scmp.eq.s32.totalorder %s21, 0
      %p53 = por %p51, %p52
      %p54 = scmp.ne.s32.totalorder %s43, %s46
      %p55 = scmp.eq.s32.totalorder %s26, 1
      %p56 = por %p54, %p55
      %p57 = scmp.ne.s32.totalorder %s46, %s47
      %p58 = scmp.eq.s32.totalorder %s26, 0
      %p59 = por %p57, %p58
      %p60 = scmp.ne.s32.totalorder %s46, %s47
      %p61 = scmp.eq.s32.totalorder %s27, 1
      %p62 = por %p60, %p61
      %p64 = scmp.ne.s32.totalorder %s47, %s63
      %p65 = scmp.eq.s32.totalorder %s27, 0
      %p66 = por %p64, %p65
      %s68 = sadd.s32 %s67, 1
      %p71 = scmp.eq.s32.totalorder %s21, 1
      %p72 = scmp.ne.s32.totalorder %s67, %s69
      %p73 = scmp.eq.s32.totalorder %s21, 0
      %p74 = por %p72, %p73
      %p75 = scmp.ne.s32.totalorder %s67, %s69
      %p76 = scmp.eq.s32.totalorder %s26, 1
      %p77 = por %p75, %p76
      %p78 = scmp.ne.s32.totalorder %s69, %s70
      %p79 = scmp.eq.s32.totalorder %s26, 0
      %p80 = por %p78, %p79
      %p81 = scmp.ne.s32.totalorder %s69, %s70
      %p82 = scmp.eq.s32.totalorder %s27, 1
      %p83 = por %p81, %p82
      %p85 = scmp.ne.s32.totalorder %s70, %s84
      %p86 = scmp.eq.s32.totalorder %s27, 0
      %p87 = por %p85, %p86
      %s89 = sadd.s32 %s88, 1
      %p92 = scmp.eq.s32.totalorder %s21, 1
      %p93 = scmp.ne.s32.totalorder %s88, %s90
      %p94 = scmp.eq.s32.totalorder %s21, 0
      %p95 = por %p93, %p94
      %p96 = scmp.ne.s32.totalorder %s88, %s90
      %p97 = scmp.eq.s32.totalorder %s26, 1
      %p98 = por %p96, %p97
      %p99 = scmp.ne.s32.totalorder %s90, %s91
      %p100 = scmp.eq.s32.totalorder %s26, 0
      %p101 = por %p99, %p100
      %p102 = scmp.ne.s32.totalorder %s90, %s91
      %p103 = scmp.eq.s32.totalorder %s27, 1
      %p104 = por %p102, %p103
      %p106 = scmp.ne.s32.totalorder %s91, %s105
      %p107 = scmp.eq.s32.totalorder %s27, 0
      %p108 = por %p106, %p107
      %s110 = sadd.s32 %s109, 1
      %p113 = scmp.eq.s32.totalorder %s21, 1
      %p114 = scmp.ne.s32.totalorder %s109, %s111
      %p115 = scmp.eq.s32.totalorder %s21, 0
      %p116 = por %p114, %p115
      %p117 = scmp.ne.s32.totalorder %s109, %s111
      %p118 = scmp.eq.s32.totalorder %s26, 1
      %p119 = por %p117, %p118
      %p120 = scmp.ne.s32.totalorder %s111, %s112
      %p121 = scmp.eq.s32.totalorder %s26, 0
      %p122 = por %p120, %p121
      %p123 = scmp.ne.s32.totalorder %s111, %s112
      %p124 = scmp.eq.s32.totalorder %s27, 1
      %p125 = por %p123, %p124
      %p127 = scmp.ne.s32.totalorder %s112, %s126
      %p128 = scmp.eq.s32.totalorder %s27, 0
      %p129 = por %p127, %p128
      %s131 = sadd.s32 %s130, 1
      %p134 = scmp.eq.s32.totalorder %s21, 1
      %p135 = scmp.ne.s32.totalorder %s130, %s132
      %p136 = scmp.eq.s32.totalorder %s21, 0
      %p137 = por %p135, %p136
      %p138 = scmp.ne.s32.totalorder %s130, %s132
      %p139 = scmp.eq.s32.totalorder %s26, 1
      %p140 = por %p138, %p139
      %p141 = scmp.ne.s32.totalorder %s132, %s133
      %p142 = scmp.eq.s32.totalorder %s26, 0
      %p143 = por %p141, %p142
      %p144 = scmp.ne.s32.totalorder %s132, %s133
      %p145 = scmp.eq.s32.totalorder %s27, 1
      %p146 = por %p144, %p145
      %p148 = scmp.ne.s32.totalorder %s133, %s147
      %p149 = scmp.eq.s32.totalorder %s27, 0
      %p150 = por %p148, %p149
      %s152 = sadd.s32 %s151, 1
      %p155 = scmp.eq.s32.totalorder %s21, 1
      %p156 = scmp.ne.s32.totalorder %s151, %s153
      %p157 = scmp.eq.s32.totalorder %s21, 0
      %p158 = por %p156, %p157
      %p159 = scmp.ne.s32.totalorder %s151, %s153
      %p160 = scmp.eq.s32.totalorder %s26, 1
      %p161 = por %p159, %p160
      %p162 = scmp.ne.s32.totalorder %s153, %s154
      %p163 = scmp.eq.s32.totalorder %s26, 0
      %p164 = por %p162, %p163
      %p165 = scmp.ne.s32.totalorder %s153, %s154
      %p166 = scmp.eq.s32.totalorder %s27, 1
      %p167 = por %p165, %p166
      %p169 = scmp.ne.s32.totalorder %s154, %s168
      %p170 = scmp.eq.s32.totalorder %s27, 0
      %p171 = por %p169, %p170
      %s173 = sadd.s32 %s172, 1
      %p176 = scmp.eq.s32.totalorder %s21, 1
      %p177 = scmp.ne.s32.totalorder %s172, %s174
      %p178 = scmp.eq.s32.totalorder %s21, 0
      %p179 = por %p177, %p178
      %p180 = scmp.ne.s32.totalorder %s172, %s174
      %p181 = scmp.eq.s32.totalorder %s26, 1
      %p182 = por %p180, %p181
      %p183 = scmp.ne.s32.totalorder %s174, %s175
      %p184 = scmp.eq.s32.totalorder %s26, 0
      %p185 = por %p183, %p184
      %p186 = scmp.ne.s32.totalorder %s174, %s175
      %p187 = scmp.eq.s32.totalorder %s27, 1
      %p188 = por %p186, %p187
      %p190 = scmp.ne.s32.totalorder %s175, %s189
      %p191 = scmp.eq.s32.totalorder %s27, 0
      %p192 = por %p190, %p191
      %s194 = sadd.s32 %s193, 1
      %p197 = scmp.eq.s32.totalorder %s21, 1
      %p198 = scmp.ne.s32.totalorder %s193, %s195
      %p199 = scmp.eq.s32.totalorder %s21, 0
      %p200 = por %p198, %p199
      %p201 = scmp.ne.s32.totalorder %s193, %s195
      %p202 = scmp.eq.s32.totalorder %s26, 1
      %p203 = por %p201, %p202
      %p204 = scmp.ne.s32.totalorder %s195, %s196
      %p205 = scmp.eq.s32.totalorder %s26, 0
      %p206 = por %p204, %p205
      %p207 = scmp.ne.s32.totalorder %s195, %s196
      %p208 = scmp.eq.s32.totalorder %s27, 1
      %p209 = por %p207, %p208
      %p211 = scmp.ne.s32.totalorder %s196, %s210
      %p212 = scmp.eq.s32.totalorder %s27, 0
      %p213 = por %p211, %p212
      %s215 = sadd.s32 %s214, 1
      %p218 = scmp.eq.s32.totalorder %s21, 1
      %p219 = scmp.ne.s32.totalorder %s214, %s216
      %p220 = scmp.eq.s32.totalorder %s21, 0
      %p221 = por %p219, %p220
      %p222 = scmp.ne.s32.totalorder %s214, %s216
      %p223 = scmp.eq.s32.totalorder %s26, 1
      %p224 = por %p222, %p223
      %p225 = scmp.ne.s32.totalorder %s216, %s217
      %p226 = scmp.eq.s32.totalorder %s26, 0
      %p227 = por %p225, %p226
      %p228 = scmp.ne.s32.totalorder %s216, %s217
      %p229 = scmp.eq.s32.totalorder %s27, 1
      %p230 = por %p228, %p229
      %p232 = scmp.ne.s32.totalorder %s217, %s231
      %p233 = scmp.eq.s32.totalorder %s27, 0
      %p234 = por %p232, %p233
      %s236 = sadd.s32 %s235, 1
      %p239 = scmp.eq.s32.totalorder %s21, 1
      %p240 = scmp.ne.s32.totalorder %s235, %s237
      %p241 = scmp.eq.s32.totalorder %s21, 0
      %p242 = por %p240, %p241
      %p243 = scmp.ne.s32.totalorder %s235, %s237
      %p244 = scmp.eq.s32.totalorder %s26, 1
      %p245 = por %p243, %p244
      %p246 = scmp.ne.s32.totalorder %s237, %s238
      %p247 = scmp.eq.s32.totalorder %s26, 0
      %p248 = por %p246, %p247
      %p249 = scmp.ne.s32.totalorder %s237, %s238
      %p250 = scmp.eq.s32.totalorder %s27, 1
      %p251 = por %p249, %p250
      %p253 = scmp.ne.s32.totalorder %s238, %s252
      %p254 = scmp.eq.s32.totalorder %s27, 0
      %p255 = por %p253, %p254
      %s257 = sadd.s32 %s256, 1
      %p260 = scmp.eq.s32.totalorder %s21, 1
      %p261 = scmp.ne.s32.totalorder %s256, %s258
      %p262 = scmp.eq.s32.totalorder %s21, 0
      %p263 = por %p261, %p262
      %p264 = scmp.ne.s32.totalorder %s256, %s258
      %p265 = scmp.eq.s32.totalorder %s26, 1
      %p266 = por %p264, %p265
      %p267 = scmp.ne.s32.totalorder %s258, %s259
      %p268 = scmp.eq.s32.totalorder %s26, 0
      %p269 = por %p267, %p268
      %p270 = scmp.ne.s32.totalorder %s258, %s259
      %p271 = scmp.eq.s32.totalorder %s27, 1
      %p272 = por %p270, %p271
      %p274 = scmp.ne.s32.totalorder %s259, %s273
      %p275 = scmp.eq.s32.totalorder %s27, 0
      %p276 = por %p274, %p275
      %s278 = sadd.s32 %s277, 1
      %p281 = scmp.eq.s32.totalorder %s21, 1
      %p282 = scmp.ne.s32.totalorder %s277, %s279
      %p283 = scmp.eq.s32.totalorder %s21, 0
      %p284 = por %p282, %p283
      %p285 = scmp.ne.s32.totalorder %s277, %s279
      %p286 = scmp.eq.s32.totalorder %s26, 1
      %p287 = por %p285, %p286
      %p288 = scmp.ne.s32.totalorder %s279, %s280
      %p289 = scmp.eq.s32.totalorder %s26, 0
      %p290 = por %p288, %p289
      %p291 = scmp.ne.s32.totalorder %s279, %s280
      %p292 = scmp.eq.s32.totalorder %s27, 1
      %p293 = por %p291, %p292
      %p295 = scmp.ne.s32.totalorder %s280, %s294
      %p296 = scmp.eq.s32.totalorder %s27, 0
      %p297 = por %p295, %p296
      %s298 = ssub.s32 %s28, %s40
      %s299 = ssub.s32 %s29, %s36
      %s300 = sor.u32 %s298, %s299
      %p301 = scmp.eq.s32.totalorder %s300, 0
      %s303 = sadd.s32 %s302, 1
      %s304 = scalar_select %p301, %s302, %s303
      %p307 = pneg %p301
      %p308 = scmp.eq.s32.totalorder %s21, 1
      %p309 = por %p307, %p308
      %p310 = scmp.ne.s32.totalorder %s302, %s305
      %p311 = scmp.eq.s32.totalorder %s21, 0
      %p312 = por %p310, %p311
      %p313 = scmp.ne.s32.totalorder %s302, %s305
      %p314 = scmp.eq.s32.totalorder %s26, 1
      %p315 = por %p313, %p314
      %p316 = scmp.ne.s32.totalorder %s305, %s306
      %p317 = scmp.eq.s32.totalorder %s26, 0
      %p318 = por %p316, %p317
      %p319 = scmp.ne.s32.totalorder %s305, %s306
      %p320 = scmp.eq.s32.totalorder %s27, 1
      %p321 = por %p319, %p320
      %p323 = scmp.ne.s32.totalorder %s306, %s322
      %p324 = scmp.eq.s32.totalorder %s27, 0
      %p325 = por %p323, %p324
      %p326 = scmp.le.s32.totalorder 1, %s21
      %p327 = scmp.lt.s32.totalorder %s21, 3
      %p328 = pnand %p326, %p327
      %p329 = pneg %p328
      // Predicated region
      $region9: #{tpu_custom_call.1} parent=5 // pred_check
        _
      $region10: #{tpu_custom_call.1} parent=5 // pred_check_branch
        %331 = sbr.rel (%p328) target = $region12
      $region11: #{tpu_custom_call.1} parent=5 // pred_region
        %s332 = ssub.s32 %s21, 1
        // Predicated region
        $region13: #{tpu_custom_call.1} parent=11 // pred_check
          %p333 = pneg %p80
        $region14: #{tpu_custom_call.1} parent=11 // pred_check_branch
          %335 = sbr.rel (%p333) target = $region16
        $region15: #{tpu_custom_call.1} parent=11 // pred_region
          _
        $region16: #{tpu_custom_call.1} parent=11 // pred_fallthru
          _
        // Predicated region
        $region17: #{tpu_custom_call.1} parent=11 // pred_check
          %p336 = pneg %p101
        $region18: #{tpu_custom_call.1} parent=11 // pred_check_branch
          %338 = sbr.rel (%p336) target = $region20
        $region19: #{tpu_custom_call.1} parent=11 // pred_region
          _
        $region20: #{tpu_custom_call.1} parent=11 // pred_fallthru
          _
        // Predicated region
        $region21: #{tpu_custom_call.1} parent=11 // pred_check
          %p339 = pneg %p122
        $region22: #{tpu_custom_call.1} parent=11 // pred_check_branch
          %341 = sbr.rel (%p339) target = $region24
        $region23: #{tpu_custom_call.1} parent=11 // pred_region
          _
        $region24: #{tpu_custom_call.1} parent=11 // pred_fallthru
          _
        // Predicated region
        $region25: #{tpu_custom_call.1} parent=11 // pred_check
          %p342 = pneg %p143
        $region26: #{tpu_custom_call.1} parent=11 // pred_check_branch
          %344 = sbr.rel (%p342) target = $region28
        $region27: #{tpu_custom_call.1} parent=11 // pred_region
          _
        $region28: #{tpu_custom_call.1} parent=11 // pred_fallthru
          _
        // Predicated region
        $region29: #{tpu_custom_call.1} parent=11 // pred_check
          %p345 = pneg %p164
        $region30: #{tpu_custom_call.1} parent=11 // pred_check_branch
          %347 = sbr.rel (%p345) target = $region32
        $region31: #{tpu_custom_call.1} parent=11 // pred_region
          _
        $region32: #{tpu_custom_call.1} parent=11 // pred_fallthru
          _
        // Predicated region
        $region33: #{tpu_custom_call.1} parent=11 // pred_check
          %p348 = pneg %p185
        $region34: #{tpu_custom_call.1} parent=11 // pred_check_branch
          %350 = sbr.rel (%p348) target = $region36
        $region35: #{tpu_custom_call.1} parent=11 // pred_region
          _
        $region36: #{tpu_custom_call.1} parent=11 // pred_fallthru
          _
        // Predicated region
        $region37: #{tpu_custom_call.1} parent=11 // pred_check
          %p351 = pneg %p206
        $region38: #{tpu_custom_call.1} parent=11 // pred_check_branch
          %353 = sbr.rel (%p351) target = $region40
        $region39: #{tpu_custom_call.1} parent=11 // pred_region
          _
        $region40: #{tpu_custom_call.1} parent=11 // pred_fallthru
          _
        // Predicated region
        $region41: #{tpu_custom_call.1} parent=11 // pred_check
          %p354 = pneg %p227
        $region42: #{tpu_custom_call.1} parent=11 // pred_check_branch
          %356 = sbr.rel (%p354) target = $region44
        $region43: #{tpu_custom_call.1} parent=11 // pred_region
          _
        $region44: #{tpu_custom_call.1} parent=11 // pred_fallthru
          _
        // Predicated region
        $region45: #{tpu_custom_call.1} parent=11 // pred_check
          %p357 = pneg %p248
        $region46: #{tpu_custom_call.1} parent=11 // pred_check_branch
          %359 = sbr.rel (%p357) target = $region48
        $region47: #{tpu_custom_call.1} parent=11 // pred_region
          _
        $region48: #{tpu_custom_call.1} parent=11 // pred_fallthru
          _
        // Predicated region
        $region49: #{tpu_custom_call.1} parent=11 // pred_check
          %p360 = pneg %p269
        $region50: #{tpu_custom_call.1} parent=11 // pred_check_branch
          %362 = sbr.rel (%p360) target = $region52
        $region51: #{tpu_custom_call.1} parent=11 // pred_region
          _
        $region52: #{tpu_custom_call.1} parent=11 // pred_fallthru
          _
        // Predicated region
        $region53: #{tpu_custom_call.1} parent=11 // pred_check
          %p363 = pneg %p290
        $region54: #{tpu_custom_call.1} parent=11 // pred_check_branch
          %365 = sbr.rel (%p363) target = $region56
        $region55: #{tpu_custom_call.1} parent=11 // pred_region
          _
        $region56: #{tpu_custom_call.1} parent=11 // pred_fallthru
          _
      $region12: #{tpu_custom_call.1} parent=5 // pred_fallthru
        _
      %p366 = scmp.lt.s32.totalorder %s21, 2
      // Predicated region
      $region57: #{tpu_custom_call.1} parent=5 // pred_check
        %p367 = pneg %p366
      $region58: #{tpu_custom_call.1} parent=5 // pred_check_branch
        %369 = sbr.rel (%p367) target = $region60
      $region59: #{tpu_custom_call.1} parent=5 // pred_region
        // Predicated region
        $region61: #{tpu_custom_call.1} parent=59 // pred_check
          %p370 = pneg %p53
        $region62: #{tpu_custom_call.1} parent=59 // pred_check_branch
          %372 = sbr.rel (%p370) target = $region64
        $region63: #{tpu_custom_call.1} parent=59 // pred_region
          %p373 = scmp.lt.s32.totalorder %s28, 1
          %s374 = scalar_select %p373, %s28, 1
          %s375 = smul.addr %s374, 2
          %s376 = smul.addr %s375, 8
          %s377 = scalar_lea.vmem %s0, %s376
        $region64: #{tpu_custom_call.1} parent=59 // pred_fallthru
          _
      $region60: #{tpu_custom_call.1} parent=5 // pred_fallthru
        _
      %p378 = scmp.le.s32.totalorder 1, %s21
      %p379 = scmp.lt.s32.totalorder %s21, 3
      %p380 = pnand %p378, %p379
      %p381 = pneg %p380
      // Predicated region
      $region65: #{tpu_custom_call.1} parent=5 // pred_check
        _
      $region66: #{tpu_custom_call.1} parent=5 // pred_check_branch
        %383 = sbr.rel (%p380) target = $region68
      $region67: #{tpu_custom_call.1} parent=5 // pred_region
        %s384 = ssub.s32 %s21, 1
        %p385 = scmp.lt.s32.totalorder %s30, 1
        %s386 = scalar_select %p385, %s30, 1
        %s387 = smul.addr %s386, 2
        %s388 = smul.addr %s387, 8
        %s389 = scalar_lea.vmem %s0, %s388
        %p390 = pneg %p59
        %p391 = pneg %p56
        %p392 = pneg %p80
        %p393 = pneg %p77
        %p394 = pneg %p101
        %p395 = pneg %p98
        %p396 = pneg %p122
        %p397 = pneg %p119
        %p398 = pneg %p143
        %p399 = pneg %p140
        %p400 = pneg %p164
        %p401 = pneg %p161
        %p402 = pneg %p185
        %p403 = pneg %p182
        %p404 = pneg %p206
        %p405 = pneg %p203
        %p406 = pneg %p227
        %p407 = pneg %p224
        %p408 = pneg %p248
        %p409 = pneg %p245
        %p410 = pneg %p269
        %p411 = pneg %p266
        %p412 = pneg %p290
        %p413 = pneg %p287
        %p414 = pneg %p318
        %p415 = pneg %p315
        %s416 = sand.u32 %s305, 1
        %s417 = scalar_lea.sflag [#allocation4], %s416
        %s418 = sand.u32 %s305, 1
        %s419 = smul.addr %s418, 16
        %s420 = scalar_lea.vmem [#allocation3], %s419
        %p421 = scmp.lt.s32.totalorder %s30, 1
        %s422 = scalar_select %p421, %s30, 1
        %s423 = smul.addr %s422, 2
        %s424 = smul.addr %s423, 8
        %s425 = scalar_lea.vmem %s0, %s424
        %s426 = smul.u32 2, %s31
        %p428 = scmp.eq.s32.totalorder %s31, 0
        // Predicated region
        $region69: #{tpu_custom_call.1} parent=67 // pred_check
          %p429 = pneg %p428
        $region70: #{tpu_custom_call.1} parent=67 // pred_check_branch
          %431 = sbr.rel (%p429) target = $region72
        $region71: #{tpu_custom_call.1} parent=67 // pred_region
          %v432 = vld [vmem:[%s425] sm:$0xff]
          %v433 = vld [vmem:[%s425 + $0x8] sm:$0xff]
          %v434 = vld [vmem:[%s1] sm:$0x1]
          %v435 = vld [vmem:[%s2] sm:$0x1]
          %vm436 = vcmask 261120
          %v437 = vsel %vm436, %v432, 0.0
          %438 = vadd.xlane.f32.xlu0 %v437
          %v439 = vpop.xlane.xlu0 %438
          %v440 = vsel %vm436, %v433, 0.0
          %441 = vadd.xlane.f32.xlu0 %v440
          %v442 = vpop.xlane.xlu0 %441
          %v443 = vrcp.pop 32.0
          %v444 = vmul.f32 %v439, %v443
          %v445 = vmul.f32 %v442, %v443
          %v446 = vsub.f32 %v432, %v444
          %v447 = vsub.f32 %v433, %v445
          %v448 = vmul.f32 %v446, %v446
          %v449 = vmul.f32 %v447, %v447
          %v450 = vsel %vm436, %v448, 0.0
          %451 = vadd.xlane.f32.xlu0 %v450
          %v452 = vpop.xlane.xlu0 %451
          %v453 = vsel %vm436, %v449, 0.0
          %454 = vadd.xlane.f32.xlu0 %v453
          %v455 = vpop.xlane.xlu0 %454
          %v456 = vmul.f32 %v452, %v443
          %v457 = vmul.f32 %v455, %v443
          %v458 = vadd.f32 %v456, 1e-05
          %v459 = vadd.f32 %v457, 1e-05
          %v460 = vrsqrt.pop %v458
          %v461 = vrsqrt.pop %v459
          %v462 = vmul.f32 %v446, %v460
          %v463 = vmul.f32 %v447, %v461
          %v465 = vlaneseq
          %v466 = vshrl.u32 %v465, 7
          %v467 = vsub.s32 0, %v466
          %v468 = vrot.slane %v434, %v467
          %v470 = vmul.f32 %v462, %v468
          %v471 = vmul.f32 %v463, %v468
          %v473 = vlaneseq
          %v474 = vshrl.u32 %v473, 7
          %v475 = vsub.s32 0, %v474
          %v476 = vrot.slane %v435, %v475
          %v478 = vadd.f32 %v470, %v476
          %v479 = vadd.f32 %v471, %v476
          %v480 = vpack.c.bf16 %v479, %v478
          %v481 = vld [vmem:[%s3] sm:$0xf]
          %v482 = vld [vmem:[%s3 + $0x4] sm:$0xf]
          %v483 = vld [vmem:[%s3 + $0x8] sm:$0xf]
          %v484 = vld [vmem:[%s3 + $0xc] sm:$0xf]
          %v489 = vunpack.c.l.b16 %v481
          %v490 = vunpack.c.l.b16 %v482
          %v491 = vunpack.c.l.b16 %v483
          %v492 = vunpack.c.l.b16 %v484
          %v493 = vpack.c.b16 %v490, %v489
          %v494 = vpack.c.b16 %v492, %v491
          %v498 = vsel %vm436, %v480, 0
          %500 = vmatprep.subr.bf16.mxu0 0
          %501 = vmatpush1.bf16.msra.mxu0 %v493
          %502 = vmatprep.subr.bf16.mxu0 0
          %503 = vmatpush1.bf16.msra.mxu0 %v494
          %504 = vmatprep.subr.bf16.mxu0 0
          %505 = vmatpush1.bf16.msra.mxu0 0
          %506 = vmatprep.subr.bf16.mxu0 0
          %507 = vmatpush1.bf16.msra.mxu0 0
          %508 = vmatprep.subr.bf16.mxu0 0
          %509 = vmatpush1.bf16.msra.mxu0 0
          %510 = vmatprep.subr.bf16.mxu0 0
          %511 = vmatpush1.bf16.msra.mxu0 0
          %512 = vmatprep.subr.bf16.mxu0 0
          %513 = vmatpush1.bf16.msra.mxu0 0
          %514 = vmatprep.subr.bf16.mxu0 0
          %515 = vmatpush1.bf16.msra.mxu0 0
          %516 = vmatprep.subr.bf16.mxu0 0
          %517 = vmatpush1.bf16.msra.mxu0 0
          %518 = vmatprep.subr.bf16.mxu0 0
          %519 = vmatpush1.bf16.msra.mxu0 0
          %520 = vmatprep.subr.bf16.mxu0 0
          %521 = vmatpush1.bf16.msra.mxu0 0
          %522 = vmatprep.subr.bf16.mxu0 0
          %523 = vmatpush1.bf16.msra.mxu0 0
          %524 = vmatprep.subr.bf16.mxu0 0
          %525 = vmatpush1.bf16.msra.mxu0 0
          %526 = vmatprep.subr.bf16.mxu0 0
          %527 = vmatpush1.bf16.msra.mxu0 0
          %528 = vmatprep.subr.bf16.mxu0 0
          %529 = vmatpush1.bf16.msra.mxu0 0
          %530 = vmatprep.subr.bf16.mxu0 0
          %531 = vmatpush1.bf16.msra.mxu0 0
          %532 = vmatprep.mubr.bf16.mxu0 0
          %533 = vmatmul.mubr.bf16.gmra.mrb[0].mxu0 %v498
          %v534 = vpop.f32.mrb[0].mxu0
          %v535 = vadd.f32 0.0, %v534
          %v536 = vpop.f32.mrb[0].mxu0
          %v537 = vpop.f32.mrb[0].mxu0
          %v538 = vadd.f32 0.0, %v537
          %v539 = vpop.f32.mrb[0].mxu0
          %540 = vdwg.mxu0
          %v541 = vpack.c.bf16 %v538, %v535
          %vm542 = vcmask 785408
          %543 = vst.msk [vmem:[#allocation2] sm:$0xff] %vm542, %v541
        $region72: #{tpu_custom_call.1} parent=67 // pred_fallthru
          _
        %s544 = smul.u32 %s31, 16
        %s545 = scalar_lea.vmem %s425, %s544
        %v546 = vld [vmem:[%s545] sm:$0xff]
        %v547 = vld [vmem:[%s545 + $0x8] sm:$0xff]
        %s548 = sshra.s32 %s544, 4
        %s549 = sand.u32 %s544, 15
        %s550 = smul.addr %s548, 8
        %s551 = scalar_lea.vmem [#allocation2], %s550
        %v552 = vld [vmem:[%s551] sm:$0xff]
        %v553 = vld [vmem:[#allocation2] sm:$0xff]
        %555 = vrot.lane.b32.xlu0 %v553, 96
        %v556 = vpop.permute.xlu0 %555
        %vm557 = vcmask 64512
        %v559 = vsel %vm557, %v552, 0
        %v562 = vsel %vm557, %v556, 0
        %564 = vmatprep.subr.bf16.mxu0 0
        %565 = vmatpush1.bf16.xpose.msra.mxu0 %v562
        %566 = vmatprep.subr.bf16.mxu0 0
        %567 = vmatpush1.bf16.xpose.msra.mxu0 0
        %568 = vmatprep.subr.bf16.mxu0 0
        %569 = vmatpush1.bf16.xpose.msra.mxu0 0
        %570 = vmatprep.subr.bf16.mxu0 0
        %571 = vmatpush1.bf16.xpose.msra.mxu0 0
        %572 = vmatprep.subr.bf16.mxu0 0
        %573 = vmatpush1.bf16.xpose.msra.mxu0 0
        %574 = vmatprep.subr.bf16.mxu0 0
        %575 = vmatpush1.bf16.xpose.msra.mxu0 0
        %576 = vmatprep.subr.bf16.mxu0 0
        %577 = vmatpush1.bf16.xpose.msra.mxu0 0
        %578 = vmatprep.subr.bf16.mxu0 0
        %579 = vmatpush1.bf16.xpose.msra.mxu0 0
        %580 = vmatprep.subr.bf16.mxu0 0
        %581 = vmatpush1.bf16.xpose.msra.mxu0 0
        %582 = vmatprep.subr.bf16.mxu0 0
        %583 = vmatpush1.bf16.xpose.msra.mxu0 0
        %584 = vmatprep.subr.bf16.mxu0 0
        %585 = vmatpush1.bf16.xpose.msra.mxu0 0
        %586 = vmatprep.subr.bf16.mxu0 0
        %587 = vmatpush1.bf16.xpose.msra.mxu0 0
        %588 = vmatprep.subr.bf16.mxu0 0
        %589 = vmatpush1.bf16.xpose.msra.mxu0 0
        %590 = vmatprep.subr.bf16.mxu0 0
        %591 = vmatpush1.bf16.xpose.msra.mxu0 0
        %592 = vmatprep.subr.bf16.mxu0 0
        %593 = vmatpush1.bf16.xpose.msra.mxu0 0
        %594 = vmatprep.subr.bf16.mxu0 0
        %595 = vmatpush1.bf16.xpose.msra.mxu0 0
        %596 = vmatprep.mubr.bf16.mxu0 0
        %597 = vmatmul.mubr.bf16.gmra.mrb[0].mxu0 %v559
        %v598 = vpop.f32.mrb[0].mxu0
        %v599 = vadd.f32 0.0, %v598
        %v600 = vpop.f32.mrb[0].mxu0
        %v601 = vpop.f32.mrb[0].mxu0
        %v602 = vadd.f32 0.0, %v601
        %v603 = vpop.f32.mrb[0].mxu0
        %604 = vdwg.mxu0
        %v605 = vmul.f32 %v599, 0.35355338
        %v606 = vmul.f32 %v602, 0.35355338
        %vm607 = vcmask 130048
        %v608 = vsel %vm607, %v605, -inf
        %609 = vmax.xlane.f32.xlu0 %v608
        %v610 = vpop.xlane.xlu0 %609
        %v611 = vsel %vm607, %v606, -inf
        %612 = vmax.xlane.f32.xlu0 %v611
        %v613 = vpop.xlane.xlu0 %612
        %v614 = vsub.f32 %v605, %v610
        %v615 = vsub.f32 %v606, %v613
        %v616 = vmul.f32 %v614, 1.442695
        %v617 = vpow.pop %v616
        %v618 = vmul.f32 %v615, 1.442695
        %v619 = vpow.pop %v618
        %v620 = vsel %vm607, %v617, 0.0
        %621 = vadd.xlane.f32.xlu0 %v620
        %v622 = vpop.xlane.xlu0 %621
        %v623 = vsel %vm607, %v619, 0.0
        %624 = vadd.xlane.f32.xlu0 %v623
        %v625 = vpop.xlane.xlu0 %624
        %v626 = vrcp.pop %v622
        %v627 = vrcp.pop %v625
        %v628 = vmul.f32 %v617, %v626
        %v629 = vmul.f32 %v619, %v627
        %v630 = vpack.c.bf16 %v629, %v628
        %631 = vrot.lane.b32.xlu0 %v553, 64
        %v632 = vpop.permute.xlu0 %631
        %v635 = vsel %vm607, %v630, 0
        %637 = vmatprep.subr.bf16.mxu0 0
        %638 = vmatpush1.bf16.msra.mxu0 %v632
        %639 = vmatprep.subr.bf16.mxu0 0
        %640 = vmatpush1.bf16.msra.mxu0 0
        %641 = vmatprep.subr.bf16.mxu0 0
        %642 = vmatpush1.bf16.msra.mxu0 0
        %643 = vmatprep.subr.bf16.mxu0 0
        %644 = vmatpush1.bf16.msra.mxu0 0
        %645 = vmatprep.subr.bf16.mxu0 0
        %646 = vmatpush1.bf16.msra.mxu0 0
        %647 = vmatprep.subr.bf16.mxu0 0
        %648 = vmatpush1.bf16.msra.mxu0 0
        %649 = vmatprep.subr.bf16.mxu0 0
        %650 = vmatpush1.bf16.msra.mxu0 0
        %651 = vmatprep.subr.bf16.mxu0 0
        %652 = vmatpush1.bf16.msra.mxu0 0
        %653 = vmatprep.subr.bf16.mxu0 0
        %654 = vmatpush1.bf16.msra.mxu0 0
        %655 = vmatprep.subr.bf16.mxu0 0
        %656 = vmatpush1.bf16.msra.mxu0 0
        %657 = vmatprep.subr.bf16.mxu0 0
        %658 = vmatpush1.bf16.msra.mxu0 0
        %659 = vmatprep.subr.bf16.mxu0 0
        %660 = vmatpush1.bf16.msra.mxu0 0
        %661 = vmatprep.subr.bf16.mxu0 0
        %662 = vmatpush1.bf16.msra.mxu0 0
        %663 = vmatprep.subr.bf16.mxu0 0
        %664 = vmatpush1.bf16.msra.mxu0 0
        %665 = vmatprep.subr.bf16.mxu0 0
        %666 = vmatpush1.bf16.msra.mxu0 0
        %667 = vmatprep.subr.bf16.mxu0 0
        %668 = vmatpush1.bf16.msra.mxu0 0
        %669 = vmatprep.mubr.bf16.mxu0 0
        %670 = vmatmul.mubr.bf16.gmra.mrb[0].mxu0 %v635
        %v671 = vpop.f32.mrb[0].mxu0
        %v672 = vadd.f32 0.0, %v671
        %v673 = vpop.f32.mrb[0].mxu0
        %v674 = vpop.f32.mrb[0].mxu0
        %v675 = vadd.f32 0.0, %v674
        %v676 = vpop.f32.mrb[0].mxu0
        %677 = vdwg.mxu0
        %679 = vrot.lane.b32.xlu0 %v552, 120
        %v680 = vpop.permute.xlu0 %679
        %681 = vrot.lane.b32.xlu0 %v553, 88
        %v682 = vpop.permute.xlu0 %681
        %v684 = vsel %vm557, %v680, 0
        %v687 = vsel %vm557, %v682, 0
        %689 = vmatprep.subr.bf16.mxu0 0
        %690 = vmatpush1.bf16.xpose.msra.mxu0 %v687
        %691 = vmatprep.subr.bf16.mxu0 0
        %692 = vmatpush1.bf16.xpose.msra.mxu0 0
        %693 = vmatprep.subr.bf16.mxu0 0
        %694 = vmatpush1.bf16.xpose.msra.mxu0 0
        %695 = vmatprep.subr.bf16.mxu0 0
        %696 = vmatpush1.bf16.xpose.msra.mxu0 0
        %697 = vmatprep.subr.bf16.mxu0 0
        %698 = vmatpush1.bf16.xpose.msra.mxu0 0
        %699 = vmatprep.subr.bf16.mxu0 0
        %700 = vmatpush1.bf16.xpose.msra.mxu0 0
        %701 = vmatprep.subr.bf16.mxu0 0
        %702 = vmatpush1.bf16.xpose.msra.mxu0 0
        %703 = vmatprep.subr.bf16.mxu0 0
        %704 = vmatpush1.bf16.xpose.msra.mxu0 0
        %705 = vmatprep.subr.bf16.mxu0 0
        %706 = vmatpush1.bf16.xpose.msra.mxu0 0
        %707 = vmatprep.subr.bf16.mxu0 0
        %708 = vmatpush1.bf16.xpose.msra.mxu0 0
        %709 = vmatprep.subr.bf16.mxu0 0
        %710 = vmatpush1.bf16.xpose.msra.mxu0 0
        %711 = vmatprep.subr.bf16.mxu0 0
        %712 = vmatpush1.bf16.xpose.msra.mxu0 0
        %713 = vmatprep.subr.bf16.mxu0 0
        %714 = vmatpush1.bf16.xpose.msra.mxu0 0
        %715 = vmatprep.subr.bf16.mxu0 0
        %716 = vmatpush1.bf16.xpose.msra.mxu0 0
        %717 = vmatprep.subr.bf16.mxu0 0
        %718 = vmatpush1.bf16.xpose.msra.mxu0 0
        %719 = vmatprep.subr.bf16.mxu0 0
        %720 = vmatpush1.bf16.xpose.msra.mxu0 0
        %721 = vmatprep.mubr.bf16.mxu0 0
        %722 = vmatmul.mubr.bf16.gmra.mrb[0].mxu0 %v684
        %v723 = vpop.f32.mrb[0].mxu0
        %v724 = vadd.f32 0.0, %v723
        %v725 = vpop.f32.mrb[0].mxu0
        %v726 = vpop.f32.mrb[0].mxu0
        %v727 = vadd.f32 0.0, %v726
        %v728 = vpop.f32.mrb[0].mxu0
        %729 = vdwg.mxu0
        %v730 = vmul.f32 %v724, 0.35355338
        %v731 = vmul.f32 %v727, 0.35355338
        %v732 = vsel %vm607, %v730, -inf
        %733 = vmax.xlane.f32.xlu0 %v732
        %v734 = vpop.xlane.xlu0 %733
        %v735 = vsel %vm607, %v731, -inf
        %736 = vmax.xlane.f32.xlu0 %v735
        %v737 = vpop.xlane.xlu0 %736
        %v738 = vsub.f32 %v730, %v734
        %v739 = vsub.f32 %v731, %v737
        %v740 = vmul.f32 %v738, 1.442695
        %v741 = vpow.pop %v740
        %v742 = vmul.f32 %v739, 1.442695
        %v743 = vpow.pop %v742
        %v744 = vsel %vm607, %v741, 0.0
        %745 = vadd.xlane.f32.xlu0 %v744
        %v746 = vpop.xlane.xlu0 %745
        %v747 = vsel %vm607, %v743, 0.0
        %748 = vadd.xlane.f32.xlu0 %v747
        %v749 = vpop.xlane.xlu0 %748
        %v750 = vrcp.pop %v746
        %v751 = vrcp.pop %v749
        %v752 = vmul.f32 %v741, %v750
        %v753 = vmul.f32 %v743, %v751
        %v754 = vpack.c.bf16 %v753, %v752
        %755 = vrot.lane.b32.xlu0 %v553, 56
        %v756 = vpop.permute.xlu0 %755
        %v759 = vsel %vm607, %v754, 0
        %761 = vmatprep.subr.bf16.mxu0 0
        %762 = vmatpush1.bf16.msra.mxu0 %v756
        %763 = vmatprep.subr.bf16.mxu0 0
        %764 = vmatpush1.bf16.msra.mxu0 0
        %765 = vmatprep.subr.bf16.mxu0 0
        %766 = vmatpush1.bf16.msra.mxu0 0
        %767 = vmatprep.subr.bf16.mxu0 0
        %768 = vmatpush1.bf16.msra.mxu0 0
        %769 = vmatprep.subr.bf16.mxu0 0
        %770 = vmatpush1.bf16.msra.mxu0 0
        %771 = vmatprep.subr.bf16.mxu0 0
        %772 = vmatpush1.bf16.msra.mxu0 0
        %773 = vmatprep.subr.bf16.mxu0 0
        %774 = vmatpush1.bf16.msra.mxu0 0
        %775 = vmatprep.subr.bf16.mxu0 0
        %776 = vmatpush1.bf16.msra.mxu0 0
        %777 = vmatprep.subr.bf16.mxu0 0
        %778 = vmatpush1.bf16.msra.mxu0 0
        %779 = vmatprep.subr.bf16.mxu0 0
        %780 = vmatpush1.bf16.msra.mxu0 0
        %781 = vmatprep.subr.bf16.mxu0 0
        %782 = vmatpush1.bf16.msra.mxu0 0
        %783 = vmatprep.subr.bf16.mxu0 0
        %784 = vmatpush1.bf16.msra.mxu0 0
        %785 = vmatprep.subr.bf16.mxu0 0
        %786 = vmatpush1.bf16.msra.mxu0 0
        %787 = vmatprep.subr.bf16.mxu0 0
        %788 = vmatpush1.bf16.msra.mxu0 0
        %789 = vmatprep.subr.bf16.mxu0 0
        %790 = vmatpush1.bf16.msra.mxu0 0
        %791 = vmatprep.subr.bf16.mxu0 0
        %792 = vmatpush1.bf16.msra.mxu0 0
        %793 = vmatprep.mubr.bf16.mxu0 0
        %794 = vmatmul.mubr.bf16.gmra.mrb[0].mxu0 %v759
        %v795 = vpop.f32.mrb[0].mxu0
        %v796 = vadd.f32 0.0, %v795
        %v797 = vpop.f32.mrb[0].mxu0
        %v798 = vpop.f32.mrb[0].mxu0
        %v799 = vadd.f32 0.0, %v798
        %v800 = vpop.f32.mrb[0].mxu0
        %801 = vdwg.mxu0
        %802 = vrot.lane.b32.xlu0 %v552, 112
        %v803 = vpop.permute.xlu0 %802
        %804 = vrot.lane.b32.xlu0 %v553, 80
        %v805 = vpop.permute.xlu0 %804
        %v807 = vsel %vm557, %v803, 0
        %v810 = vsel %vm557, %v805, 0
        %812 = vmatprep.subr.bf16.mxu0 0
        %813 = vmatpush1.bf16.xpose.msra.mxu0 %v810
        %814 = vmatprep.subr.bf16.mxu0 0
        %815 = vmatpush1.bf16.xpose.msra.mxu0 0
        %816 = vmatprep.subr.bf16.mxu0 0
        %817 = vmatpush1.bf16.xpose.msra.mxu0 0
        %818 = vmatprep.subr.bf16.mxu0 0
        %819 = vmatpush1.bf16.xpose.msra.mxu0 0
        %820 = vmatprep.subr.bf16.mxu0 0
        %821 = vmatpush1.bf16.xpose.msra.mxu0 0
        %822 = vmatprep.subr.bf16.mxu0 0
        %823 = vmatpush1.bf16.xpose.msra.mxu0 0
        %824 = vmatprep.subr.bf16.mxu0 0
        %825 = vmatpush1.bf16.xpose.msra.mxu0 0
        %826 = vmatprep.subr.bf16.mxu0 0
        %827 = vmatpush1.bf16.xpose.msra.mxu0 0
        %828 = vmatprep.subr.bf16.mxu0 0
        %829 = vmatpush1.bf16.xpose.msra.mxu0 0
        %830 = vmatprep.subr.bf16.mxu0 0
        %831 = vmatpush1.bf16.xpose.msra.mxu0 0
        %832 = vmatprep.subr.bf16.mxu0 0
        %833 = vmatpush1.bf16.xpose.msra.mxu0 0
        %834 = vmatprep.subr.bf16.mxu0 0
        %835 = vmatpush1.bf16.xpose.msra.mxu0 0
        %836 = vmatprep.subr.bf16.mxu0 0
        %837 = vmatpush1.bf16.xpose.msra.mxu0 0
        %838 = vmatprep.subr.bf16.mxu0 0
        %839 = vmatpush1.bf16.xpose.msra.mxu0 0
        %840 = vmatprep.subr.bf16.mxu0 0
        %841 = vmatpush1.bf16.xpose.msra.mxu0 0
        %842 = vmatprep.subr.bf16.mxu0 0
        %843 = vmatpush1.bf16.xpose.msra.mxu0 0
        %844 = vmatprep.mubr.bf16.mxu0 0
        %845 = vmatmul.mubr.bf16.gmra.mrb[0].mxu0 %v807
        %v846 = vpop.f32.mrb[0].mxu0
        %v847 = vadd.f32 0.0, %v846
        %v848 = vpop.f32.mrb[0].mxu0
        %v849 = vpop.f32.mrb[0].mxu0
        %v850 = vadd.f32 0.0, %v849
        %v851 = vpop.f32.mrb[0].mxu0
        %852 = vdwg.mxu0
        %v853 = vmul.f32 %v847, 0.35355338
        %v854 = vmul.f32 %v850, 0.35355338
        %v855 = vsel %vm607, %v853, -inf
        %856 = vmax.xlane.f32.xlu0 %v855
        %v857 = vpop.xlane.xlu0 %856
        %v858 = vsel %vm607, %v854, -inf
        %859 = vmax.xlane.f32.xlu0 %v858
        %v860 = vpop.xlane.xlu0 %859
        %v861 = vsub.f32 %v853, %v857
        %v862 = vsub.f32 %v854, %v860
        %v863 = vmul.f32 %v861, 1.442695
        %v864 = vpow.pop %v863
        %v865 = vmul.f32 %v862, 1.442695
        %v866 = vpow.pop %v865
        %v867 = vsel %vm607, %v864, 0.0
        %868 = vadd.xlane.f32.xlu0 %v867
        %v869 = vpop.xlane.xlu0 %868
        %v870 = vsel %vm607, %v866, 0.0
        %871 = vadd.xlane.f32.xlu0 %v870
        %v872 = vpop.xlane.xlu0 %871
        %v873 = vrcp.pop %v869
        %v874 = vrcp.pop %v872
        %v875 = vmul.f32 %v864, %v873
        %v876 = vmul.f32 %v866, %v874
        %v877 = vpack.c.bf16 %v876, %v875
        %878 = vrot.lane.b32.xlu0 %v553, 48
        %v879 = vpop.permute.xlu0 %878
        %v882 = vsel %vm607, %v877, 0
        %884 = vmatprep.subr.bf16.mxu0 0
        %885 = vmatpush1.bf16.msra.mxu0 %v879
        %886 = vmatprep.subr.bf16.mxu0 0
        %887 = vmatpush1.bf16.msra.mxu0 0
        %888 = vmatprep.subr.bf16.mxu0 0
        %889 = vmatpush1.bf16.msra.mxu0 0
        %890 = vmatprep.subr.bf16.mxu0 0
        %891 = vmatpush1.bf16.msra.mxu0 0
        %892 = vmatprep.subr.bf16.mxu0 0
        %893 = vmatpush1.bf16.msra.mxu0 0
        %894 = vmatprep.subr.bf16.mxu0 0
        %895 = vmatpush1.bf16.msra.mxu0 0
        %896 = vmatprep.subr.bf16.mxu0 0
        %897 = vmatpush1.bf16.msra.mxu0 0
        %898 = vmatprep.subr.bf16.mxu0 0
        %899 = vmatpush1.bf16.msra.mxu0 0
        %900 = vmatprep.subr.bf16.mxu0 0
        %901 = vmatpush1.bf16.msra.mxu0 0
        %902 = vmatprep.subr.bf16.mxu0 0
        %903 = vmatpush1.bf16.msra.mxu0 0
        %904 = vmatprep.subr.bf16.mxu0 0
        %905 = vmatpush1.bf16.msra.mxu0 0
        %906 = vmatprep.subr.bf16.mxu0 0
        %907 = vmatpush1.bf16.msra.mxu0 0
        %908 = vmatprep.subr.bf16.mxu0 0
        %909 = vmatpush1.bf16.msra.mxu0 0
        %910 = vmatprep.subr.bf16.mxu0 0
        %911 = vmatpush1.bf16.msra.mxu0 0
        %912 = vmatprep.subr.bf16.mxu0 0
        %913 = vmatpush1.bf16.msra.mxu0 0
        %914 = vmatprep.subr.bf16.mxu0 0
        %915 = vmatpush1.bf16.msra.mxu0 0
        %916 = vmatprep.mubr.bf16.mxu0 0
        %917 = vmatmul.mubr.bf16.gmra.mrb[0].mxu0 %v882
        %v918 = vpop.f32.mrb[0].mxu0
        %v919 = vadd.f32 0.0, %v918
        %v920 = vpop.f32.mrb[0].mxu0
        %v921 = vpop.f32.mrb[0].mxu0
        %v922 = vadd.f32 0.0, %v921
        %v923 = vpop.f32.mrb[0].mxu0
        %924 = vdwg.mxu0
        %925 = vrot.lane.b32.xlu0 %v552, 104
        %v926 = vpop.permute.xlu0 %925
        %927 = vrot.lane.b32.xlu0 %v553, 72
        %v928 = vpop.permute.xlu0 %927
        %v930 = vsel %vm557, %v926, 0
        %v933 = vsel %vm557, %v928, 0
        %935 = vmatprep.subr.bf16.mxu0 0
        %936 = vmatpush1.bf16.xpose.msra.mxu0 %v933
        %937 = vmatprep.subr.bf16.mxu0 0
        %938 = vmatpush1.bf16.xpose.msra.mxu0 0
        %939 = vmatprep.subr.bf16.mxu0 0
        %940 = vmatpush1.bf16.xpose.msra.mxu0 0
        %941 = vmatprep.subr.bf16.mxu0 0
        %942 = vmatpush1.bf16.xpose.msra.mxu0 0
        %943 = vmatprep.subr.bf16.mxu0 0
        %944 = vmatpush1.bf16.xpose.msra.mxu0 0
        %945 = vmatprep.subr.bf16.mxu0 0
        %946 = vmatpush1.bf16.xpose.msra.mxu0 0
        %947 = vmatprep.subr.bf16.mxu0 0
        %948 = vmatpush1.bf16.xpose.msra.mxu0 0
        %949 = vmatprep.subr.bf16.mxu0 0
        %950 = vmatpush1.bf16.xpose.msra.mxu0 0
        %951 = vmatprep.subr.bf16.mxu0 0
        %952 = vmatpush1.bf16.xpose.msra.mxu0 0
        %953 = vmatprep.subr.bf16.mxu0 0
        %954 = vmatpush1.bf16.xpose.msra.mxu0 0
        %955 = vmatprep.subr.bf16.mxu0 0
        %956 = vmatpush1.bf16.xpose.msra.mxu0 0
        %957 = vmatprep.subr.bf16.mxu0 0
        %958 = vmatpush1.bf16.xpose.msra.mxu0 0
        %959 = vmatprep.subr.bf16.mxu0 0
        %960 = vmatpush1.bf16.xpose.msra.mxu0 0
        %961 = vmatprep.subr.bf16.mxu0 0
        %962 = vmatpush1.bf16.xpose.msra.mxu0 0
        %963 = vmatprep.subr.bf16.mxu0 0
        %964 = vmatpush1.bf16.xpose.msra.mxu0 0
        %965 = vmatprep.subr.bf16.mxu0 0
        %966 = vmatpush1.bf16.xpose.msra.mxu0 0
        %967 = vmatprep.mubr.bf16.mxu0 0
        %968 = vmatmul.mubr.bf16.gmra.mrb[0].mxu0 %v930
        %v969 = vpop.f32.mrb[0].mxu0
        %v970 = vadd.f32 0.0, %v969
        %v971 = vpop.f32.mrb[0].mxu0
        %v972 = vpop.f32.mrb[0].mxu0
        %v973 = vadd.f32 0.0, %v972
        %v974 = vpop.f32.mrb[0].mxu0
        %975 = vdwg.mxu0
        %v976 = vmul.f32 %v970, 0.35355338
        %v977 = vmul.f32 %v973, 0.35355338
        %v978 = vsel %vm607, %v976, -inf
        %979 = vmax.xlane.f32.xlu0 %v978
        %v980 = vpop.xlane.xlu0 %979
        %v981 = vsel %vm607, %v977, -inf
        %982 = vmax.xlane.f32.xlu0 %v981
        %v983 = vpop.xlane.xlu0 %982
        %v984 = vsub.f32 %v976, %v980
        %v985 = vsub.f32 %v977, %v983
        %v986 = vmul.f32 %v984, 1.442695
        %v987 = vpow.pop %v986
        %v988 = vmul.f32 %v985, 1.442695
        %v989 = vpow.pop %v988
        %v990 = vsel %vm607, %v987, 0.0
        %991 = vadd.xlane.f32.xlu0 %v990
        %v992 = vpop.xlane.xlu0 %991
        %v993 = vsel %vm607, %v989, 0.0
        %994 = vadd.xlane.f32.xlu0 %v993
        %v995 = vpop.xlane.xlu0 %994
        %v996 = vrcp.pop %v992
        %v997 = vrcp.pop %v995
        %v998 = vmul.f32 %v987, %v996
        %v999 = vmul.f32 %v989, %v997
        %v1000 = vpack.c.bf16 %v999, %v998
        %1001 = vrot.lane.b32.xlu0 %v553, 40
        %v1002 = vpop.permute.xlu0 %1001
        %v1005 = vsel %vm607, %v1000, 0
        %1007 = vmatprep.subr.bf16.mxu0 0
        %1008 = vmatpush1.bf16.msra.mxu0 %v1002
        %1009 = vmatprep.subr.bf16.mxu0 0
        %1010 = vmatpush1.bf16.msra.mxu0 0
        %1011 = vmatprep.subr.bf16.mxu0 0
        %1012 = vmatpush1.bf16.msra.mxu0 0
        %1013 = vmatprep.subr.bf16.mxu0 0
        %1014 = vmatpush1.bf16.msra.mxu0 0
        %1015 = vmatprep.subr.bf16.mxu0 0
        %1016 = vmatpush1.bf16.msra.mxu0 0
        %1017 = vmatprep.subr.bf16.mxu0 0
        %1018 = vmatpush1.bf16.msra.mxu0 0
        %1019 = vmatprep.subr.bf16.mxu0 0
        %1020 = vmatpush1.bf16.msra.mxu0 0
        %1021 = vmatprep.subr.bf16.mxu0 0
        %1022 = vmatpush1.bf16.msra.mxu0 0
        %1023 = vmatprep.subr.bf16.mxu0 0
        %1024 = vmatpush1.bf16.msra.mxu0 0
        %1025 = vmatprep.subr.bf16.mxu0 0
        %1026 = vmatpush1.bf16.msra.mxu0 0
        %1027 = vmatprep.subr.bf16.mxu0 0
        %1028 = vmatpush1.bf16.msra.mxu0 0
        %1029 = vmatprep.subr.bf16.mxu0 0
        %1030 = vmatpush1.bf16.msra.mxu0 0
        %1031 = vmatprep.subr.bf16.mxu0 0
        %1032 = vmatpush1.bf16.msra.mxu0 0
        %1033 = vmatprep.subr.bf16.mxu0 0
        %1034 = vmatpush1.bf16.msra.mxu0 0
        %1035 = vmatprep.subr.bf16.mxu0 0
        %1036 = vmatpush1.bf16.msra.mxu0 0
        %1037 = vmatprep.subr.bf16.mxu0 0
        %1038 = vmatpush1.bf16.msra.mxu0 0
        %1039 = vmatprep.mubr.bf16.mxu0 0
        %1040 = vmatmul.mubr.bf16.gmra.mrb[0].mxu0 %v1005
        %v1041 = vpop.f32.mrb[0].mxu0
        %v1042 = vadd.f32 0.0, %v1041
        %v1043 = vpop.f32.mrb[0].mxu0
        %v1044 = vpop.f32.mrb[0].mxu0
        %v1045 = vadd.f32 0.0, %v1044
        %v1046 = vpop.f32.mrb[0].mxu0
        %1047 = vdwg.mxu0
        %1050 = vrot.lane.b32.xlu0 %v796, 8
        %v1051 = vpop.permute.xlu0 %1050
        %1052 = vrot.lane.b32.xlu0 %v799, 8
        %v1053 = vpop.permute.xlu0 %1052
        %1058 = vrot.lane.b32.xlu0 %v919, 16
        %v1059 = vpop.permute.xlu0 %1058
        %1060 = vrot.lane.b32.xlu0 %v922, 16
        %v1061 = vpop.permute.xlu0 %1060
        %1066 = vrot.lane.b32.xlu0 %v1042, 24
        %v1067 = vpop.permute.xlu0 %1066
        %1068 = vrot.lane.b32.xlu0 %v1045, 24
        %v1069 = vpop.permute.xlu0 %1068
        %v1072 = vsel %vm557, %v672, %v1051
        %v1073 = vsel %vm557, %v675, %v1053
        %v1074 = vsel %vm607, %v1072, %v1059
        %v1075 = vsel %vm607, %v1073, %v1061
        %vm1076 = vcmask 195584
        %v1077 = vsel %vm1076, %v1074, %v1067
        %v1078 = vsel %vm1076, %v1075, %v1069
        %v1079 = vpack.c.bf16 %v1078, %v1077
        %v1080 = vld [vmem:[%s4] sm:$0xf]
        %v1081 = vld [vmem:[%s4 + $0x4] sm:$0xf]
        %v1082 = vld [vmem:[%s4 + $0x8] sm:$0xf]
        %v1083 = vld [vmem:[%s4 + $0xc] sm:$0xf]
        %v1084 = vld [vmem:[%s5] sm:$0x1]
        %v1086 = vlaneseq
        %v1087 = vshrl.u32 %v1086, 7
        %v1088 = vsub.s32 0, %v1087
        %v1089 = vrot.slane %v1084, %v1088
        %v1095 = vunpack.c.l.b16 %v1080
        %v1096 = vunpack.c.l.b16 %v1081
        %v1097 = vunpack.c.l.b16 %v1082
        %v1098 = vunpack.c.l.b16 %v1083
        %v1099 = vpack.c.b16 %v1096, %v1095
        %v1100 = vpack.c.b16 %v1098, %v1097
        %vm1103 = vcmask 261120
        %v1105 = vsel %vm1103, %v1079, 0
        %1107 = vmatprep.subr.bf16.mxu0 0
        %1108 = vmatpush1.bf16.msra.mxu0 %v1099
        %1109 = vmatprep.subr.bf16.mxu0 0
        %1110 = vmatpush1.bf16.msra.mxu0 %v1100
        %1111 = vmatprep.subr.bf16.mxu0 0
        %1112 = vmatpush1.bf16.msra.mxu0 0
        %1113 = vmatprep.subr.bf16.mxu0 0
        %1114 = vmatpush1.bf16.msra.mxu0 0
        %1115 = vmatprep.subr.bf16.mxu0 0
        %1116 = vmatpush1.bf16.msra.mxu0 0
        %1117 = vmatprep.subr.bf16.mxu0 0
        %1118 = vmatpush1.bf16.msra.mxu0 0
        %1119 = vmatprep.subr.bf16.mxu0 0
        %1120 = vmatpush1.bf16.msra.mxu0 0
        %1121 = vmatprep.subr.bf16.mxu0 0
        %1122 = vmatpush1.bf16.msra.mxu0 0
        %1123 = vmatprep.subr.bf16.mxu0 0
        %1124 = vmatpush1.bf16.msra.mxu0 0
        %1125 = vmatprep.subr.bf16.mxu0 0
        %1126 = vmatpush1.bf16.msra.mxu0 0
        %1127 = vmatprep.subr.bf16.mxu0 0
        %1128 = vmatpush1.bf16.msra.mxu0 0
        %1129 = vmatprep.subr.bf16.mxu0 0
        %1130 = vmatpush1.bf16.msra.mxu0 0
        %1131 = vmatprep.subr.bf16.mxu0 0
        %1132 = vmatpush1.bf16.msra.mxu0 0
        %1133 = vmatprep.subr.bf16.mxu0 0
        %1134 = vmatpush1.bf16.msra.mxu0 0
        %1135 = vmatprep.subr.bf16.mxu0 0
        %1136 = vmatpush1.bf16.msra.mxu0 0
        %1137 = vmatprep.subr.bf16.mxu0 0
        %1138 = vmatpush1.bf16.msra.mxu0 0
        %1139 = vmatprep.mubr.bf16.mxu0 0
        %1140 = vmatmul.mubr.bf16.gmra.mrb[0].mxu0 %v1105
        %v1141 = vpop.f32.mrb[0].mxu0
        %v1142 = vadd.f32 %v1089, %v1141
        %v1143 = vpop.f32.mrb[0].mxu0
        %v1144 = vpop.f32.mrb[0].mxu0
        %v1145 = vadd.f32 %v1089, %v1144
        %v1146 = vpop.f32.mrb[0].mxu0
        %1147 = vdwg.mxu0
        %v1148 = vadd.f32 %v546, %v1142
        %v1149 = vadd.f32 %v547, %v1145
        %v1150 = vld [vmem:[%s6] sm:$0x1]
        %v1151 = vld [vmem:[%s7] sm:$0x1]
        %v1152 = vsel %vm1103, %v1148, 0.0
        %1153 = vadd.xlane.f32.xlu0 %v1152
        %v1154 = vpop.xlane.xlu0 %1153
        %v1155 = vsel %vm1103, %v1149, 0.0
        %1156 = vadd.xlane.f32.xlu0 %v1155
        %v1157 = vpop.xlane.xlu0 %1156
        %v1158 = vrcp.pop 32.0
        %v1159 = vmul.f32 %v1154, %v1158
        %v1160 = vmul.f32 %v1157, %v1158
        %v1161 = vsub.f32 %v1148, %v1159
        %v1162 = vsub.f32 %v1149, %v1160
        %v1163 = vmul.f32 %v1161, %v1161
        %v1164 = vmul.f32 %v1162, %v1162
        %v1165 = vsel %vm1103, %v1163, 0.0
        %1166 = vadd.xlane.f32.xlu0 %v1165
        %v1167 = vpop.xlane.xlu0 %1166
        %v1168 = vsel %vm1103, %v1164, 0.0
        %1169 = vadd.xlane.f32.xlu0 %v1168
        %v1170 = vpop.xlane.xlu0 %1169
        %v1171 = vmul.f32 %v1167, %v1158
        %v1172 = vmul.f32 %v1170, %v1158
        %v1173 = vadd.f32 %v1171, 1e-05
        %v1174 = vadd.f32 %v1172, 1e-05
        %v1175 = vrsqrt.pop %v1173
        %v1176 = vrsqrt.pop %v1174
        %v1177 = vmul.f32 %v1161, %v1175
        %v1178 = vmul.f32 %v1162, %v1176
        %v1180 = vlaneseq
        %v1181 = vshrl.u32 %v1180, 7
        %v1182 = vsub.s32 0, %v1181
        %v1183 = vrot.slane %v1150, %v1182
        %v1185 = vmul.f32 %v1177, %v1183
        %v1186 = vmul.f32 %v1178, %v1183
        %v1188 = vlaneseq
        %v1189 = vshrl.u32 %v1188, 7
        %v1190 = vsub.s32 0, %v1189
        %v1191 = vrot.slane %v1151, %v1190
        %v1193 = vadd.f32 %v1185, %v1191
        %v1194 = vadd.f32 %v1186, %v1191
        %v1195 = vpack.c.bf16 %v1194, %v1193
        %v1196 = vld [vmem:[%s8] sm:$0xf]
        %v1197 = vld [vmem:[%s8 + $0x4] sm:$0xf]
        %v1198 = vld [vmem:[%s8 + $0x8] sm:$0xf]
        %v1199 = vld [vmem:[%s8 + $0xc] sm:$0xf]
        %v1200 = vld [vmem:[%s9] sm:$0x1]
        %v1202 = vlaneseq
        %v1203 = vshrl.u32 %v1202, 7
        %v1204 = vsub.s32 0, %v1203
        %v1205 = vrot.slane %v1200, %v1204
        %v1211 = vunpack.c.l.b16 %v1196
        %v1212 = vunpack.c.l.b16 %v1197
        %v1213 = vunpack.c.l.b16 %v1198
        %v1214 = vunpack.c.l.b16 %v1199
        %v1215 = vpack.c.b16 %v1212, %v1211
        %v1216 = vpack.c.b16 %v1214, %v1213
        %v1220 = vsel %vm1103, %v1195, 0
        %1222 = vmatprep.subr.bf16.mxu0 0
        %1223 = vmatpush1.bf16.msra.mxu0 %v1215
        %1224 = vmatprep.subr.bf16.mxu0 0
        %1225 = vmatpush1.bf16.msra.mxu0 %v1216
        %1226 = vmatprep.subr.bf16.mxu0 0
        %1227 = vmatpush1.bf16.msra.mxu0 0
        %1228 = vmatprep.subr.bf16.mxu0 0
        %1229 = vmatpush1.bf16.msra.mxu0 0
        %1230 = vmatprep.subr.bf16.mxu0 0
        %1231 = vmatpush1.bf16.msra.mxu0 0
        %1232 = vmatprep.subr.bf16.mxu0 0
        %1233 = vmatpush1.bf16.msra.mxu0 0
        %1234 = vmatprep.subr.bf16.mxu0 0
        %1235 = vmatpush1.bf16.msra.mxu0 0
        %1236 = vmatprep.subr.bf16.mxu0 0
        %1237 = vmatpush1.bf16.msra.mxu0 0
        %1238 = vmatprep.subr.bf16.mxu0 0
        %1239 = vmatpush1.bf16.msra.mxu0 0
        %1240 = vmatprep.subr.bf16.mxu0 0
        %1241 = vmatpush1.bf16.msra.mxu0 0
        %1242 = vmatprep.subr.bf16.mxu0 0
        %1243 = vmatpush1.bf16.msra.mxu0 0
        %1244 = vmatprep.subr.bf16.mxu0 0
        %1245 = vmatpush1.bf16.msra.mxu0 0
        %1246 = vmatprep.subr.bf16.mxu0 0
        %1247 = vmatpush1.bf16.msra.mxu0 0
        %1248 = vmatprep.subr.bf16.mxu0 0
        %1249 = vmatpush1.bf16.msra.mxu0 0
        %1250 = vmatprep.subr.bf16.mxu0 0
        %1251 = vmatpush1.bf16.msra.mxu0 0
        %1252 = vmatprep.subr.bf16.mxu0 0
        %1253 = vmatpush1.bf16.msra.mxu0 0
        %1254 = vmatprep.mubr.bf16.mxu0 0
        %1255 = vmatmul.mubr.bf16.gmra.mrb[0].mxu0 %v1220
        %v1256 = vpop.f32.mrb[0].mxu0
        %v1257 = vadd.f32 %v1205, %v1256
        %v1258 = vpop.f32.mrb[0].mxu0
        %v1259 = vpop.f32.mrb[0].mxu0
        %v1260 = vadd.f32 %v1205, %v1259
        %v1261 = vpop.f32.mrb[0].mxu0
        %1262 = vdwg.mxu0
        %v1263 = vmul.f32 %v1257, 0.5
        %v1264 = vmul.f32 %v1260, 0.5
        %v1265 = vmul.f32 %v1257, 0.044715
        %v1266 = vmul.f32 %v1260, 0.044715
        %v1267 = vmul.f32 %v1265, %v1257
        %v1268 = vmul.f32 %v1266, %v1260
        %v1269 = vmul.f32 %v1267, %v1257
        %v1270 = vmul.f32 %v1268, %v1260
        %v1271 = vadd.f32 %v1257, %v1269
        %v1272 = vadd.f32 %v1260, %v1270
        %v1273 = vmul.f32 %v1271, 0.7978846
        %v1274 = vmul.f32 %v1272, 0.7978846
        %v1275 = vtanh.pop %v1273
        %v1276 = vtanh.pop %v1274
        %v1277 = vadd.f32 %v1275, 1.0
        %v1278 = vadd.f32 %v1276, 1.0
        %v1279 = vmul.f32 %v1263, %v1277
        %v1280 = vmul.f32 %v1264, %v1278
        %v1281 = vpack.c.bf16 %v1280, %v1279
        %v1282 = vld [vmem:[%s10] sm:$0xf]
        %v1283 = vld [vmem:[%s10 + $0x4] sm:$0xf]
        %v1284 = vld [vmem:[%s10 + $0x8] sm:$0xf]
        %v1285 = vld [vmem:[%s10 + $0xc] sm:$0xf]
        %v1286 = vld [vmem:[%s10 + $0x10] sm:$0xf]
        %v1287 = vld [vmem:[%s10 + $0x14] sm:$0xf]
        %v1288 = vld [vmem:[%s10 + $0x18] sm:$0xf]
        %v1289 = vld [vmem:[%s10 + $0x1c] sm:$0xf]
        %v1290 = vld [vmem:[%s10 + $0x20] sm:$0xf]
        %v1291 = vld [vmem:[%s10 + $0x24] sm:$0xf]
        %v1292 = vld [vmem:[%s10 + $0x28] sm:$0xf]
        %v1293 = vld [vmem:[%s10 + $0x2c] sm:$0xf]
        %v1294 = vld [vmem:[%s10 + $0x30] sm:$0xf]
        %v1295 = vld [vmem:[%s10 + $0x34] sm:$0xf]
        %v1296 = vld [vmem:[%s10 + $0x38] sm:$0xf]
        %v1297 = vld [vmem:[%s10 + $0x3c] sm:$0xf]
        %v1298 = vld [vmem:[%s11] sm:$0x1]
        %v1300 = vlaneseq
        %v1301 = vshrl.u32 %v1300, 7
        %v1302 = vsub.s32 0, %v1301
        %v1303 = vrot.slane %v1298, %v1302
        %v1321 = vunpack.c.l.b16 %v1282
        %v1322 = vunpack.c.l.b16 %v1283
        %v1323 = vunpack.c.l.b16 %v1284
        %v1324 = vunpack.c.l.b16 %v1285
        %v1325 = vunpack.c.l.b16 %v1286
        %v1326 = vunpack.c.l.b16 %v1287
        %v1327 = vunpack.c.l.b16 %v1288
        %v1328 = vunpack.c.l.b16 %v1289
        %v1329 = vunpack.c.l.b16 %v1290
        %v1330 = vunpack.c.l.b16 %v1291
        %v1331 = vunpack.c.l.b16 %v1292
        %v1332 = vunpack.c.l.b16 %v1293
        %v1333 = vunpack.c.l.b16 %v1294
        %v1334 = vunpack.c.l.b16 %v1295
        %v1335 = vunpack.c.l.b16 %v1296
        %v1336 = vunpack.c.l.b16 %v1297
        %v1337 = vpack.c.b16 %v1322, %v1321
        %v1338 = vpack.c.b16 %v1324, %v1323
        %v1339 = vpack.c.b16 %v1326, %v1325
        %v1340 = vpack.c.b16 %v1328, %v1327
        %v1341 = vpack.c.b16 %v1330, %v1329
        %v1342 = vpack.c.b16 %v1332, %v1331
        %v1343 = vpack.c.b16 %v1334, %v1333
        %v1344 = vpack.c.b16 %v1336, %v1335
        %1353 = vmatprep.subr.bf16.mxu0 0
        %1354 = vmatpush1.bf16.msra.mxu0 %v1337
        %1355 = vmatprep.subr.bf16.mxu0 0
        %1356 = vmatpush1.bf16.msra.mxu0 %v1338
        %1357 = vmatprep.subr.bf16.mxu0 0
        %1358 = vmatpush1.bf16.msra.mxu0 %v1339
        %1359 = vmatprep.subr.bf16.mxu0 0
        %1360 = vmatpush1.bf16.msra.mxu0 %v1340
        %1361 = vmatprep.subr.bf16.mxu0 0
        %1362 = vmatpush1.bf16.msra.mxu0 %v1341
        %1363 = vmatprep.subr.bf16.mxu0 0
        %1364 = vmatpush1.bf16.msra.mxu0 %v1342
        %1365 = vmatprep.subr.bf16.mxu0 0
        %1366 = vmatpush1.bf16.msra.mxu0 %v1343
        %1367 = vmatprep.subr.bf16.mxu0 0
        %1368 = vmatpush1.bf16.msra.mxu0 %v1344
        %1369 = vmatprep.subr.bf16.mxu0 0
        %1370 = vmatpush1.bf16.msra.mxu0 0
        %1371 = vmatprep.subr.bf16.mxu0 0
        %1372 = vmatpush1.bf16.msra.mxu0 0
        %1373 = vmatprep.subr.bf16.mxu0 0
        %1374 = vmatpush1.bf16.msra.mxu0 0
        %1375 = vmatprep.subr.bf16.mxu0 0
        %1376 = vmatpush1.bf16.msra.mxu0 0
        %1377 = vmatprep.subr.bf16.mxu0 0
        %1378 = vmatpush1.bf16.msra.mxu0 0
        %1379 = vmatprep.subr.bf16.mxu0 0
        %1380 = vmatpush1.bf16.msra.mxu0 0
        %1381 = vmatprep.subr.bf16.mxu0 0
        %1382 = vmatpush1.bf16.msra.mxu0 0
        %1383 = vmatprep.subr.bf16.mxu0 0
        %1384 = vmatpush1.bf16.msra.mxu0 0
        %1385 = vmatprep.mubr.bf16.mxu0 0
        %1386 = vmatmul.mubr.bf16.gmra.mrb[0].mxu0 %v1281
        %v1387 = vpop.f32.mrb[0].mxu0
        %v1388 = vadd.f32 %v1303, %v1387
        %v1389 = vpop.f32.mrb[0].mxu0
        %v1390 = vpop.f32.mrb[0].mxu0
        %v1391 = vadd.f32 %v1303, %v1390
        %v1392 = vpop.f32.mrb[0].mxu0
        %1393 = vdwg.mxu0
        %v1394 = vadd.f32 %v1148, %v1388
        %v1395 = vadd.f32 %v1149, %v1391
        %1396 = vst.msk [vmem:[%s420] sm:$0xff] %vm1103, %v1394
        %1397 = vst.msk [vmem:[%s420 + $0x8] sm:$0xff] %vm1103, %v1395
        %s1398 = sand.u32 %s305, 1
        %s1399 = scalar_lea.sflag [#allocation4], %s1398
        %s1400 = sand.u32 %s305, 1
        %s1401 = smul.addr %s1400, 16
        %s1402 = scalar_lea.vmem [#allocation3], %s1401
        // Predicated region
        $region73: #{tpu_custom_call.1} parent=67 // pred_check
          %p1403 = pneg %p315
        $region74: #{tpu_custom_call.1} parent=67 // pred_check_branch
          %1405 = sbr.rel (%p1403) target = $region76
        $region75: #{tpu_custom_call.1} parent=67 // pred_region
          %s1406 = smul.u32 2, %s31
          %s1408 = ssub.s32 256, 256
          %1409 = vsyncadd %s1399, %s1408
          %s1410 = smul.addr %s30, 2
          %s1411 = sadd.s32 %s1406, %s1410
          %s1412 = smul.addr %s1411, 128
          %s1413 = scalar_lea.hbm %s12, %s1412
          %s1414 = sshll.u32 %s1402, 4
          %s1415 = int_to_ptr.vmem [resolvable:$true] %s1414
          %1420 = dma.vmem_to_hbm [thread:$0]  %s1415, 256, %s1413, %s1399, 128, 128, 8
        $region76: #{tpu_custom_call.1} parent=67 // pred_fallthru
          _
      $region68: #{tpu_custom_call.1} parent=5 // pred_fallthru
        _
      %p1421 = scmp.le.s32.totalorder 2, %s21
      // Predicated region
      $region77: #{tpu_custom_call.1} parent=5 // pred_check
        %p1422 = pneg %p1421
      $region78: #{tpu_custom_call.1} parent=5 // pred_check_branch
        %1424 = sbr.rel (%p1422) target = $region80
      $region79: #{tpu_custom_call.1} parent=5 // pred_region
        %s1425 = ssub.s32 %s21, 2
        // Predicated region
        $region81: #{tpu_custom_call.1} parent=79 // pred_check
          %p1426 = pneg %p321
        $region82: #{tpu_custom_call.1} parent=79 // pred_check_branch
          %1428 = sbr.rel (%p1426) target = $region84
        $region83: #{tpu_custom_call.1} parent=79 // pred_region
          %s1429 = sand.u32 %s306, 1
          %s1430 = scalar_lea.sflag [#allocation4], %s1429
          %s1431 = sand.u32 %s306, 1
          %s1432 = smul.addr %s1431, 16
          %s1433 = scalar_lea.vmem [#allocation3], %s1432
          %1434 = dma.done %s1430, 256
        $region84: #{tpu_custom_call.1} parent=79 // pred_fallthru
          _
      $region80: #{tpu_custom_call.1} parent=5 // pred_fallthru
        _
    $region6: #{tpu_custom_call.1} parent=1 // loop_footer
      %s25 = sadd.s32 1, %s21
    $region7: #{tpu_custom_call.1} parent=1 // loop_footer_branch
      %20 = sbr.rel target = $region3
    $region8: #{tpu_custom_call.1} parent=1 // loop_exit
      _
    %1435 = vsyncpa [#allocation4], 1
    %s1436 = scalar_lea.sflag [#allocation4], 1
    %1437 = vsyncpa %s1436, 1

// kernel: tpu_custom_call.1
$region0: #{tpu_custom_call.1}
  #allocation0 [shape = 'u32[]', space=smem, size = 0x4, offset = 0x4, fixed_abs, tag = 'smem constant byte address 0x4 - core index']
  #allocation1 [shape = 'u32[144,128]{1,0:T(1,128)}', space=vmem, size = 0x12000, scoped, tag = 'internal scratch']
  #allocation2 [shape = 'bf16[16,96]{1,0:T(16,128)(2,1)}', space=vmem, size = 0x1000, scoped, tag = 'scratch operand']
  %s0 = inlined_call_operand.vmem [shape: f32[2,16,32], index: 0, kind: input, shape index: {}]
  %s1 = inlined_call_operand.vmem [shape: f32[1,32], index: 1, kind: input, shape index: {}]
  %s2 = inlined_call_operand.vmem [shape: f32[1,32], index: 2, kind: input, shape index: {}]
  %s3 = inlined_call_operand.vmem [shape: bf16[32,96], index: 3, kind: input, shape index: {}]
  %s4 = inlined_call_operand.vmem [shape: bf16[32,32], index: 4, kind: input, shape index: {}]
  %s5 = inlined_call_operand.vmem [shape: f32[1,32], index: 5, kind: input, shape index: {}]
  %s6 = inlined_call_operand.vmem [shape: f32[1,32], index: 6, kind: input, shape index: {}]
  %s7 = inlined_call_operand.vmem [shape: f32[1,32], index: 7, kind: input, shape index: {}]
  %s8 = inlined_call_operand.vmem [shape: bf16[32,128], index: 8, kind: input, shape index: {}]
  %s9 = inlined_call_operand.vmem [shape: f32[1,128], index: 9, kind: input, shape index: {}]
  %s10 = inlined_call_operand.vmem [shape: bf16[128,32], index: 10, kind: input, shape index: {}]
  %s11 = inlined_call_operand.vmem [shape: f32[1,32], index: 11, kind: input, shape index: {}]
  %s12 = inlined_call_operand.hbm [shape: f32[2,16,32], index: 12, kind: output, shape index: {}]
  %s13 = sld [smem:[#allocation0]]
  $region85: #{tpu_custom_call.1} parent=0
    _
  %s15 = ssub.s32 1, %s13
  %s16 = scalar_select 0, %s15, %s13
  $region1: #{tpu_custom_call.1} parent=0
    #allocation3 [shape = 'u8[16384]{0}', space=vmem, size = 0x4000, scoped, tag = 'output window, operand 0']
    #allocation4 [shape = 's32[2]{0}', space=sflag, size = 0x8, scoped, tag = 'scoped memory for tpu_custom_call.1']
    %17 = vsyncpa [#allocation4], 0
    %s18 = scalar_lea.sflag [#allocation4], 1
    %19 = vsyncpa %s18, 0
    loop: start=0, step=1, limit=4
    $region2: #{tpu_custom_call.1} parent=1 // loop_pre_header
      _
    $region3: #{tpu_custom_call.1} parent=1 // loop_header
      %s21 = sphi 0, %s25
      %p22 = scmp.ge.s32.totalorder %s21, 4
      %s28 = sphi 0, %s40
      %s29 = sphi 0, %s36
      %s30 = sphi 0, %s28
      %s31 = sphi 0, %s29
      %s32 = sphi 0, %s30
      %s33 = sphi 0, %s31
      %s43 = sphi 0, %s45
      %s46 = sphi 0, %s43
      %s47 = sphi 0, %s46
      %s63 = sphi 0, %s47
      %s67 = sphi 0, %s67
      %s69 = sphi 0, %s67
      %s70 = sphi 0, %s69
      %s84 = sphi 0, %s70
      %s88 = sphi 0, %s88
      %s90 = sphi 0, %s88
      %s91 = sphi 0, %s90
      %s105 = sphi 0, %s91
      %s109 = sphi 0, %s109
      %s111 = sphi 0, %s109
      %s112 = sphi 0, %s111
      %s126 = sphi 0, %s112
      %s130 = sphi 0, %s130
      %s132 = sphi 0, %s130
      %s133 = sphi 0, %s132
      %s147 = sphi 0, %s133
      %s151 = sphi 0, %s151
      %s153 = sphi 0, %s151
      %s154 = sphi 0, %s153
      %s168 = sphi 0, %s154
      %s172 = sphi 0, %s172
      %s174 = sphi 0, %s172
      %s175 = sphi 0, %s174
      %s189 = sphi 0, %s175
      %s193 = sphi 0, %s193
      %s195 = sphi 0, %s193
      %s196 = sphi 0, %s195
      %s210 = sphi 0, %s196
      %s214 = sphi 0, %s214
      %s216 = sphi 0, %s214
      %s217 = sphi 0, %s216
      %s231 = sphi 0, %s217
      %s235 = sphi 0, %s235
      %s237 = sphi 0, %s235
      %s238 = sphi 0, %s237
      %s252 = sphi 0, %s238
      %s256 = sphi 0, %s256
      %s258 = sphi 0, %s256
      %s259 = sphi 0, %s258
      %s273 = sphi 0, %s259
      %s277 = sphi 0, %s277
      %s279 = sphi 0, %s277
      %s280 = sphi 0, %s279
      %s294 = sphi 0, %s280
      %s302 = sphi 0, %s304
      %s305 = sphi 0, %s302
      %s306 = sphi 0, %s305
      %s322 = sphi 0, %s306
    $region4: #{tpu_custom_call.1} parent=1 // loop_header_branch
      %24 = sbr.rel (%p22) target = $region8
    $region5: #{tpu_custom_call.1} parent=1 // loop_body
      %s26 = ssub.s32 %s21, 1
      %s27 = ssub.s32 %s21, 2
      %s34 = sadd.s32 1, %s29
      %p35 = scmp.ge.s32.totalorder %s34, 1
      %s36 = scalar_select %p35, 0, %s34
      %s37 = sadd.s32 1, %s28
      %s38 = scalar_select %p35, %s37, %s28
      %p39 = scmp.ge.s32.totalorder %s38, 2
      %s40 = scalar_select %p39, 0, %s38
      %s41 = ssub.s32 %s28, %s40
      %p42 = scmp.eq.s32.totalorder %s41, 0
      %s44 = sadd.s32 %s43, 1
      %s45 = scalar_select %p42, %s43, %s44
      %p48 = pneg %p42
      %p49 = scmp.eq.s32.totalorder %s21, 1
      %p50 = por %p48, %p49
      %p51 = scmp.ne.s32.totalorder %s43, %s46
      %p52 = scmp.eq.s32.totalorder %s21, 0
      %p53 = por %p51, %p52
      %p54 = scmp.ne.s32.totalorder %s43, %s46
      %p55 = scmp.eq.s32.totalorder %s26, 1
      %p56 = por %p54, %p55
      %p57 = scmp.ne.s32.totalorder %s46, %s47
      %p58 = scmp.eq.s32.totalorder %s26, 0
      %p59 = por %p57, %p58
      %p60 = scmp.ne.s32.totalorder %s46, %s47
      %p61 = scmp.eq.s32.totalorder %s27, 1
      %p62 = por %p60, %p61
      %p64 = scmp.ne.s32.totalorder %s47, %s63
      %p65 = scmp.eq.s32.totalorder %s27, 0
      %p66 = por %p64, %p65
      %s68 = sadd.s32 %s67, 1
      %p71 = scmp.eq.s32.totalorder %s21, 1
      %p72 = scmp.ne.s32.totalorder %s67, %s69
      %p73 = scmp.eq.s32.totalorder %s21, 0
      %p74 = por %p72, %p73
      %p75 = scmp.ne.s32.totalorder %s67, %s69
      %p76 = scmp.eq.s32.totalorder %s26, 1
      %p77 = por %p75, %p76
      %p78 = scmp.ne.s32.totalorder %s69, %s70
      %p79 = scmp.eq.s32.totalorder %s26, 0
      %p80 = por %p78, %p79
      %p81 = scmp.ne.s32.totalorder %s69, %s70
      %p82 = scmp.eq.s32.totalorder %s27, 1
      %p83 = por %p81, %p82
      %p85 = scmp.ne.s32.totalorder %s70, %s84
      %p86 = scmp.eq.s32.totalorder %s27, 0
      %p87 = por %p85, %p86
      %s89 = sadd.s32 %s88, 1
      %p92 = scmp.eq.s32.totalorder %s21, 1
      %p93 = scmp.ne.s32.totalorder %s88, %s90
      %p94 = scmp.eq.s32.totalorder %s21, 0
      %p95 = por %p93, %p94
      %p96 = scmp.ne.s32.totalorder %s88, %s90
      %p97 = scmp.eq.s32.totalorder %s26, 1
      %p98 = por %p96, %p97
      %p99 = scmp.ne.s32.totalorder %s90, %s91
      %p100 = scmp.eq.s32.totalorder %s26, 0
      %p101 = por %p99, %p100
      %p102 = scmp.ne.s32.totalorder %s90, %s91
      %p103 = scmp.eq.s32.totalorder %s27, 1
      %p104 = por %p102, %p103
      %p106 = scmp.ne.s32.totalorder %s91, %s105
      %p107 = scmp.eq.s32.totalorder %s27, 0
      %p108 = por %p106, %p107
      %s110 = sadd.s32 %s109, 1
      %p113 = scmp.eq.s32.totalorder %s21, 1
      %p114 = scmp.ne.s32.totalorder %s109, %s111
      %p115 = scmp.eq.s32.totalorder %s21, 0
      %p116 = por %p114, %p115
      %p117 = scmp.ne.s32.totalorder %s109, %s111
      %p118 = scmp.eq.s32.totalorder %s26, 1
      %p119 = por %p117, %p118
      %p120 = scmp.ne.s32.totalorder %s111, %s112
      %p121 = scmp.eq.s32.totalorder %s26, 0
      %p122 = por %p120, %p121
      %p123 = scmp.ne.s32.totalorder %s111, %s112
      %p124 = scmp.eq.s32.totalorder %s27, 1
      %p125 = por %p123, %p124
      %p127 = scmp.ne.s32.totalorder %s112, %s126
      %p128 = scmp.eq.s32.totalorder %s27, 0
      %p129 = por %p127, %p128
      %s131 = sadd.s32 %s130, 1
      %p134 = scmp.eq.s32.totalorder %s21, 1
      %p135 = scmp.ne.s32.totalorder %s130, %s132
      %p136 = scmp.eq.s32.totalorder %s21, 0
      %p137 = por %p135, %p136
      %p138 = scmp.ne.s32.totalorder %s130, %s132
      %p139 = scmp.eq.s32.totalorder %s26, 1
      %p140 = por %p138, %p139
      %p141 = scmp.ne.s32.totalorder %s132, %s133
      %p142 = scmp.eq.s32.totalorder %s26, 0
      %p143 = por %p141, %p142
      %p144 = scmp.ne.s32.totalorder %s132, %s133
      %p145 = scmp.eq.s32.totalorder %s27, 1
      %p146 = por %p144, %p145
      %p148 = scmp.ne.s32.totalorder %s133, %s147
      %p149 = scmp.eq.s32.totalorder %s27, 0
      %p150 = por %p148, %p149
      %s152 = sadd.s32 %s151, 1
      %p155 = scmp.eq.s32.totalorder %s21, 1
      %p156 = scmp.ne.s32.totalorder %s151, %s153
      %p157 = scmp.eq.s32.totalorder %s21, 0
      %p158 = por %p156, %p157
      %p159 = scmp.ne.s32.totalorder %s151, %s153
      %p160 = scmp.eq.s32.totalorder %s26, 1
      %p161 = por %p159, %p160
      %p162 = scmp.ne.s32.totalorder %s153, %s154
      %p163 = scmp.eq.s32.totalorder %s26, 0
      %p164 = por %p162, %p163
      %p165 = scmp.ne.s32.totalorder %s153, %s154
      %p166 = scmp.eq.s32.totalorder %s27, 1
      %p167 = por %p165, %p166
      %p169 = scmp.ne.s32.totalorder %s154, %s168
      %p170 = scmp.eq.s32.totalorder %s27, 0
      %p171 = por %p169, %p170
      %s173 = sadd.s32 %s172, 1
      %p176 = scmp.eq.s32.totalorder %s21, 1
      %p177 = scmp.ne.s32.totalorder %s172, %s174
      %p178 = scmp.eq.s32.totalorder %s21, 0
      %p179 = por %p177, %p178
      %p180 = scmp.ne.s32.totalorder %s172, %s174
      %p181 = scmp.eq.s32.totalorder %s26, 1
      %p182 = por %p180, %p181
      %p183 = scmp.ne.s32.totalorder %s174, %s175
      %p184 = scmp.eq.s32.totalorder %s26, 0
      %p185 = por %p183, %p184
      %p186 = scmp.ne.s32.totalorder %s174, %s175
      %p187 = scmp.eq.s32.totalorder %s27, 1
      %p188 = por %p186, %p187
      %p190 = scmp.ne.s32.totalorder %s175, %s189
      %p191 = scmp.eq.s32.totalorder %s27, 0
      %p192 = por %p190, %p191
      %s194 = sadd.s32 %s193, 1
      %p197 = scmp.eq.s32.totalorder %s21, 1
      %p198 = scmp.ne.s32.totalorder %s193, %s195
      %p199 = scmp.eq.s32.totalorder %s21, 0
      %p200 = por %p198, %p199
      %p201 = scmp.ne.s32.totalorder %s193, %s195
      %p202 = scmp.eq.s32.totalorder %s26, 1
      %p203 = por %p201, %p202
      %p204 = scmp.ne.s32.totalorder %s195, %s196
      %p205 = scmp.eq.s32.totalorder %s26, 0
      %p206 = por %p204, %p205
      %p207 = scmp.ne.s32.totalorder %s195, %s196
      %p208 = scmp.eq.s32.totalorder %s27, 1
      %p209 = por %p207, %p208
      %p211 = scmp.ne.s32.totalorder %s196, %s210
      %p212 = scmp.eq.s32.totalorder %s27, 0
      %p213 = por %p211, %p212
      %s215 = sadd.s32 %s214, 1
      %p218 = scmp.eq.s32.totalorder %s21, 1
      %p219 = scmp.ne.s32.totalorder %s214, %s216
      %p220 = scmp.eq.s32.totalorder %s21, 0
      %p221 = por %p219, %p220
      %p222 = scmp.ne.s32.totalorder %s214, %s216
      %p223 = scmp.eq.s32.totalorder %s26, 1
      %p224 = por %p222, %p223
      %p225 = scmp.ne.s32.totalorder %s216, %s217
      %p226 = scmp.eq.s32.totalorder %s26, 0
      %p227 = por %p225, %p226
      %p228 = scmp.ne.s32.totalorder %s216, %s217
      %p229 = scmp.eq.s32.totalorder %s27, 1
      %p230 = por %p228, %p229
      %p232 = scmp.ne.s32.totalorder %s217, %s231
      %p233 = scmp.eq.s32.totalorder %s27, 0
      %p234 = por %p232, %p233
      %s236 = sadd.s32 %s235, 1
      %p239 = scmp.eq.s32.totalorder %s21, 1
      %p240 = scmp.ne.s32.totalorder %s235, %s237
      %p241 = scmp.eq.s32.totalorder %s21, 0
      %p242 = por %p240, %p241
      %p243 = scmp.ne.s32.totalorder %s235, %s237
      %p244 = scmp.eq.s32.totalorder %s26, 1
      %p245 = por %p243, %p244
      %p246 = scmp.ne.s32.totalorder %s237, %s238
      %p247 = scmp.eq.s32.totalorder %s26, 0
      %p248 = por %p246, %p247
      %p249 = scmp.ne.s32.totalorder %s237, %s238
      %p250 = scmp.eq.s32.totalorder %s27, 1
      %p251 = por %p249, %p250
      %p253 = scmp.ne.s32.totalorder %s238, %s252
      %p254 = scmp.eq.s32.totalorder %s27, 0
      %p255 = por %p253, %p254
      %s257 = sadd.s32 %s256, 1
      %p260 = scmp.eq.s32.totalorder %s21, 1
      %p261 = scmp.ne.s32.totalorder %s256, %s258
      %p262 = scmp.eq.s32.totalorder %s21, 0
      %p263 = por %p261, %p262
      %p264 = scmp.ne.s32.totalorder %s256, %s258
      %p265 = scmp.eq.s32.totalorder %s26, 1
      %p266 = por %p264, %p265
      %p267 = scmp.ne.s32.totalorder %s258, %s259
      %p268 = scmp.eq.s32.totalorder %s26, 0
      %p269 = por %p267, %p268
      %p270 = scmp.ne.s32.totalorder %s258, %s259
      %p271 = scmp.eq.s32.totalorder %s27, 1
      %p272 = por %p270, %p271
      %p274 = scmp.ne.s32.totalorder %s259, %s273
      %p275 = scmp.eq.s32.totalorder %s27, 0
      %p276 = por %p274, %p275
      %s278 = sadd.s32 %s277, 1
      %p281 = scmp.eq.s32.totalorder %s21, 1
      %p282 = scmp.ne.s32.totalorder %s277, %s279
      %p283 = scmp.eq.s32.totalorder %s21, 0
      %p284 = por %p282, %p283
      %p285 = scmp.ne.s32.totalorder %s277, %s279
      %p286 = scmp.eq.s32.totalorder %s26, 1
      %p287 = por %p285, %p286
      %p288 = scmp.ne.s32.totalorder %s279, %s280
      %p289 = scmp.eq.s32.totalorder %s26, 0
      %p290 = por %p288, %p289
      %p291 = scmp.ne.s32.totalorder %s279, %s280
      %p292 = scmp.eq.s32.totalorder %s27, 1
      %p293 = por %p291, %p292
      %p295 = scmp.ne.s32.totalorder %s280, %s294
      %p296 = scmp.eq.s32.totalorder %s27, 0
      %p297 = por %p295, %p296
      %s298 = ssub.s32 %s28, %s40
      %s299 = ssub.s32 %s29, %s36
      %s300 = sor.u32 %s298, %s299
      %p301 = scmp.eq.s32.totalorder %s300, 0
      %s303 = sadd.s32 %s302, 1
      %s304 = scalar_select %p301, %s302, %s303
      %p307 = pneg %p301
      %p308 = scmp.eq.s32.totalorder %s21, 1
      %p309 = por %p307, %p308
      %p310 = scmp.ne.s32.totalorder %s302, %s305
      %p311 = scmp.eq.s32.totalorder %s21, 0
      %p312 = por %p310, %p311
      %p313 = scmp.ne.s32.totalorder %s302, %s305
      %p314 = scmp.eq.s32.totalorder %s26, 1
      %p315 = por %p313, %p314
      %p316 = scmp.ne.s32.totalorder %s305, %s306
      %p317 = scmp.eq.s32.totalorder %s26, 0
      %p318 = por %p316, %p317
      %p319 = scmp.ne.s32.totalorder %s305, %s306
      %p320 = scmp.eq.s32.totalorder %s27, 1
      %p321 = por %p319, %p320
      %p323 = scmp.ne.s32.totalorder %s306, %s322
      %p324 = scmp.eq.s32.totalorder %s27, 0
      %p325 = por %p323, %p324
      %p326 = scmp.le.s32.totalorder 1, %s21
      %p327 = scmp.lt.s32.totalorder %s21, 3
      %p328 = pnand %p326, %p327
      %p329 = pneg %p328
      // Predicated region
      $region9: #{tpu_custom_call.1} parent=5 // pred_check
        _
      $region10: #{tpu_custom_call.1} parent=5 // pred_check_branch
        %331 = sbr.rel (%p328) target = $region12
      $region11: #{tpu_custom_call.1} parent=5 // pred_region
        %s332 = ssub.s32 %s21, 1
        // Predicated region
        $region13: #{tpu_custom_call.1} parent=11 // pred_check
          %p333 = pneg %p80
        $region14: #{tpu_custom_call.1} parent=11 // pred_check_branch
          %335 = sbr.rel (%p333) target = $region16
        $region15: #{tpu_custom_call.1} parent=11 // pred_region
          _
        $region16: #{tpu_custom_call.1} parent=11 // pred_fallthru
          _
        // Predicated region
        $region17: #{tpu_custom_call.1} parent=11 // pred_check
          %p336 = pneg %p101
        $region18: #{tpu_custom_call.1} parent=11 // pred_check_branch
          %338 = sbr.rel (%p336) target = $region20
        $region19: #{tpu_custom_call.1} parent=11 // pred_region
          _
        $region20: #{tpu_custom_call.1} parent=11 // pred_fallthru
          _
        // Predicated region
        $region21: #{tpu_custom_call.1} parent=11 // pred_check
          %p339 = pneg %p122
        $region22: #{tpu_custom_call.1} parent=11 // pred_check_branch
          %341 = sbr.rel (%p339) target = $region24
        $region23: #{tpu_custom_call.1} parent=11 // pred_region
          _
        $region24: #{tpu_custom_call.1} parent=11 // pred_fallthru
          _
        // Predicated region
        $region25: #{tpu_custom_call.1} parent=11 // pred_check
          %p342 = pneg %p143
        $region26: #{tpu_custom_call.1} parent=11 // pred_check_branch
          %344 = sbr.rel (%p342) target = $region28
        $region27: #{tpu_custom_call.1} parent=11 // pred_region
          _
        $region28: #{tpu_custom_call.1} parent=11 // pred_fallthru
          _
        // Predicated region
        $region29: #{tpu_custom_call.1} parent=11 // pred_check
          %p345 = pneg %p164
        $region30: #{tpu_custom_call.1} parent=11 // pred_check_branch
          %347 = sbr.rel (%p345) target = $region32
        $region31: #{tpu_custom_call.1} parent=11 // pred_region
          _
        $region32: #{tpu_custom_call.1} parent=11 // pred_fallthru
          _
        // Predicated region
        $region33: #{tpu_custom_call.1} parent=11 // pred_check
          %p348 = pneg %p185
        $region34: #{tpu_custom_call.1} parent=11 // pred_check_branch
          %350 = sbr.rel (%p348) target = $region36
        $region35: #{tpu_custom_call.1} parent=11 // pred_region
          _
        $region36: #{tpu_custom_call.1} parent=11 // pred_fallthru
          _
        // Predicated region
        $region37: #{tpu_custom_call.1} parent=11 // pred_check
          %p351 = pneg %p206
        $region38: #{tpu_custom_call.1} parent=11 // pred_check_branch
          %353 = sbr.rel (%p351) target = $region40
        $region39: #{tpu_custom_call.1} parent=11 // pred_region
          _
        $region40: #{tpu_custom_call.1} parent=11 // pred_fallthru
          _
        // Predicated region
        $region41: #{tpu_custom_call.1} parent=11 // pred_check
          %p354 = pneg %p227
        $region42: #{tpu_custom_call.1} parent=11 // pred_check_branch
          %356 = sbr.rel (%p354) target = $region44
        $region43: #{tpu_custom_call.1} parent=11 // pred_region
          _
        $region44: #{tpu_custom_call.1} parent=11 // pred_fallthru
          _
        // Predicated region
        $region45: #{tpu_custom_call.1} parent=11 // pred_check
          %p357 = pneg %p248
        $region46: #{tpu_custom_call.1} parent=11 // pred_check_branch
          %359 = sbr.rel (%p357) target = $region48
        $region47: #{tpu_custom_call.1} parent=11 // pred_region
          _
        $region48: #{tpu_custom_call.1} parent=11 // pred_fallthru
          _
        // Predicated region
        $region49: #{tpu_custom_call.1} parent=11 // pred_check
          %p360 = pneg %p269
        $region50: #{tpu_custom_call.1} parent=11 // pred_check_branch
          %362 = sbr.rel (%p360) target = $region52
        $region51: #{tpu_custom_call.1} parent=11 // pred_region
          _
        $region52: #{tpu_custom_call.1} parent=11 // pred_fallthru
          _
        // Predicated region
        $region53: #{tpu_custom_call.1} parent=11 // pred_check
          %p363 = pneg %p290
        $region54: #{tpu_custom_call.1} parent=11 // pred_check_branch
          %365 = sbr.rel (%p363) target = $region56
        $region55: #{tpu_custom_call.1} parent=11 // pred_region
          _
        $region56: #{tpu_custom_call.1} parent=11 // pred_fallthru
          _
      $region12: #{tpu_custom_call.1} parent=5 // pred_fallthru
        _
      %p366 = scmp.lt.s32.totalorder %s21, 2
      // Predicated region
      $region57: #{tpu_custom_call.1} parent=5 // pred_check
        %p367 = pneg %p366
      $region58: #{tpu_custom_call.1} parent=5 // pred_check_branch
        %369 = sbr.rel (%p367) target = $region60
      $region59: #{tpu_custom_call.1} parent=5 // pred_region
        // Predicated region
        $region61: #{tpu_custom_call.1} parent=59 // pred_check
          %p370 = pneg %p53
        $region62: #{tpu_custom_call.1} parent=59 // pred_check_branch
          %372 = sbr.rel (%p370) target = $region64
        $region63: #{tpu_custom_call.1} parent=59 // pred_region
          %p373 = scmp.lt.s32.totalorder %s28, 1
          %s374 = scalar_select %p373, %s28, 1
          %s375 = smul.addr %s374, 2
          %s376 = smul.addr %s375, 8
          %s377 = scalar_lea.vmem %s0, %s376
        $region64: #{tpu_custom_call.1} parent=59 // pred_fallthru
          _
      $region60: #{tpu_custom_call.1} parent=5 // pred_fallthru
        _
      %p378 = scmp.le.s32.totalorder 1, %s21
      %p379 = scmp.lt.s32.totalorder %s21, 3
      %p380 = pnand %p378, %p379
      %p381 = pneg %p380
      // Predicated region
      $region65: #{tpu_custom_call.1} parent=5 // pred_check
        _
      $region66: #{tpu_custom_call.1} parent=5 // pred_check_branch
        %383 = sbr.rel (%p380) target = $region68
      $region67: #{tpu_custom_call.1} parent=5 // pred_region
        %s384 = ssub.s32 %s21, 1
        %p385 = scmp.lt.s32.totalorder %s30, 1
        %s386 = scalar_select %p385, %s30, 1
        %s387 = smul.addr %s386, 2
        %s388 = smul.addr %s387, 8
        %s389 = scalar_lea.vmem %s0, %s388
        %p390 = pneg %p59
        %p391 = pneg %p56
        %p392 = pneg %p80
        %p393 = pneg %p77
        %p394 = pneg %p101
        %p395 = pneg %p98
        %p396 = pneg %p122
        %p397 = pneg %p119
        %p398 = pneg %p143
        %p399 = pneg %p140
        %p400 = pneg %p164
        %p401 = pneg %p161
        %p402 = pneg %p185
        %p403 = pneg %p182
        %p404 = pneg %p206
        %p405 = pneg %p203
        %p406 = pneg %p227
        %p407 = pneg %p224
        %p408 = pneg %p248
        %p409 = pneg %p245
        %p410 = pneg %p269
        %p411 = pneg %p266
        %p412 = pneg %p290
        %p413 = pneg %p287
        %p414 = pneg %p318
        %p415 = pneg %p315
        %s416 = sand.u32 %s305, 1
        %s417 = scalar_lea.sflag [#allocation4], %s416
        %s418 = sand.u32 %s305, 1
        %s419 = smul.addr %s418, 16
        %s420 = scalar_lea.vmem [#allocation3], %s419
        %p421 = scmp.lt.s32.totalorder %s30, 1
        %s422 = scalar_select %p421, %s30, 1
        %s423 = smul.addr %s422, 2
        %s424 = smul.addr %s423, 8
        %s425 = scalar_lea.vmem %s0, %s424
        %s426 = smul.u32 2, %s31
        %p428 = scmp.eq.s32.totalorder %s31, 0
        // Predicated region
        $region69: #{tpu_custom_call.1} parent=67 // pred_check
          %p429 = pneg %p428
        $region70: #{tpu_custom_call.1} parent=67 // pred_check_branch
          %431 = sbr.rel (%p429) target = $region72
        $region71: #{tpu_custom_call.1} parent=67 // pred_region
          %v432 = vld [vmem:[%s425] sm:$0xff]
          %v433 = vld [vmem:[%s425 + $0x8] sm:$0xff]
          %v434 = vld [vmem:[%s1] sm:$0x1]
          %v435 = vld [vmem:[%s2] sm:$0x1]
          %vm436 = vcmask 261120
          %v437 = vsel %vm436, %v432, 0.0
          %438 = vadd.xlane.f32.xlu0 %v437
          %v439 = vpop.xlane.xlu0 %438
          %v440 = vsel %vm436, %v433, 0.0
          %441 = vadd.xlane.f32.xlu0 %v440
          %v442 = vpop.xlane.xlu0 %441
          %v443 = vrcp.pop 32.0
          %v444 = vmul.f32 %v439, %v443
          %v445 = vmul.f32 %v442, %v443
          %v446 = vsub.f32 %v432, %v444
          %v447 = vsub.f32 %v433, %v445
          %v448 = vmul.f32 %v446, %v446
          %v449 = vmul.f32 %v447, %v447
          %v450 = vsel %vm436, %v448, 0.0
          %451 = vadd.xlane.f32.xlu0 %v450
          %v452 = vpop.xlane.xlu0 %451
          %v453 = vsel %vm436, %v449, 0.0
          %454 = vadd.xlane.f32.xlu0 %v453
          %v455 = vpop.xlane.xlu0 %454
          %v456 = vmul.f32 %v452, %v443
          %v457 = vmul.f32 %v455, %v443
          %v458 = vadd.f32 %v456, 1e-05
          %v459 = vadd.f32 %v457, 1e-05
          %v460 = vrsqrt.pop %v458
          %v461 = vrsqrt.pop %v459
          %v462 = vmul.f32 %v446, %v460
          %v463 = vmul.f32 %v447, %v461
          %v465 = vlaneseq
          %v466 = vshrl.u32 %v465, 7
          %v467 = vsub.s32 0, %v466
          %v468 = vrot.slane %v434, %v467
          %v470 = vmul.f32 %v462, %v468
          %v471 = vmul.f32 %v463, %v468
          %v473 = vlaneseq
          %v474 = vshrl.u32 %v473, 7
          %v475 = vsub.s32 0, %v474
          %v476 = vrot.slane %v435, %v475
          %v478 = vadd.f32 %v470, %v476
          %v479 = vadd.f32 %v471, %v476
          %v480 = vpack.c.bf16 %v479, %v478
          %v481 = vld [vmem:[%s3] sm:$0xf]
          %v482 = vld [vmem:[%s3 + $0x4] sm:$0xf]
          %v483 = vld [vmem:[%s3 + $0x8] sm:$0xf]
          %v484 = vld [vmem:[%s3 + $0xc] sm:$0xf]
          %v489 = vunpack.c.l.b16 %v481
          %v490 = vunpack.c.l.b16 %v482
          %v491 = vunpack.c.l.b16 %v483
          %v492 = vunpack.c.l.b16 %v484
          %v493 = vpack.c.b16 %v490, %v489
          %v494 = vpack.c.b16 %v492, %v491
          %v498 = vsel %vm436, %v480, 0
          %500 = vmatprep.subr.bf16.mxu0 0
          %501 = vmatpush1.bf16.msra.mxu0 %v493
          %502 = vmatprep.subr.bf16.mxu0 0
          %503 = vmatpush1.bf16.msra.mxu0 %v494
          %504 = vmatprep.subr.bf16.mxu0 0
          %505 = vmatpush1.bf16.msra.mxu0 0
          %506 = vmatprep.subr.bf16.mxu0 0
          %507 = vmatpush1.bf16.msra.mxu0 0
          %508 = vmatprep.subr.bf16.mxu0 0
          %509 = vmatpush1.bf16.msra.mxu0 0
          %510 = vmatprep.subr.bf16.mxu0 0
          %511 = vmatpush1.bf16.msra.mxu0 0
          %512 = vmatprep.subr.bf16.mxu0 0
          %513 = vmatpush1.bf16.msra.mxu0 0
          %514 = vmatprep.subr.bf16.mxu0 0
          %515 = vmatpush1.bf16.msra.mxu0 0
          %516 = vmatprep.subr.bf16.mxu0 0
          %517 = vmatpush1.bf16.msra.mxu0 0
          %518 = vmatprep.subr.bf16.mxu0 0
          %519 = vmatpush1.bf16.msra.mxu0 0
          %520 = vmatprep.subr.bf16.mxu0 0
          %521 = vmatpush1.bf16.msra.mxu0 0
          %522 = vmatprep.subr.bf16.mxu0 0
          %523 = vmatpush1.bf16.msra.mxu0 0
          %524 = vmatprep.subr.bf16.mxu0 0
          %525 = vmatpush1.bf16.msra.mxu0 0
          %526 = vmatprep.subr.bf16.mxu0 0
          %527 = vmatpush1.bf16.msra.mxu0 0
          %528 = vmatprep.subr.bf16.mxu0 0
          %529 = vmatpush1.bf16.msra.mxu0 0
          %530 = vmatprep.subr.bf16.mxu0 0
          %531 = vmatpush1.bf16.msra.mxu0 0
          %532 = vmatprep.mubr.bf16.mxu0 0
          %533 = vmatmul.mubr.bf16.gmra.mrb[0].mxu0 %v498
          %v534 = vpop.f32.mrb[0].mxu0
          %v535 = vadd.f32 0.0, %v534
          %v536 = vpop.f32.mrb[0].mxu0
          %v537 = vpop.f32.mrb[0].mxu0
          %v538 = vadd.f32 0.0, %v537
          %v539 = vpop.f32.mrb[0].mxu0
          %540 = vdwg.mxu0
          %v541 = vpack.c.bf16 %v538, %v535
          %vm542 = vcmask 785408
          %543 = vst.msk [vmem:[#allocation2] sm:$0xff] %vm542, %v541
        $region72: #{tpu_custom_call.1} parent=67 // pred_fallthru
          _
        %s544 = smul.u32 %s31, 16
        %s545 = scalar_lea.vmem %s425, %s544
        %v546 = vld [vmem:[%s545] sm:$0xff]
        %v547 = vld [vmem:[%s545 + $0x8] sm:$0xff]
        %s548 = sshra.s32 %s544, 4
        %s549 = sand.u32 %s544, 15
        %s550 = smul.addr %s548, 8
        %s551 = scalar_lea.vmem [#allocation2], %s550
        %v552 = vld [vmem:[%s551] sm:$0xff]
        %v553 = vld [vmem:[#allocation2] sm:$0xff]
        %555 = vrot.lane.b32.xlu0 %v553, 96
        %v556 = vpop.permute.xlu0 %555
        %vm557 = vcmask 64512
        %v559 = vsel %vm557, %v552, 0
        %v562 = vsel %vm557, %v556, 0
        %564 = vmatprep.subr.bf16.mxu0 0
        %565 = vmatpush1.bf16.xpose.msra.mxu0 %v562
        %566 = vmatprep.subr.bf16.mxu0 0
        %567 = vmatpush1.bf16.xpose.msra.mxu0 0
        %568 = vmatprep.subr.bf16.mxu0 0
        %569 = vmatpush1.bf16.xpose.msra.mxu0 0
        %570 = vmatprep.subr.bf16.mxu0 0
        %571 = vmatpush1.bf16.xpose.msra.mxu0 0
        %572 = vmatprep.subr.bf16.mxu0 0
        %573 = vmatpush1.bf16.xpose.msra.mxu0 0
        %574 = vmatprep.subr.bf16.mxu0 0
        %575 = vmatpush1.bf16.xpose.msra.mxu0 0
        %576 = vmatprep.subr.bf16.mxu0 0
        %577 = vmatpush1.bf16.xpose.msra.mxu0 0
        %578 = vmatprep.subr.bf16.mxu0 0
        %579 = vmatpush1.bf16.xpose.msra.mxu0 0
        %580 = vmatprep.subr.bf16.mxu0 0
        %581 = vmatpush1.bf16.xpose.msra.mxu0 0
        %582 = vmatprep.subr.bf16.mxu0 0
        %583 = vmatpush1.bf16.xpose.msra.mxu0 0
        %584 = vmatprep.subr.bf16.mxu0 0
        %585 = vmatpush1.bf16.xpose.msra.mxu0 0
        %586 = vmatprep.subr.bf16.mxu0 0
        %587 = vmatpush1.bf16.xpose.msra.mxu0 0
        %588 = vmatprep.subr.bf16.mxu0 0
        %589 = vmatpush1.bf16.xpose.msra.mxu0 0
        %590 = vmatprep.subr.bf16.mxu0 0
        %591 = vmatpush1.bf16.xpose.msra.mxu0 0
        %592 = vmatprep.subr.bf16.mxu0 0
        %593 = vmatpush1.bf16.xpose.msra.mxu0 0
        %594 = vmatprep.subr.bf16.mxu0 0
        %595 = vmatpush1.bf16.xpose.msra.mxu0 0
        %596 = vmatprep.mubr.bf16.mxu0 0
        %597 = vmatmul.mubr.bf16.gmra.mrb[0].mxu0 %v559
        %v598 = vpop.f32.mrb[0].mxu0
        %v599 = vadd.f32 0.0, %v598
        %v600 = vpop.f32.mrb[0].mxu0
        %v601 = vpop.f32.mrb[0].mxu0
        %v602 = vadd.f32 0.0, %v601
        %v603 = vpop.f32.mrb[0].mxu0
        %604 = vdwg.mxu0
        %v605 = vmul.f32 %v599, 0.35355338
        %v606 = vmul.f32 %v602, 0.35355338
        %vm607 = vcmask 130048
        %v608 = vsel %vm607, %v605, -inf
        %609 = vmax.xlane.f32.xlu0 %v608
        %v610 = vpop.xlane.xlu0 %609
        %v611 = vsel %vm607, %v606, -inf
        %612 = vmax.xlane.f32.xlu0 %v611
        %v613 = vpop.xlane.xlu0 %612
        %v614 = vsub.f32 %v605, %v610
        %v615 = vsub.f32 %v606, %v613
        %v616 = vmul.f32 %v614, 1.442695
        %v617 = vpow.pop %v616
        %v618 = vmul.f32 %v615, 1.442695
        %v619 = vpow.pop %v618
        %v620 = vsel %vm607, %v617, 0.0
        %621 = vadd.xlane.f32.xlu0 %v620
        %v622 = vpop.xlane.xlu0 %621
        %v623 = vsel %vm607, %v619, 0.0
        %624 = vadd.xlane.f32.xlu0 %v623
        %v625 = vpop.xlane.xlu0 %624
        %v626 = vrcp.pop %v622
        %v627 = vrcp.pop %v625
        %v628 = vmul.f32 %v617, %v626
        %v629 = vmul.f32 %v619, %v627
        %v630 = vpack.c.bf16 %v629, %v628
        %631 = vrot.lane.b32.xlu0 %v553, 64
        %v632 = vpop.permute.xlu0 %631
        %v635 = vsel %vm607, %v630, 0
        %637 = vmatprep.subr.bf16.mxu0 0
        %638 = vmatpush1.bf16.msra.mxu0 %v632
        %639 = vmatprep.subr.bf16.mxu0 0
        %640 = vmatpush1.bf16.msra.mxu0 0
        %641 = vmatprep.subr.bf16.mxu0 0
        %642 = vmatpush1.bf16.msra.mxu0 0
        %643 = vmatprep.subr.bf16.mxu0 0
        %644 = vmatpush1.bf16.msra.mxu0 0
        %645 = vmatprep.subr.bf16.mxu0 0
        %646 = vmatpush1.bf16.msra.mxu0 0
        %647 = vmatprep.subr.bf16.mxu0 0
        %648 = vmatpush1.bf16.msra.mxu0 0
        %649 = vmatprep.subr.bf16.mxu0 0
        %650 = vmatpush1.bf16.msra.mxu0 0
        %651 = vmatprep.subr.bf16.mxu0 0
        %652 = vmatpush1.bf16.msra.mxu0 0
        %653 = vmatprep.subr.bf16.mxu0 0
        %654 = vmatpush1.bf16.msra.mxu0 0
        %655 = vmatprep.subr.bf16.mxu0 0
        %656 = vmatpush1.bf16.msra.mxu0 0
        %657 = vmatprep.subr.bf16.mxu0 0
        %658 = vmatpush1.bf16.msra.mxu0 0
        %659 = vmatprep.subr.bf16.mxu0 0
        %660 = vmatpush1.bf16.msra.mxu0 0
        %661 = vmatprep.subr.bf16.mxu0 0
        %662 = vmatpush1.bf16.msra.mxu0 0
        %663 = vmatprep.subr.bf16.mxu0 0
        %664 = vmatpush1.bf16.msra.mxu0 0
        %665 = vmatprep.subr.bf16.mxu0 0
        %666 = vmatpush1.bf16.msra.mxu0 0
        %667 = vmatprep.subr.bf16.mxu0 0
        %668 = vmatpush1.bf16.msra.mxu0 0
        %669 = vmatprep.mubr.bf16.mxu0 0
        %670 = vmatmul.mubr.bf16.gmra.mrb[0].mxu0 %v635
        %v671 = vpop.f32.mrb[0].mxu0
        %v672 = vadd.f32 0.0, %v671
        %v673 = vpop.f32.mrb[0].mxu0
        %v674 = vpop.f32.mrb[0].mxu0
        %v675 = vadd.f32 0.0, %v674
        %v676 = vpop.f32.mrb[0].mxu0
        %677 = vdwg.mxu0
        %679 = vrot.lane.b32.xlu0 %v552, 120
        %v680 = vpop.permute.xlu0 %679
        %681 = vrot.lane.b32.xlu0 %v553, 88
        %v682 = vpop.permute.xlu0 %681
        %v684 = vsel %vm557, %v680, 0
        %v687 = vsel %vm557, %v682, 0
        %689 = vmatprep.subr.bf16.mxu0 0
        %690 = vmatpush1.bf16.xpose.msra.mxu0 %v687
        %691 = vmatprep.subr.bf16.mxu0 0
        %692 = vmatpush1.bf16.xpose.msra.mxu0 0
        %693 = vmatprep.subr.bf16.mxu0 0
        %694 = vmatpush1.bf16.xpose.msra.mxu0 0
        %695 = vmatprep.subr.bf16.mxu0 0
        %696 = vmatpush1.bf16.xpose.msra.mxu0 0
        %697 = vmatprep.subr.bf16.mxu0 0
        %698 = vmatpush1.bf16.xpose.msra.mxu0 0
        %699 = vmatprep.subr.bf16.mxu0 0
        %700 = vmatpush1.bf16.xpose.msra.mxu0 0
        %701 = vmatprep.subr.bf16.mxu0 0
        %702 = vmatpush1.bf16.xpose.msra.mxu0 0
        %703 = vmatprep.subr.bf16.mxu0 0
        %704 = vmatpush1.bf16.xpose.msra.mxu0 0
        %705 = vmatprep.subr.bf16.mxu0 0
        %706 = vmatpush1.bf16.xpose.msra.mxu0 0
        %707 = vmatprep.subr.bf16.mxu0 0
        %708 = vmatpush1.bf16.xpose.msra.mxu0 0
        %709 = vmatprep.subr.bf16.mxu0 0
        %710 = vmatpush1.bf16.xpose.msra.mxu0 0
        %711 = vmatprep.subr.bf16.mxu0 0
        %712 = vmatpush1.bf16.xpose.msra.mxu0 0
        %713 = vmatprep.subr.bf16.mxu0 0
        %714 = vmatpush1.bf16.xpose.msra.mxu0 0
        %715 = vmatprep.subr.bf16.mxu0 0
        %716 = vmatpush1.bf16.xpose.msra.mxu0 0
        %717 = vmatprep.subr.bf16.mxu0 0
        %718 = vmatpush1.bf16.xpose.msra.mxu0 0
        %719 = vmatprep.subr.bf16.mxu0 0
        %720 = vmatpush1.bf16.xpose.msra.mxu0 0
        %721 = vmatprep.mubr.bf16.mxu0 0
        %722 = vmatmul.mubr.bf16.gmra.mrb[0].mxu0 %v684
        %v723 = vpop.f32.mrb[0].mxu0
        %v724 = vadd.f32 0.0, %v723
        %v725 = vpop.f32.mrb[0].mxu0
        %v726 = vpop.f32.mrb[0].mxu0
        %v727 = vadd.f32 0.0, %v726
        %v728 = vpop.f32.mrb[0].mxu0
        %729 = vdwg.mxu0
        %v730 = vmul.f32 %v724, 0.35355338
        %v731 = vmul.f32 %v727, 0.35355338
        %v732 = vsel %vm607, %v730, -inf
        %733 = vmax.xlane.f32.xlu0 %v732
        %v734 = vpop.xlane.xlu0 %733
        %v735 = vsel %vm607, %v731, -inf
        %736 = vmax.xlane.f32.xlu0 %v735
        %v737 = vpop.xlane.xlu0 %736
        %v738 = vsub.f32 %v730, %v734
        %v739 = vsub.f32 %v731, %v737
        %v740 = vmul.f32 %v738, 1.442695
        %v741 = vpow.pop %v740
        %v742 = vmul.f32 %v739, 1.442695
        %v743 = vpow.pop %v742
        %v744 = vsel %vm607, %v741, 0.0
        %745 = vadd.xlane.f32.xlu0 %v744
        %v746 = vpop.xlane.xlu0 %745
        %v747 = vsel %vm607, %v743, 0.0
        %748 = vadd.xlane.f32.xlu0 %v747
        %v749 = vpop.xlane.xlu0 %748
        %v750 = vrcp.pop %v746
        %v751 = vrcp.pop %v749
        %v752 = vmul.f32 %v741, %v750
        %v753 = vmul.f32 %v743, %v751
        %v754 = vpack.c.bf16 %v753, %v752
        %755 = vrot.lane.b32.xlu0 %v553, 56
        %v756 = vpop.permute.xlu0 %755
        %v759 = vsel %vm607, %v754, 0
        %761 = vmatprep.subr.bf16.mxu0 0
        %762 = vmatpush1.bf16.msra.mxu0 %v756
        %763 = vmatprep.subr.bf16.mxu0 0
        %764 = vmatpush1.bf16.msra.mxu0 0
        %765 = vmatprep.subr.bf16.mxu0 0
        %766 = vmatpush1.bf16.msra.mxu0 0
        %767 = vmatprep.subr.bf16.mxu0 0
        %768 = vmatpush1.bf16.msra.mxu0 0
        %769 = vmatprep.subr.bf16.mxu0 0
        %770 = vmatpush1.bf16.msra.mxu0 0
        %771 = vmatprep.subr.bf16.mxu0 0
        %772 = vmatpush1.bf16.msra.mxu0 0
        %773 = vmatprep.subr.bf16.mxu0 0
        %774 = vmatpush1.bf16.msra.mxu0 0
        %775 = vmatprep.subr.bf16.mxu0 0
        %776 = vmatpush1.bf16.msra.mxu0 0
        %777 = vmatprep.subr.bf16.mxu0 0
        %778 = vmatpush1.bf16.msra.mxu0 0
        %779 = vmatprep.subr.bf16.mxu0 0
        %780 = vmatpush1.bf16.msra.mxu0 0
        %781 = vmatprep.subr.bf16.mxu0 0
        %782 = vmatpush1.bf16.msra.mxu0 0
        %783 = vmatprep.subr.bf16.mxu0 0
        %784 = vmatpush1.bf16.msra.mxu0 0
        %785 = vmatprep.subr.bf16.mxu0 0
        %786 = vmatpush1.bf16.msra.mxu0 0
        %787 = vmatprep.subr.bf16.mxu0 0
        %788 = vmatpush1.bf16.msra.mxu0 0
        %789 = vmatprep.subr.bf16.mxu0 0
        %790 = vmatpush1.bf16.msra.mxu0 0
        %791 = vmatprep.subr.bf16.mxu0 0
        %792 = vmatpush1.bf16.msra.mxu0 0
        %793 = vmatprep.mubr.bf16.mxu0 0
        %794 = vmatmul.mubr.bf16.gmra.mrb[0].mxu0 %v759
        %v795 = vpop.f32.mrb[0].mxu0
        %v796 = vadd.f32 0.0, %v795
        %v797 = vpop.f32.mrb[0].mxu0
        %v798 = vpop.f32.mrb[0].mxu0
        %v799 = vadd.f32 0.0, %v798
        %v800 = vpop.f32.mrb[0].mxu0
        %801 = vdwg.mxu0
        %802 = vrot.lane.b32.xlu0 %v552, 112
        %v803 = vpop.permute.xlu0 %802
        %804 = vrot.lane.b32.xlu0 %v553, 80
        %v805 = vpop.permute.xlu0 %804
        %v807 = vsel %vm557, %v803, 0
        %v810 = vsel %vm557, %v805, 0
        %812 = vmatprep.subr.bf16.mxu0 0
        %813 = vmatpush1.bf16.xpose.msra.mxu0 %v810
        %814 = vmatprep.subr.bf16.mxu0 0
        %815 = vmatpush1.bf16.xpose.msra.mxu0 0
        %816 = vmatprep.subr.bf16.mxu0 0
        %817 = vmatpush1.bf16.xpose.msra.mxu0 0
        %818 = vmatprep.subr.bf16.mxu0 0
        %819 = vmatpush1.bf16.xpose.msra.mxu0 0
        %820 = vmatprep.subr.bf16.mxu0 0
        %821 = vmatpush1.bf16.xpose.msra.mxu0 0
        %822 = vmatprep.subr.bf16.mxu0 0
        %823 = vmatpush1.bf16.xpose.msra.mxu0 0
        %824 = vmatprep.subr.bf16.mxu0 0
        %825 = vmatpush1.bf16.xpose.msra.mxu0 0
        %826 = vmatprep.subr.bf16.mxu0 0
        %827 = vmatpush1.bf16.xpose.msra.mxu0 0
        %828 = vmatprep.subr.bf16.mxu0 0
        %829 = vmatpush1.bf16.xpose.msra.mxu0 0
        %830 = vmatprep.subr.bf16.mxu0 0
        %831 = vmatpush1.bf16.xpose.msra.mxu0 0
        %832 = vmatprep.subr.bf16.mxu0 0
        %833 = vmatpush1.bf16.xpose.msra.mxu0 0
        %834 = vmatprep.subr.bf16.mxu0 0
        %835 = vmatpush1.bf16.xpose.msra.mxu0 0
        %836 = vmatprep.subr.bf16.mxu0 0
        %837 = vmatpush1.bf16.xpose.msra.mxu0 0
        %838 = vmatprep.subr.bf16.mxu0 0
        %839 = vmatpush1.bf16.xpose.msra.mxu0 0
        %840 = vmatprep.subr.bf16.mxu0 0
        %841 = vmatpush1.bf16.xpose.msra.mxu0 0
        %842 = vmatprep.subr.bf16.mxu0 0
        %843 = vmatpush1.bf16.xpose.msra.mxu0 0
        %844 = vmatprep.mubr.bf16.mxu0 0
        %845 = vmatmul.mubr.bf16.gmra.mrb[0].mxu0 %v807
        %v846 = vpop.f32.mrb[0].mxu0
        %v847 = vadd.f32 0.0, %v846
        %v848 = vpop.f32.mrb[0].mxu0
        %v849 = vpop.f32.mrb[0].mxu0
        %v850 = vadd.f32 0.0, %v849
        %v851 = vpop.f32.mrb[0].mxu0
        %852 = vdwg.mxu0
        %v853 = vmul.f32 %v847, 0.35355338
        %v854 = vmul.f32 %v850, 0.35355338
        %v855 = vsel %vm607, %v853, -inf
        %856 = vmax.xlane.f32.xlu0 %v855
        %v857 = vpop.xlane.xlu0 %856
        %v858 = vsel %vm607, %v854, -inf
        %859 = vmax.xlane.f32.xlu0 %v858
        %v860 = vpop.xlane.xlu0 %859
        %v861 = vsub.f32 %v853, %v857
        %v862 = vsub.f32 %v854, %v860
        %v863 = vmul.f32 %v861, 1.442695
        %v864 = vpow.pop %v863
        %v865 = vmul.f32 %v862, 1.442695
        %v866 = vpow.pop %v865
        %v867 = vsel %vm607, %v864, 0.0
        %868 = vadd.xlane.f32.xlu0 %v867
        %v869 = vpop.xlane.xlu0 %868
        %v870 = vsel %vm607, %v866, 0.0
        %871 = vadd.xlane.f32.xlu0 %v870
        %v872 = vpop.xlane.xlu0 %871
        %v873 = vrcp.pop %v869
        %v874 = vrcp.pop %v872
        %v875 = vmul.f32 %v864, %v873
        %v876 = vmul.f32 %v866, %v874
        %v877 = vpack.c.bf16 %v876, %v875
        %878 = vrot.lane.b32.xlu0 %v553, 48
        %v879 = vpop.permute.xlu0 %878
        %v882 = vsel %vm607, %v877, 0
        %884 = vmatprep.subr.bf16.mxu0 0
        %885 = vmatpush1.bf16.msra.mxu0 %v879
        %886 = vmatprep.subr.bf16.mxu0 0
        %887 = vmatpush1.bf16.msra.mxu0 0
        %888 = vmatprep.subr.bf16.mxu0 0
        %889 = vmatpush1.bf16.msra.mxu0 0
        %890 = vmatprep.subr.bf16.mxu0 0
        %891 = vmatpush1.bf16.msra.mxu0 0
        %892 = vmatprep.subr.bf16.mxu0 0
        %893 = vmatpush1.bf16.msra.mxu0 0
        %894 = vmatprep.subr.bf16.mxu0 0
        %895 = vmatpush1.bf16.msra.mxu0 0
        %896 = vmatprep.subr.bf16.mxu0 0
        %897 = vmatpush1.bf16.msra.mxu0 0
        %898 = vmatprep.subr.bf16.mxu0 0
        %899 = vmatpush1.bf16.msra.mxu0 0
        %900 = vmatprep.subr.bf16.mxu0 0
        %901 = vmatpush1.bf16.msra.mxu0 0
        %902 = vmatprep.subr.bf16.mxu0 0
        %903 = vmatpush1.bf16.msra.mxu0 0
        %904 = vmatprep.subr.bf16.mxu0 0
        %905 = vmatpush1.bf16.msra.mxu0 0
        %906 = vmatprep.subr.bf16.mxu0 0
        %907 = vmatpush1.bf16.msra.mxu0 0
        %908 = vmatprep.subr.bf16.mxu0 0
        %909 = vmatpush1.bf16.msra.mxu0 0
        %910 = vmatprep.subr.bf16.mxu0 0
        %911 = vmatpush1.bf16.msra.mxu0 0
        %912 = vmatprep.subr.bf16.mxu0 0
        %913 = vmatpush1.bf16.msra.mxu0 0
        %914 = vmatprep.subr.bf16.mxu0 0
        %915 = vmatpush1.bf16.msra.mxu0 0
        %916 = vmatprep.mubr.bf16.mxu0 0
        %917 = vmatmul.mubr.bf16.gmra.mrb[0].mxu0 %v882
        %v918 = vpop.f32.mrb[0].mxu0
        %v919 = vadd.f32 0.0, %v918
        %v920 = vpop.f32.mrb[0].mxu0
        %v921 = vpop.f32.mrb[0].mxu0
        %v922 = vadd.f32 0.0, %v921
        %v923 = vpop.f32.mrb[0].mxu0
        %924 = vdwg.mxu0
        %925 = vrot.lane.b32.xlu0 %v552, 104
        %v926 = vpop.permute.xlu0 %925
        %927 = vrot.lane.b32.xlu0 %v553, 72
        %v928 = vpop.permute.xlu0 %927
        %v930 = vsel %vm557, %v926, 0
        %v933 = vsel %vm557, %v928, 0
        %935 = vmatprep.subr.bf16.mxu0 0
        %936 = vmatpush1.bf16.xpose.msra.mxu0 %v933
        %937 = vmatprep.subr.bf16.mxu0 0
        %938 = vmatpush1.bf16.xpose.msra.mxu0 0
        %939 = vmatprep.subr.bf16.mxu0 0
        %940 = vmatpush1.bf16.xpose.msra.mxu0 0
        %941 = vmatprep.subr.bf16.mxu0 0
        %942 = vmatpush1.bf16.xpose.msra.mxu0 0
        %943 = vmatprep.subr.bf16.mxu0 0
        %944 = vmatpush1.bf16.xpose.msra.mxu0 0
        %945 = vmatprep.subr.bf16.mxu0 0
        %946 = vmatpush1.bf16.xpose.msra.mxu0 0
        %947 = vmatprep.subr.bf16.mxu0 0
        %948 = vmatpush1.bf16.xpose.msra.mxu0 0
        %949 = vmatprep.subr.bf16.mxu0 0
        %950 = vmatpush1.bf16.xpose.msra.mxu0 0
        %951 = vmatprep.subr.bf16.mxu0 0
        %952 = vmatpush1.bf16.xpose.msra.mxu0 0
        %953 = vmatprep.subr.bf16.mxu0 0
        %954 = vmatpush1.bf16.xpose.msra.mxu0 0
        %955 = vmatprep.subr.bf16.mxu0 0
        %956 = vmatpush1.bf16.xpose.msra.mxu0 0
        %957 = vmatprep.subr.bf16.mxu0 0
        %958 = vmatpush1.bf16.xpose.msra.mxu0 0
        %959 = vmatprep.subr.bf16.mxu0 0
        %960 = vmatpush1.bf16.xpose.msra.mxu0 0
        %961 = vmatprep.subr.bf16.mxu0 0
        %962 = vmatpush1.bf16.xpose.msra.mxu0 0
        %963 = vmatprep.subr.bf16.mxu0 0
        %964 = vmatpush1.bf16.xpose.msra.mxu0 0
        %965 = vmatprep.subr.bf16.mxu0 0
        %966 = vmatpush1.bf16.xpose.msra.mxu0 0
        %967 = vmatprep.mubr.bf16.mxu0 0
        %968 = vmatmul.mubr.bf16.gmra.mrb[0].mxu0 %v930
        %v969 = vpop.f32.mrb[0].mxu0
        %v970 = vadd.f32 0.0, %v969
        %v971 = vpop.f32.mrb[0].mxu0
        %v972 = vpop.f32.mrb[0].mxu0
        %v973 = vadd.f32 0.0, %v972
        %v974 = vpop.f32.mrb[0].mxu0
        %975 = vdwg.mxu0
        %v976 = vmul.f32 %v970, 0.35355338
        %v977 = vmul.f32 %v973, 0.35355338
        %v978 = vsel %vm607, %v976, -inf
        %979 = vmax.xlane.f32.xlu0 %v978
        %v980 = vpop.xlane.xlu0 %979
        %v981 = vsel %vm607, %v977, -inf
        %982 = vmax.xlane.f32.xlu0 %v981
        %v983 = vpop.xlane.xlu0 %982
        %v984 = vsub.f32 %v976, %v980
        %v985 = vsub.f32 %v977, %v983
        %v986 = vmul.f32 %v984, 1.442695
        %v987 = vpow.pop %v986
        %v988 = vmul.f32 %v985, 1.442695
        %v989 = vpow.pop %v988
        %v990 = vsel %vm607, %v987, 0.0
        %991 = vadd.xlane.f32.xlu0 %v990
        %v992 = vpop.xlane.xlu0 %991
        %v993 = vsel %vm607, %v989, 0.0
        %994 = vadd.xlane.f32.xlu0 %v993
        %v995 = vpop.xlane.xlu0 %994
        %v996 = vrcp.pop %v992
        %v997 = vrcp.pop %v995
        %v998 = vmul.f32 %v987, %v996
        %v999 = vmul.f32 %v989, %v997
        %v1000 = vpack.c.bf16 %v999, %v998
        %1001 = vrot.lane.b32.xlu0 %v553, 40
        %v1002 = vpop.permute.xlu0 %1001
        %v1005 = vsel %vm607, %v1000, 0
        %1007 = vmatprep.subr.bf16.mxu0 0
        %1008 = vmatpush1.bf16.msra.mxu0 %v1002
        %1009 = vmatprep.subr.bf16.mxu0 0
        %1010 = vmatpush1.bf16.msra.mxu0 0
        %1011 = vmatprep.subr.bf16.mxu0 0
        %1012 = vmatpush1.bf16.msra.mxu0 0
        %1013 = vmatprep.subr.bf16.mxu0 0
        %1014 = vmatpush1.bf16.msra.mxu0 0
        %1015 = vmatprep.subr.bf16.mxu0 0
        %1016 = vmatpush1.bf16.msra.mxu0 0
        %1017 = vmatprep.subr.bf16.mxu0 0
        %1018 = vmatpush1.bf16.msra.mxu0 0
        %1019 = vmatprep.subr.bf16.mxu0 0
        %1020 = vmatpush1.bf16.msra.mxu0 0
        %1021 = vmatprep.subr.bf16.mxu0 0
        %1022 = vmatpush1.bf16.msra.mxu0 0
        %1023 = vmatprep.subr.bf16.mxu0 0
        %1024 = vmatpush1.bf16.msra.mxu0 0
        %1025 = vmatprep.subr.bf16.mxu0 0
        %1026 = vmatpush1.bf16.msra.mxu0 0
        %1027 = vmatprep.subr.bf16.mxu0 0
        %1028 = vmatpush1.bf16.msra.mxu0 0
        %1029 = vmatprep.subr.bf16.mxu0 0
        %1030 = vmatpush1.bf16.msra.mxu0 0
        %1031 = vmatprep.subr.bf16.mxu0 0
        %1032 = vmatpush1.bf16.msra.mxu0 0
        %1033 = vmatprep.subr.bf16.mxu0 0
        %1034 = vmatpush1.bf16.msra.mxu0 0
        %1035 = vmatprep.subr.bf16.mxu0 0
        %1036 = vmatpush1.bf16.msra.mxu0 0
        %1037 = vmatprep.subr.bf16.mxu0 0
        %1038 = vmatpush1.bf16.msra.mxu0 0
        %1039 = vmatprep.mubr.bf16.mxu0 0
        %1040 = vmatmul.mubr.bf16.gmra.mrb[0].mxu0 %v1005
        %v1041 = vpop.f32.mrb[0].mxu0
        %v1042 = vadd.f32 0.0, %v1041
        %v1043 = vpop.f32.mrb[0].mxu0
        %v1044 = vpop.f32.mrb[0].mxu0
        %v1045 = vadd.f32 0.0, %v1044
        %v1046 = vpop.f32.mrb[0].mxu0
        %1047 = vdwg.mxu0
        %1050 = vrot.lane.b32.xlu0 %v796, 8
        %v1051 = vpop.permute.xlu0 %1050
        %1052 = vrot.lane.b32.xlu0 %v799, 8
        %v1053 = vpop.permute.xlu0 %1052
        %1058 = vrot.lane.b32.xlu0 %v919, 16
        %v1059 = vpop.permute.xlu0 %1058
        %1060 = vrot.lane.b32.xlu0 %v922, 16
        %v1061 = vpop.permute.xlu0 %1060
        %1066 = vrot.lane.b32.xlu0 %v1042, 24
        %v1067 = vpop.permute.xlu0 %1066
        %1068 = vrot.lane.b32.xlu0 %v1045, 24
        %v1069 = vpop.permute.xlu0 %1068
        %v1072 = vsel %vm557, %v672, %v1051
        %v1073 = vsel %vm557, %v675, %v1053
        %v1074 = vsel %vm607, %v1072, %v1059
        %v1075 = vsel %vm607, %v1073, %v1061
        %vm1076 = vcmask 195584
        %v1077 = vsel %vm1076, %v1074, %v1067
        %v1078 = vsel %vm1076, %v1075, %v1069
        %v1079 = vpack.c.bf16 %v1078, %v1077
        %v1080 = vld [vmem:[%s4] sm:$0xf]
        %v1081 = vld [vmem:[%s4 + $0x4] sm:$0xf]
        %v1082 = vld [vmem:[%s4 + $0x8] sm:$0xf]
        %v1083 = vld [vmem:[%s4 + $0xc] sm:$0xf]
        %v1084 = vld [vmem:[%s5] sm:$0x1]
        %v1086 = vlaneseq
        %v1087 = vshrl.u32 %v1086, 7
        %v1088 = vsub.s32 0, %v1087
        %v1089 = vrot.slane %v1084, %v1088
        %v1095 = vunpack.c.l.b16 %v1080
        %v1096 = vunpack.c.l.b16 %v1081
        %v1097 = vunpack.c.l.b16 %v1082
        %v1098 = vunpack.c.l.b16 %v1083
        %v1099 = vpack.c.b16 %v1096, %v1095
        %v1100 = vpack.c.b16 %v1098, %v1097
        %vm1103 = vcmask 261120
        %v1105 = vsel %vm1103, %v1079, 0
        %1107 = vmatprep.subr.bf16.mxu0 0
        %1108 = vmatpush1.bf16.msra.mxu0 %v1099
        %1109 = vmatprep.subr.bf16.mxu0 0
        %1110 = vmatpush1.bf16.msra.mxu0 %v1100
        %1111 = vmatprep.subr.bf16.mxu0 0
        %1112 = vmatpush1.bf16.msra.mxu0 0
        %1113 = vmatprep.subr.bf16.mxu0 0
        %1114 = vmatpush1.bf16.msra.mxu0 0
        %1115 = vmatprep.subr.bf16.mxu0 0
        %1116 = vmatpush1.bf16.msra.mxu0 0
        %1117 = vmatprep.subr.bf16.mxu0 0
        %1118 = vmatpush1.bf16.msra.mxu0 0
        %1119 = vmatprep.subr.bf16.mxu0 0
        %1120 = vmatpush1.bf16.msra.mxu0 0
        %1121 = vmatprep.subr.bf16.mxu0 0
        %1122 = vmatpush1.bf16.msra.mxu0 0
        %1123 = vmatprep.subr.bf16.mxu0 0
        %1124 = vmatpush1.bf16.msra.mxu0 0
        %1125 = vmatprep.subr.bf16.mxu0 0
        %1126 = vmatpush1.bf16.msra.mxu0 0
        %1127 = vmatprep.subr.bf16.mxu0 0
        %1128 = vmatpush1.bf16.msra.mxu0 0
        %1129 = vmatprep.subr.bf16.mxu0 0
        %1130 = vmatpush1.bf16.msra.mxu0 0
        %1131 = vmatprep.subr.bf16.mxu0 0
        %1132 = vmatpush1.bf16.msra.mxu0 0
        %1133 = vmatprep.subr.bf16.mxu0 0
        %1134 = vmatpush1.bf16.msra.mxu0 0
        %1135 = vmatprep.subr.bf16.mxu0 0
        %1136 = vmatpush1.bf16.msra.mxu0 0
        %1137 = vmatprep.subr.bf16.mxu0 0
        %1138 = vmatpush1.bf16.msra.mxu0 0
        %1139 = vmatprep.mubr.bf16.mxu0 0
        %1140 = vmatmul.mubr.bf16.gmra.mrb[0].mxu0 %v1105
        %v1141 = vpop.f32.mrb[0].mxu0
        %v1142 = vadd.f32 %v1089, %v1141
        %v1143 = vpop.f32.mrb[0].mxu0
        %v1144 = vpop.f32.mrb[0].mxu0
        %v1145 = vadd.f32 %v1089, %v1144
        %v1146 = vpop.f32.mrb[0].mxu0
        %1147 = vdwg.mxu0
        %v1148 = vadd.f32 %v546, %v1142
        %v1149 = vadd.f32 %v547, %v1145
        %v1150 = vld [vmem:[%s6] sm:$0x1]
        %v1151 = vld [vmem:[%s7] sm:$0x1]
        %v1152 = vsel %vm1103, %v1148, 0.0
        %1153 = vadd.xlane.f32.xlu0 %v1152
        %v1154 = vpop.xlane.xlu0 %1153
        %v1155 = vsel %vm1103, %v1149, 0.0
        %1156 = vadd.xlane.f32.xlu0 %v1155
        %v1157 = vpop.xlane.xlu0 %1156
        %v1158 = vrcp.pop 32.0
        %v1159 = vmul.f32 %v1154, %v1158
        %v1160 = vmul.f32 %v1157, %v1158
        %v1161 = vsub.f32 %v1148, %v1159
        %v1162 = vsub.f32 %v1149, %v1160
        %v1163 = vmul.f32 %v1161, %v1161
        %v1164 = vmul.f32 %v1162, %v1162
        %v1165 = vsel %vm1103, %v1163, 0.0
        %1166 = vadd.xlane.f32.xlu0 %v1165
        %v1167 = vpop.xlane.xlu0 %1166
        %v1168 = vsel %vm1103, %v1164, 0.0
        %1169 = vadd.xlane.f32.xlu0 %v1168
        %v1170 = vpop.xlane.xlu0 %1169
        %v1171 = vmul.f32 %v1167, %v1158
        %v1172 = vmul.f32 %v1170, %v1158
        %v1173 = vadd.f32 %v1171, 1e-05
        %v1174 = vadd.f32 %v1172, 1e-05
        %v1175 = vrsqrt.pop %v1173
        %v1176 = vrsqrt.pop %v1174
        %v1177 = vmul.f32 %v1161, %v1175
        %v1178 = vmul.f32 %v1162, %v1176
        %v1180 = vlaneseq
        %v1181 = vshrl.u32 %v1180, 7
        %v1182 = vsub.s32 0, %v1181
        %v1183 = vrot.slane %v1150, %v1182
        %v1185 = vmul.f32 %v1177, %v1183
        %v1186 = vmul.f32 %v1178, %v1183
        %v1188 = vlaneseq
        %v1189 = vshrl.u32 %v1188, 7
        %v1190 = vsub.s32 0, %v1189
        %v1191 = vrot.slane %v1151, %v1190
        %v1193 = vadd.f32 %v1185, %v1191
        %v1194 = vadd.f32 %v1186, %v1191
        %v1195 = vpack.c.bf16 %v1194, %v1193
        %v1196 = vld [vmem:[%s8] sm:$0xf]
        %v1197 = vld [vmem:[%s8 + $0x4] sm:$0xf]
        %v1198 = vld [vmem:[%s8 + $0x8] sm:$0xf]
        %v1199 = vld [vmem:[%s8 + $0xc] sm:$0xf]
        %v1200 = vld [vmem:[%s9] sm:$0x1]
        %v1202 = vlaneseq
        %v1203 = vshrl.u32 %v1202, 7
        %v1204 = vsub.s32 0, %v1203
        %v1205 = vrot.slane %v1200, %v1204
        %v1211 = vunpack.c.l.b16 %v1196
        %v1212 = vunpack.c.l.b16 %v1197
        %v1213 = vunpack.c.l.b16 %v1198
        %v1214 = vunpack.c.l.b16 %v1199
        %v1215 = vpack.c.b16 %v1212, %v1211
        %v1216 = vpack.c.b16 %v1214, %v1213
        %v1220 = vsel %vm1103, %v1195, 0
        %1222 = vmatprep.subr.bf16.mxu0 0
        %1223 = vmatpush1.bf16.msra.mxu0 %v1215
        %1224 = vmatprep.subr.bf16.mxu0 0
        %1225 = vmatpush1.bf16.msra.mxu0 %v1216
        %1226 = vmatprep.subr.bf16.mxu0 0
        %1227 = vmatpush1.bf16.msra.mxu0 0
        %1228 = vmatprep.subr.bf16.mxu0 0
        %1229 = vmatpush1.bf16.msra.mxu0 0
        %1230 = vmatprep.subr.bf16.mxu0 0
        %1231 = vmatpush1.bf16.msra.mxu0 0
        %1232 = vmatprep.subr.bf16.mxu0 0
        %1233 = vmatpush1.bf16.msra.mxu0 0
        %1234 = vmatprep.subr.bf16.mxu0 0
        %1235 = vmatpush1.bf16.msra.mxu0 0
        %1236 = vmatprep.subr.bf16.mxu0 0
        %1237 = vmatpush1.bf16.msra.mxu0 0
        %1238 = vmatprep.subr.bf16.mxu0 0
        %1239 = vmatpush1.bf16.msra.mxu0 0
        %1240 = vmatprep.subr.bf16.mxu0 0
        %1241 = vmatpush1.bf16.msra.mxu0 0
        %1242 = vmatprep.subr.bf16.mxu0 0
        %1243 = vmatpush1.bf16.msra.mxu0 0
        %1244 = vmatprep.subr.bf16.mxu0 0
        %1245 = vmatpush1.bf16.msra.mxu0 0
        %1246 = vmatprep.subr.bf16.mxu0 0
        %1247 = vmatpush1.bf16.msra.mxu0 0
        %1248 = vmatprep.subr.bf16.mxu0 0
        %1249 = vmatpush1.bf16.msra.mxu0 0
        %1250 = vmatprep.subr.bf16.mxu0 0
        %1251 = vmatpush1.bf16.msra.mxu0 0
        %1252 = vmatprep.subr.bf16.mxu0 0
        %1253 = vmatpush1.bf16.msra.mxu0 0
        %1254 = vmatprep.mubr.bf16.mxu0 0
        %1255 = vmatmul.mubr.bf16.gmra.mrb[0].mxu0 %v1220
        %v1256 = vpop.f32.mrb[0].mxu0
        %v1257 = vadd.f32 %v1205, %v1256
        %v1258 = vpop.f32.mrb[0].mxu0
        %v1259 = vpop.f32.mrb[0].mxu0
        %v1260 = vadd.f32 %v1205, %v1259
        %v1261 = vpop.f32.mrb[0].mxu0
        %1262 = vdwg.mxu0
        %v1263 = vmul.f32 %v1257, 0.5
        %v1264 = vmul.f32 %v1260, 0.5
        %v1265 = vmul.f32 %v1257, 0.044715
        %v1266 = vmul.f32 %v1260, 0.044715
        %v1267 = vmul.f32 %v1265, %v1257
        %v1268 = vmul.f32 %v1266, %v1260
        %v1269 = vmul.f32 %v1267, %v1257
        %v1270 = vmul.f32 %v1268, %v1260
        %v1271 = vadd.f32 %v1257, %v1269
        %v1272 = vadd.f32 %v1260, %v1270
        %v1273 = vmul.f32 %v1271, 0.7978846
        %v1274 = vmul.f32 %v1272, 0.7978846
        %v1275 = vtanh.pop %v1273
        %v1276 = vtanh.pop %v1274
        %v1277 = vadd.f32 %v1275, 1.0
        %v1278 = vadd.f32 %v1276, 1.0
        %v1279 = vmul.f32 %v1263, %v1277
        %v1280 = vmul.f32 %v1264, %v1278
        %v1281 = vpack.c.bf16 %v1280, %v1279
        %v1282 = vld [vmem:[%s10] sm:$0xf]
        %v1283 = vld [vmem:[%s10 + $0x4] sm:$0xf]
        %v1284 = vld [vmem:[%s10 + $0x8] sm:$0xf]
        %v1285 = vld [vmem:[%s10 + $0xc] sm:$0xf]
        %v1286 = vld [vmem:[%s10 + $0x10] sm:$0xf]
        %v1287 = vld [vmem:[%s10 + $0x14] sm:$0xf]
        %v1288 = vld [vmem:[%s10 + $0x18] sm:$0xf]
        %v1289 = vld [vmem:[%s10 + $0x1c] sm:$0xf]
        %v1290 = vld [vmem:[%s10 + $0x20] sm:$0xf]
        %v1291 = vld [vmem:[%s10 + $0x24] sm:$0xf]
        %v1292 = vld [vmem:[%s10 + $0x28] sm:$0xf]
        %v1293 = vld [vmem:[%s10 + $0x2c] sm:$0xf]
        %v1294 = vld [vmem:[%s10 + $0x30] sm:$0xf]
        %v1295 = vld [vmem:[%s10 + $0x34] sm:$0xf]
        %v1296 = vld [vmem:[%s10 + $0x38] sm:$0xf]
        %v1297 = vld [vmem:[%s10 + $0x3c] sm:$0xf]
        %v1298 = vld [vmem:[%s11] sm:$0x1]
        %v1300 = vlaneseq
        %v1301 = vshrl.u32 %v1300, 7
        %v1302 = vsub.s32 0, %v1301
        %v1303 = vrot.slane %v1298, %v1302
        %v1321 = vunpack.c.l.b16 %v1282
        %v1322 = vunpack.c.l.b16 %v1283
        %v1323 = vunpack.c.l.b16 %v1284
        %v1324 = vunpack.c.l.b16 %v1285
        %v1325 = vunpack.c.l.b16 %v1286
        %v1326 = vunpack.c.l.b16 %v1287
        %v1327 = vunpack.c.l.b16 %v1288
        %v1328 = vunpack.c.l.b16 %v1289
        %v1329 = vunpack.c.l.b16 %v1290
        %v1330 = vunpack.c.l.b16 %v1291
        %v1331 = vunpack.c.l.b16 %v1292
        %v1332 = vunpack.c.l.b16 %v1293
        %v1333 = vunpack.c.l.b16 %v1294
        %v1334 = vunpack.c.l.b16 %v1295
        %v1335 = vunpack.c.l.b16 %v1296
        %v1336 = vunpack.c.l.b16 %v1297
        %v1337 = vpack.c.b16 %v1322, %v1321
        %v1338 = vpack.c.b16 %v1324, %v1323
        %v1339 = vpack.c.b16 %v1326, %v1325
        %v1340 = vpack.c.b16 %v1328, %v1327
        %v1341 = vpack.c.b16 %v1330, %v1329
        %v1342 = vpack.c.b16 %v1332, %v1331
        %v1343 = vpack.c.b16 %v1334, %v1333
        %v1344 = vpack.c.b16 %v1336, %v1335
        %1353 = vmatprep.subr.bf16.mxu0 0
        %1354 = vmatpush1.bf16.msra.mxu0 %v1337
        %1355 = vmatprep.subr.bf16.mxu0 0
        %1356 = vmatpush1.bf16.msra.mxu0 %v1338
        %1357 = vmatprep.subr.bf16.mxu0 0
        %1358 = vmatpush1.bf16.msra.mxu0 %v1339
        %1359 = vmatprep.subr.bf16.mxu0 0
        %1360 = vmatpush1.bf16.msra.mxu0 %v1340
        %1361 = vmatprep.subr.bf16.mxu0 0
        %1362 = vmatpush1.bf16.msra.mxu0 %v1341
        %1363 = vmatprep.subr.bf16.mxu0 0
        %1364 = vmatpush1.bf16.msra.mxu0 %v1342
        %1365 = vmatprep.subr.bf16.mxu0 0
        %1366 = vmatpush1.bf16.msra.mxu0 %v1343
        %1367 = vmatprep.subr.bf16.mxu0 0
        %1368 = vmatpush1.bf16.msra.mxu0 %v1344
        %1369 = vmatprep.subr.bf16.mxu0 0
        %1370 = vmatpush1.bf16.msra.mxu0 0
        %1371 = vmatprep.subr.bf16.mxu0 0
        %1372 = vmatpush1.bf16.msra.mxu0 0
        %1373 = vmatprep.subr.bf16.mxu0 0
        %1374 = vmatpush1.bf16.msra.mxu0 0
        %1375 = vmatprep.subr.bf16.mxu0 0
        %1376 = vmatpush1.bf16.msra.mxu0 0
        %1377 = vmatprep.subr.bf16.mxu0 0
        %1378 = vmatpush1.bf16.msra.mxu0 0
        %1379 = vmatprep.subr.bf16.mxu0 0
        %1380 = vmatpush1.bf16.msra.mxu0 0
        %1381 = vmatprep.subr.bf16.mxu0 0
        %1382 = vmatpush1.bf16.msra.mxu0 0
        %1383 = vmatprep.subr.bf16.mxu0 0
        %1384 = vmatpush1.bf16.msra.mxu0 0
        %1385 = vmatprep.mubr.bf16.mxu0 0
        %1386 = vmatmul.mubr.bf16.gmra.mrb[0].mxu0 %v1281
        %v1387 = vpop.f32.mrb[0].mxu0
        %v1388 = vadd.f32 %v1303, %v1387
        %v1389 = vpop.f32.mrb[0].mxu0
        %v1390 = vpop.f32.mrb[0].mxu0
        %v1391 = vadd.f32 %v1303, %v1390
        %v1392 = vpop.f32.mrb[0].mxu0
        %1393 = vdwg.mxu0
        %v1394 = vadd.f32 %v1148, %v1388
        %v1395 = vadd.f32 %v1149, %v1391
        %1396 = vst.msk [vmem:[%s420] sm:$0xff] %vm1103, %v1394
        %1397 = vst.msk [vmem:[%s420 + $0x8] sm:$0xff] %vm1103, %v1395
        %s1398 = sand.u32 %s305, 1
        %s1399 = scalar_lea.sflag [#allocation4], %s1398
        %s1400 = sand.u32 %s305, 1
        %s1401 = smul.addr %s1400, 16
        %s1402 = scalar_lea.vmem [#allocation3], %s1401
        // Predicated region
        $region73: #{tpu_custom_call.1} parent=67 // pred_check
          %p1403 = pneg %p315
        $region74: #{tpu_custom_call.1} parent=67 // pred_check_branch
          %1405 = sbr.rel (%p1403) target = $region76
        $region75: #{tpu_custom_call.1} parent=67 // pred_region
          %s1406 = smul.u32 2, %s31
          %s1408 = ssub.s32 256, 256
          %1409 = vsyncadd %s1399, %s1408
          %s1410 = smul.addr %s30, 2
          %s1411 = sadd.s32 %s1406, %s1410
          %s1412 = smul.addr %s1411, 128
          %s1413 = scalar_lea.hbm %s12, %s1412
          %s1414 = sshll.u32 %s1402, 4
          %s1415 = int_to_ptr.vmem [resolvable:$true] %s1414
          %1420 = dma.vmem_to_hbm [thread:$0]  %s1415, 256, %s1413, %s1399, 128, 128, 8
        $region76: #{tpu_custom_call.1} parent=67 // pred_fallthru
          _
      $region68: #{tpu_custom_call.1} parent=5 // pred_fallthru
        _
      %p1421 = scmp.le.s32.totalorder 2, %s21
      // Predicated region
      $region77: #{tpu_custom_call.1} parent=5 // pred_check
        %p1422 = pneg %p1421
      $region78: #{tpu_custom_call.1} parent=5 // pred_check_branch
        %1424 = sbr.rel (%p1422) target = $region80
      $region79: #{tpu_custom_call.1} parent=5 // pred_region
        %s1425 = ssub.s32 %s21, 2
        // Predicated region
        $region81: #{tpu_custom_call.1} parent=79 // pred_check
          %p1426 = pneg %p321
        $region82: #{tpu_custom_call.1} parent=79 // pred_check_branch
          %1428 = sbr.rel (%p1426) target = $region84
        $region83: #{tpu_custom_call.1} parent=79 // pred_region
          %s1429 = sand.u32 %s306, 1
          %s1430 = scalar_lea.sflag [#allocation4], %s1429
          %s1431 = sand.u32 %s306, 1
          %s1432 = smul.addr %s1431, 16
          %s1433 = scalar_lea.vmem [#allocation3], %s1432
          %1434 = dma.done %s1430, 256
        $region84: #{tpu_custom_call.1} parent=79 // pred_fallthru
          _
      $region80: #{tpu_custom_call.1} parent=5 // pred_fallthru
        _
    $region6: #{tpu_custom_call.1} parent=1 // loop_footer
      %s25 = sadd.s32 1, %s21
    $region7: #{tpu_custom_call.1} parent=1 // loop_footer_branch
      %20 = sbr.rel target = $region3
    $region8: #{tpu_custom_call.1} parent=1 // loop_exit
      _
    %1435 = vsyncpa [#allocation4], 1
    %s1436 = scalar_lea.sflag [#allocation4], 1
    %1437 = vsyncpa %s1436, 1

</llo_original>
